<compile_context>
chip_gen: v7x
topology: tpu7x:2x2x1
jax: 0.10.0
libtpu: 0.0.40
codegen_flags: <defaults>
</compile_context>

<pallas_src>
import functools

import jax
import jax.numpy as jnp
from jax.experimental import pallas as pl
from jax.experimental.pallas import tpu as pltpu


BN_EPS = 1e-5
CLASSIFIER_SPEC = (512, 256, 128, 128, 0.5, 2)   # 0.5 = Dropout (identity in eval mode)
OUT_PAD = 128                                    # pad final 2-channel conv to lane-dense 128
VMEM_LIMIT = 32 * 1024 * 1024


def _round_up(x, m):
    return ((x + m - 1) // m) * m


# ----------------------------------------------------------------------------
# Pallas kernels
# ----------------------------------------------------------------------------
def _encoder_kernel(*refs, n_point, n_cloud, n_valid, tn, need_mask):
    """Fused point-stack + cloud-stack + per-batch running max over points.

    refs = [x, (w, shift) * n_point, (w, shift) * n_cloud,    # inputs
            point_features_out, cloud_max_out,                # outputs
            max_acc_scratch]                                   # scratch
    """
    x_ref = refs[0]
    idx = 1
    point = [(refs[idx + 2 * i], refs[idx + 2 * i + 1]) for i in range(n_point)]
    idx += 2 * n_point
    cloud = [(refs[idx + 2 * i], refs[idx + 2 * i + 1]) for i in range(n_cloud)]
    idx += 2 * n_cloud
    pf_ref, cmax_ref, acc_ref = refs[idx], refs[idx + 1], refs[idx + 2]

    nt = pl.program_id(1)
    n_tiles = pl.num_programs(1)

    # ---- point feature stack (bf16 matmuls, f32 accumulate + epilogue) ----
    h = x_ref[0].astype(jnp.bfloat16)                       # (tn, Cin)
    for w_ref, s_ref in point:
        y = jnp.dot(h, w_ref[...], preferred_element_type=jnp.float32)
        h = jnp.maximum(y + s_ref[...], 0.0).astype(jnp.bfloat16)
    pf_ref[0] = h                                            # (tn, Cp) bf16

    # ---- cloud feature stack (stays in VMEM) ----
    g = h
    for w_ref, s_ref in cloud:
        y = jnp.dot(g, w_ref[...], preferred_element_type=jnp.float32)
        g = jnp.maximum(y + s_ref[...], 0.0).astype(jnp.bfloat16)

    gf = g.astype(jnp.float32)
    if need_mask:
        # Padded rows must never win the per-batch max.
        row = nt * tn + jax.lax.broadcasted_iota(jnp.int32, (tn, 1), 0)
        gf = jnp.where(row < n_valid, gf, -jnp.inf)
    tile_max = jnp.max(gf, axis=0, keepdims=True)            # (1, Cc)

    @pl.when(nt == 0)
    def _():
        acc_ref[...] = jnp.full(acc_ref.shape, -jnp.inf, dtype=acc_ref.dtype)

    acc_ref[...] = jnp.maximum(acc_ref[...], tile_max)

    @pl.when(nt == n_tiles - 1)
    def _():
        cmax_ref[0] = acc_ref[...]


def _classifier_kernel(*refs, n_mid):
    """Fused classifier stack.

    refs = [point_features, per_batch_bias, w_first_pt,
            (w, shift) * n_mid, w_last_padded, shift_last_padded,   # inputs
            logits_out]                                             # output
    """
    pf_ref, bias_ref, w_pt_ref = refs[0], refs[1], refs[2]
    idx = 3
    mids = [(refs[idx + 2 * i], refs[idx + 2 * i + 1]) for i in range(n_mid)]
    idx += 2 * n_mid
    w_last_ref, s_last_ref, out_ref = refs[idx], refs[idx + 1], refs[idx + 2]

    # First classifier layer: only the point-feature slice of the weight; the one_hot and
    # repeated cloud-max contributions (+ folded BN shift) arrive as a per-batch bias.
    h = pf_ref[0]                                                        # (tn, Cp) bf16
    y = jnp.dot(h, w_pt_ref[...], preferred_element_type=jnp.float32)
    h = jnp.maximum(y + bias_ref[0], 0.0).astype(jnp.bfloat16)

    for w_ref, s_ref in mids:
        y = jnp.dot(h, w_ref[...], preferred_element_type=jnp.float32)
        h = jnp.maximum(y + s_ref[...], 0.0).astype(jnp.bfloat16)

    # Dropout(0.5) is identity in eval mode.
    y = jnp.dot(h, w_last_ref[...], preferred_element_type=jnp.float32)  # padded to 128 lanes
    out_ref[0] = (y + s_last_ref[...]).astype(out_ref.dtype)


# ----------------------------------------------------------------------------
# Deterministic parameter construction (BN folded into weights: w' = w*scale, epilogue "+shift")
# ----------------------------------------------------------------------------
def _fold_conv_bn(key, cin, cout):
    k1, k2, k3, k4, k5, k6 = jax.random.split(key, 6)
    bound = 1.0 / (cin ** 0.5)
    w = jax.random.uniform(k1, (cin, cout), minval=-bound, maxval=bound)   # Conv1d weight (x @ w)
    b = jax.random.uniform(k2, (cout,), minval=-bound, maxval=bound)       # Conv1d bias
    gamma = jax.random.uniform(k3, (cout,), minval=0.5, maxval=1.5)        # BN weight
    beta = jax.random.uniform(k4, (cout,), minval=-0.1, maxval=0.1)        # BN bias
    rmean = 0.1 * jax.random.normal(k5, (cout,))                           # BN running_mean
    rvar = jax.random.uniform(k6, (cout,), minval=0.5, maxval=1.5)         # BN running_var
    scale = gamma / jnp.sqrt(rvar + BN_EPS)
    w_folded = (w * scale[None, :]).astype(jnp.float32)
    shift = (beta - scale * rmean + scale * b).reshape(1, -1).astype(jnp.float32)
    return w_folded, shift


def build_params(key, num_classes, in_channels, point_blocks, cloud_blocks):
    def stack(key, blocks, cin):
        layers, c = [], cin
        for cout, num_blocks, _voxel_res in blocks:      # voxel_res None -> SharedMLP
            for _ in range(num_blocks):
                key, sub = jax.random.split(key)
                w, s = _fold_conv_bn(sub, c, cout)
                layers.append((w.astype(jnp.bfloat16), s))
                c = cout
        return key, layers, c

    key, point_layers, cp = stack(key, point_blocks, in_channels)
    key, cloud_layers, cc = stack(key, cloud_blocks, cp)

    # classifier first layer: Conv1d(nc + cp + cc -> 512) + BN + ReLU, split by input source
    cin_total = num_classes + cp + cc
    key, sub = jax.random.split(key)
    w1, s1 = _fold_conv_bn(sub, cin_total, CLASSIFIER_SPEC[0])
    cls_first = {
        "w_oh": w1[:num_classes, :],                                   # f32 (nc, 512)
        "w_pt": w1[num_classes:num_classes + cp, :].astype(jnp.bfloat16),  # (cp, 512)
        "w_cl": w1[num_classes + cp:, :],                              # f32 (cc, 512)
        "shift": s1,                                                   # f32 (1, 512)
    }

    # middle classifier layers (Dropout entries < 1 are skipped: identity in eval mode)
    mids, c = [], CLASSIFIER_SPEC[0]
    for oc in CLASSIFIER_SPEC[1:-1]:
        if oc < 1:
            continue
        key, sub = jax.random.split(key)
        w, s = _fold_conv_bn(sub, c, int(oc))
        mids.append((w.astype(jnp.bfloat16), s))
        c = int(oc)

    # final plain Conv1d(c -> 2), no BN, no ReLU; pad output channels to 128 lanes
    key, sub = jax.random.split(key)
    k1, k2 = jax.random.split(sub)
    bound = 1.0 / (c ** 0.5)
    n_out = CLASSIFIER_SPEC[-1]
    w_last = jax.random.uniform(k1, (c, n_out), minval=-bound, maxval=bound)
    b_last = jax.random.uniform(k2, (n_out,), minval=-bound, maxval=bound)
    w_pad = jnp.zeros((c, OUT_PAD), jnp.float32).at[:, :n_out].set(w_last)
    s_pad = jnp.zeros((1, OUT_PAD), jnp.float32).at[:, :n_out].set(b_last)

    return {
        "point": point_layers,
        "cloud": cloud_layers,
        "cls_first": cls_first,
        "cls_mid": mids,
        "cls_last": (w_pad.astype(jnp.bfloat16), s_pad),
    }


# ----------------------------------------------------------------------------
# Forward pass (2 pallas_calls + tiny per-batch glue)
# ----------------------------------------------------------------------------
def instance_segmentation_forward(features, one_hot_vectors, params):
    """features: (B, Cin, N) f32 (PyTorch NCW); one_hot_vectors: (B, num_classes). -> (B, 2, N)."""
    B, Cin, N = features.shape
    cp = params["point"][-1][0].shape[1]
    cc = params["cloud"][-1][0].shape[1]

    tn = min(512, _round_up(N, 16))
    Npad = _round_up(N, tn)
    n_tiles = Npad // tn

    x = jnp.transpose(features, (0, 2, 1))                    # (B, N, Cin) channels-last
    if Npad != N:
        x = jnp.pad(x, ((0, 0), (0, Npad - N), (0, 0)))

    # ---------------- kernel A: encoder (point + cloud stacks + per-batch max) ----------------
    enc_inputs = [x]
    enc_specs = [pl.BlockSpec((1, tn, Cin), lambda b, t: (b, t, 0))]
    for w, s in params["point"] + params["cloud"]:
        enc_inputs += [w, s]
        enc_specs += [pl.BlockSpec(w.shape, lambda b, t: (0, 0)),
                      pl.BlockSpec(s.shape, lambda b, t: (0, 0))]

    pf, cmax = pl.pallas_call(
        functools.partial(_encoder_kernel,
                          n_point=len(params["point"]),
                          n_cloud=len(params["cloud"]),
                          n_valid=N, tn=tn, need_mask=(Npad != N)),
        out_shape=(jax.ShapeDtypeStruct((B, Npad, cp), jnp.bfloat16),
                   jax.ShapeDtypeStruct((B, 1, cc), jnp.float32)),
        grid_spec=pltpu.PrefetchScalarGridSpec(
            num_scalar_prefetch=0,
            grid=(B, n_tiles),
            in_specs=enc_specs,
            out_specs=[pl.BlockSpec((1, tn, cp), lambda b, t: (b, t, 0)),
                       pl.BlockSpec((1, 1, cc), lambda b, t: (b, 0, 0))],
            scratch_shapes=[pltpu.VMEM((1, cc), jnp.float32)]),
        compiler_params=pltpu.CompilerParams(
            dimension_semantics=("parallel", "arbitrary"),
            vmem_limit_bytes=VMEM_LIMIT),
    )(*enc_inputs)

    # -------- per-batch bias for the first classifier layer (replaces concat + broadcast) -----
    f = params["cls_first"]
    oh = one_hot_vectors.astype(jnp.float32)                  # (B, nc)
    bias1 = oh @ f["w_oh"] + cmax[:, 0, :] @ f["w_cl"] + f["shift"]   # (B, 512), f32
    C1 = bias1.shape[1]
    bias1 = bias1[:, None, :]                                 # (B, 1, 512)

    # ---------------- kernel B: fused classifier ----------------
    w_last, s_last = params["cls_last"]
    cls_inputs = [pf, bias1, f["w_pt"]]
    cls_specs = [pl.BlockSpec((1, tn, cp), lambda b, t: (b, t, 0)),
                 pl.BlockSpec((1, 1, C1), lambda b, t: (b, 0, 0)),
                 pl.BlockSpec(f["w_pt"].shape, lambda b, t: (0, 0))]
    for w, s in params["cls_mid"]:
        cls_inputs += [w, s]
        cls_specs += [pl.BlockSpec(w.shape, lambda b, t: (0, 0)),
                      pl.BlockSpec(s.shape, lambda b, t: (0, 0))]
    cls_inputs += [w_last, s_last]
    cls_specs += [pl.BlockSpec(w_last.shape, lambda b, t: (0, 0)),
                  pl.BlockSpec(s_last.shape, lambda b, t: (0, 0))]

    logits_pad = pl.pallas_call(
        functools.partial(_classifier_kernel, n_mid=len(params["cls_mid"])),
        out_shape=jax.ShapeDtypeStruct((B, Npad, OUT_PAD), jnp.float32),
        grid_spec=pltpu.PrefetchScalarGridSpec(
            num_scalar_prefetch=0,
            grid=(B, n_tiles),
            in_specs=cls_specs,
            out_specs=pl.BlockSpec((1, tn, OUT_PAD), lambda b, t: (b, t, 0))),
        compiler_params=pltpu.CompilerParams(
            dimension_semantics=("parallel", "parallel"),
            vmem_limit_bytes=VMEM_LIMIT),
    )(*cls_inputs)

    # strip row/lane padding, return PyTorch NCW layout (B, 2, N)
    n_out = CLASSIFIER_SPEC[-1]
    return jnp.transpose(logits_pad[:, :N, :n_out], (0, 2, 1))


# ----------------------------------------------------------------------------
# Pure-JAX reference (same layer decomposition / bf16 rounding) for a sanity check
# ----------------------------------------------------------------------------
def _reference_forward(features, one_hot_vectors, params):
    B, Cin, N = features.shape
    h = jnp.transpose(features, (0, 2, 1)).reshape(B * N, Cin).astype(jnp.bfloat16)
    for w, s in params["point"]:
        h = jnp.maximum(jnp.dot(h, w, preferred_element_type=jnp.float32) + s, 0.0).astype(jnp.bfloat16)
    pf = h
    g = h
    for w, s in params["cloud"]:
        g = jnp.maximum(jnp.dot(g, w, preferred_element_type=jnp.float32) + s, 0.0).astype(jnp.bfloat16)
    cmax = jnp.max(g.astype(jnp.float32).reshape(B, N, -1), axis=1)               # (B, Cc)
    f = params["cls_first"]
    bias1 = one_hot_vectors.astype(jnp.float32) @ f["w_oh"] + cmax @ f["w_cl"] + f["shift"]
    y = jnp.dot(pf, f["w_pt"], preferred_element_type=jnp.float32).reshape(B, N, -1) + bias1[:, None, :]
    h = jnp.maximum(y, 0.0).astype(jnp.bfloat16).reshape(B * N, -1)
    for w, s in params["cls_mid"]:
        h = jnp.maximum(jnp.dot(h, w, preferred_element_type=jnp.float32) + s, 0.0).astype(jnp.bfloat16)
    w_last, s_last = params["cls_last"]
    y = jnp.dot(h, w_last, preferred_element_type=jnp.float32) + s_last
    n_out = CLASSIFIER_SPEC[-1]
    return jnp.transpose(y.reshape(B, N, -1)[:, :, :n_out], (0, 2, 1))


# ----------------------------------------------------------------------------
# Demo
# ----------------------------------------------------------------------------
if __name__ == "__main__":
    key = jax.random.PRNGKey(0)

    B, N = 2, 128
    num_classes = 3
    extra_feature_channels = 1
    in_channels = extra_feature_channels + 3                     # 4

    point_blocks = ((64, 2, None), (128, 1, None))               # -> channels_point = 128
    cloud_blocks = ((256, 1, None), (128, 1, None))              # -> channels_cloud = 128

    key, pkey, fkey, lkey = jax.random.split(key, 4)
    params = build_params(pkey, num_classes, in_channels, point_blocks, cloud_blocks)

    features = jax.random.normal(fkey, (B, in_channels, N), dtype=jnp.float32)
    labels = jax.random.randint(lkey, (B,), 0, num_classes)
    one_hot_vectors = jax.nn.one_hot(labels, num_classes, dtype=jnp.float32)

    fwd = jax.jit(instance_segmentation_forward)
    out = jax.block_until_ready(fwd(features, one_hot_vectors, params))

    assert out.shape == (B, 2, N), out.shape
    assert bool(jnp.all(jnp.isfinite(out)))

    ref = _reference_forward(features, one_hot_vectors, params)
    assert jnp.allclose(out, ref, atol=1e-1, rtol=1e-1), float(jnp.max(jnp.abs(out - ref)))

    print("KERNEL_OK")
</pallas_src>

<mosaic_0001>
module attributes {stable_mosaic.version = 11 : i64} {
  func.func @_encoder_kernel(%arg0: i32, %arg1: i32, %arg2: memref<1x128x4xf32, #tpu.memory_space<vmem>>, %arg3: memref<4x64xbf16, #tpu.memory_space<vmem>>, %arg4: memref<1x64xf32, #tpu.memory_space<vmem>>, %arg5: memref<64x64xbf16, #tpu.memory_space<vmem>>, %arg6: memref<1x64xf32, #tpu.memory_space<vmem>>, %arg7: memref<64x128xbf16, #tpu.memory_space<vmem>>, %arg8: memref<1x128xf32, #tpu.memory_space<vmem>>, %arg9: memref<128x256xbf16, #tpu.memory_space<vmem>>, %arg10: memref<1x256xf32, #tpu.memory_space<vmem>>, %arg11: memref<256x128xbf16, #tpu.memory_space<vmem>>, %arg12: memref<1x128xf32, #tpu.memory_space<vmem>>, %arg13: memref<1x128x128xbf16, #tpu.memory_space<vmem>>, %arg14: memref<1x1x128xf32, #tpu.memory_space<vmem>>, %arg15: memref<1x128xf32, #tpu.memory_space<vmem>>) attributes {dimension_semantics = [#tpu.dimension_semantics<parallel>, #tpu.dimension_semantics<arbitrary>], iteration_bounds = array<i64: 2, 1>, scalar_prefetch = 0 : i64, scratch_operands = 1 : i64, tpu.core_type = #tpu.core_type<tc>, window_params = [{transform_indices = @transform_0, window_bounds = array<i64: 1, 128, 4>}, {pipeline_mode = #tpu.pipeline_mode<synchronous>, transform_indices = @transform_1, window_bounds = array<i64: 4, 64>}, {pipeline_mode = #tpu.pipeline_mode<synchronous>, transform_indices = @transform_2, window_bounds = array<i64: 1, 64>}, {pipeline_mode = #tpu.pipeline_mode<synchronous>, transform_indices = @transform_3, window_bounds = array<i64: 64, 64>}, {pipeline_mode = #tpu.pipeline_mode<synchronous>, transform_indices = @transform_4, window_bounds = array<i64: 1, 64>}, {pipeline_mode = #tpu.pipeline_mode<synchronous>, transform_indices = @transform_5, window_bounds = array<i64: 64, 128>}, {pipeline_mode = #tpu.pipeline_mode<synchronous>, transform_indices = @transform_6, window_bounds = array<i64: 1, 128>}, {pipeline_mode = #tpu.pipeline_mode<synchronous>, transform_indices = @transform_7, window_bounds = array<i64: 128, 256>}, {pipeline_mode = #tpu.pipeline_mode<synchronous>, transform_indices = @transform_8, window_bounds = array<i64: 1, 256>}, {pipeline_mode = #tpu.pipeline_mode<synchronous>, transform_indices = @transform_9, window_bounds = array<i64: 256, 128>}, {pipeline_mode = #tpu.pipeline_mode<synchronous>, transform_indices = @transform_10, window_bounds = array<i64: 1, 128>}, {transform_indices = @transform_11, window_bounds = array<i64: 1, 128, 128>}, {transform_indices = @transform_12, window_bounds = array<i64: 1, 1, 128>}]} {
    %c0 = arith.constant 0 : index
    %c0_0 = arith.constant 0 : index
    %c0_1 = arith.constant 0 : index
    %0 = vector.load %arg2[%c0, %c0_0, %c0_1] : memref<1x128x4xf32, #tpu.memory_space<vmem>>, vector<1x128x4xf32>
    %1 = vector.shape_cast %0 : vector<1x128x4xf32> to vector<128x4xf32>
    %2 = arith.truncf %1 : vector<128x4xf32> to vector<128x4xbf16>
    %c0_2 = arith.constant 0 : index
    %c0_3 = arith.constant 0 : index
    %3 = vector.load %arg3[%c0_2, %c0_3] : memref<4x64xbf16, #tpu.memory_space<vmem>>, vector<4x64xbf16>
    %cst = arith.constant dense<0.000000e+00> : vector<128x64xf32>
    %4 = tpu.matmul %2, %3, %cst {dimension_numbers = #tpu.dot_dimension_numbers<[1], [0], [0], [1], [0, 0, 1, 1], [], []>} : vector<128x4xbf16>, vector<4x64xbf16>, vector<128x64xf32> -> vector<128x64xf32>
    %c0_4 = arith.constant 0 : index
    %c0_5 = arith.constant 0 : index
    %5 = vector.load %arg4[%c0_4, %c0_5] : memref<1x64xf32, #tpu.memory_space<vmem>>, vector<1x64xf32>
    %6 = vector.broadcast %5 : vector<1x64xf32> to vector<128x64xf32>
    %7 = arith.addf %4, %6 : vector<128x64xf32>
    %cst_6 = arith.constant 0.000000e+00 : f32
    %8 = vector.broadcast %cst_6 : f32 to vector<128x64xf32>
    %9 = arith.maximumf %7, %8 : vector<128x64xf32>
    %10 = arith.truncf %9 : vector<128x64xf32> to vector<128x64xbf16>
    %c0_7 = arith.constant 0 : index
    %c0_8 = arith.constant 0 : index
    %11 = vector.load %arg5[%c0_7, %c0_8] : memref<64x64xbf16, #tpu.memory_space<vmem>>, vector<64x64xbf16>
    %cst_9 = arith.constant dense<0.000000e+00> : vector<128x64xf32>
    %12 = tpu.matmul %10, %11, %cst_9 {dimension_numbers = #tpu.dot_dimension_numbers<[1], [0], [0], [1], [0, 0, 1, 1], [], []>} : vector<128x64xbf16>, vector<64x64xbf16>, vector<128x64xf32> -> vector<128x64xf32>
    %c0_10 = arith.constant 0 : index
    %c0_11 = arith.constant 0 : index
    %13 = vector.load %arg6[%c0_10, %c0_11] : memref<1x64xf32, #tpu.memory_space<vmem>>, vector<1x64xf32>
    %14 = vector.broadcast %13 : vector<1x64xf32> to vector<128x64xf32>
    %15 = arith.addf %12, %14 : vector<128x64xf32>
    %cst_12 = arith.constant 0.000000e+00 : f32
    %16 = vector.broadcast %cst_12 : f32 to vector<128x64xf32>
    %17 = arith.maximumf %15, %16 : vector<128x64xf32>
    %18 = arith.truncf %17 : vector<128x64xf32> to vector<128x64xbf16>
    %c0_13 = arith.constant 0 : index
    %c0_14 = arith.constant 0 : index
    %19 = vector.load %arg7[%c0_13, %c0_14] : memref<64x128xbf16, #tpu.memory_space<vmem>>, vector<64x128xbf16>
    %cst_15 = arith.constant dense<0.000000e+00> : vector<128x128xf32>
    %20 = tpu.matmul %18, %19, %cst_15 {dimension_numbers = #tpu.dot_dimension_numbers<[1], [0], [0], [1], [0, 0, 1, 1], [], []>} : vector<128x64xbf16>, vector<64x128xbf16>, vector<128x128xf32> -> vector<128x128xf32>
    %c0_16 = arith.constant 0 : index
    %c0_17 = arith.constant 0 : index
    %21 = vector.load %arg8[%c0_16, %c0_17] : memref<1x128xf32, #tpu.memory_space<vmem>>, vector<1x128xf32>
    %22 = vector.broadcast %21 : vector<1x128xf32> to vector<128x128xf32>
    %23 = arith.addf %20, %22 : vector<128x128xf32>
    %cst_18 = arith.constant 0.000000e+00 : f32
    %24 = vector.broadcast %cst_18 : f32 to vector<128x128xf32>
    %25 = arith.maximumf %23, %24 : vector<128x128xf32>
    %26 = arith.truncf %25 : vector<128x128xf32> to vector<128x128xbf16>
    %c0_19 = arith.constant 0 : index
    %c0_20 = arith.constant 0 : index
    %c0_21 = arith.constant 0 : index
    %27 = vector.load %arg13[%c0_19, %c0_20, %c0_21] : memref<1x128x128xbf16, #tpu.memory_space<vmem>>, vector<1x128x128xbf16>
    %28 = vector.shape_cast %27 : vector<1x128x128xbf16> to vector<128x128xbf16>
    %29 = vector.shape_cast %26 : vector<128x128xbf16> to vector<1x128x128xbf16>
    tpu.vector_store %arg13[%c0_19, %c0_20, %c0_21], %29 {strides = array<i32>} : memref<1x128x128xbf16, #tpu.memory_space<vmem>>, vector<1x128x128xbf16>,
    %c0_22 = arith.constant 0 : index
    %c0_23 = arith.constant 0 : index
    %30 = vector.load %arg9[%c0_22, %c0_23] : memref<128x256xbf16, #tpu.memory_space<vmem>>, vector<128x256xbf16>
    %cst_24 = arith.constant dense<0.000000e+00> : vector<128x256xf32>
    %31 = tpu.matmul %26, %30, %cst_24 {dimension_numbers = #tpu.dot_dimension_numbers<[1], [0], [0], [1], [0, 0, 1, 1], [], []>} : vector<128x128xbf16>, vector<128x256xbf16>, vector<128x256xf32> -> vector<128x256xf32>
    %c0_25 = arith.constant 0 : index
    %c0_26 = arith.constant 0 : index
    %32 = vector.load %arg10[%c0_25, %c0_26] : memref<1x256xf32, #tpu.memory_space<vmem>>, vector<1x256xf32>
    %33 = vector.broadcast %32 : vector<1x256xf32> to vector<128x256xf32>
    %34 = arith.addf %31, %33 : vector<128x256xf32>
    %cst_27 = arith.constant 0.000000e+00 : f32
    %35 = vector.broadcast %cst_27 : f32 to vector<128x256xf32>
    %36 = arith.maximumf %34, %35 : vector<128x256xf32>
    %37 = arith.truncf %36 : vector<128x256xf32> to vector<128x256xbf16>
    %c0_28 = arith.constant 0 : index
    %c0_29 = arith.constant 0 : index
    %38 = vector.load %arg11[%c0_28, %c0_29] : memref<256x128xbf16, #tpu.memory_space<vmem>>, vector<256x128xbf16>
    %cst_30 = arith.constant dense<0.000000e+00> : vector<128x128xf32>
    %39 = tpu.matmul %37, %38, %cst_30 {dimension_numbers = #tpu.dot_dimension_numbers<[1], [0], [0], [1], [0, 0, 1, 1], [], []>} : vector<128x256xbf16>, vector<256x128xbf16>, vector<128x128xf32> -> vector<128x128xf32>
    %c0_31 = arith.constant 0 : index
    %c0_32 = arith.constant 0 : index
    %40 = vector.load %arg12[%c0_31, %c0_32] : memref<1x128xf32, #tpu.memory_space<vmem>>, vector<1x128xf32>
    %41 = vector.broadcast %40 : vector<1x128xf32> to vector<128x128xf32>
    %42 = arith.addf %39, %41 : vector<128x128xf32>
    %cst_33 = arith.constant 0.000000e+00 : f32
    %43 = vector.broadcast %cst_33 : f32 to vector<128x128xf32>
    %44 = arith.maximumf %42, %43 : vector<128x128xf32>
    %45 = arith.truncf %44 : vector<128x128xf32> to vector<128x128xbf16>
    %46 = arith.extf %45 : vector<128x128xbf16> to vector<128x128xf32>
    %cst_34 = arith.constant dense<0xFF800000> : vector<128xf32>
    %47 = vector.multi_reduction <maximumf>, %46, %cst_34 [0] : vector<128x128xf32> to vector<128xf32>
    %48 = vector.shape_cast %47 : vector<128xf32> to vector<1x128xf32>
    %c0_i32 = arith.constant 0 : i32
    %49 = arith.cmpi eq, %arg1, %c0_i32 : i32
    %50 = arith.extui %49 : i1 to i32
    %c0_i32_35 = arith.constant 0 : i32
    %51 = arith.cmpi ne, %50, %c0_i32_35 : i32
    scf.if %51 {
      %cst_42 = arith.constant 0xFF800000 : f32
      %58 = vector.broadcast %cst_42 : f32 to vector<1x128xf32>
      %c0_43 = arith.constant 0 : index
      %c0_44 = arith.constant 0 : index
      %59 = vector.load %arg15[%c0_43, %c0_44] : memref<1x128xf32, #tpu.memory_space<vmem>>, vector<1x128xf32>
      tpu.vector_store %arg15[%c0_43, %c0_44], %58 {strides = array<i32>} : memref<1x128xf32, #tpu.memory_space<vmem>>, vector<1x128xf32>,
    } else {
    }
    %c0_36 = arith.constant 0 : index
    %c0_37 = arith.constant 0 : index
    %52 = vector.load %arg15[%c0_36, %c0_37] : memref<1x128xf32, #tpu.memory_space<vmem>>, vector<1x128xf32>
    %53 = arith.maximumf %52, %48 : vector<1x128xf32>
    %c0_38 = arith.constant 0 : index
    %c0_39 = arith.constant 0 : index
    %54 = vector.load %arg15[%c0_38, %c0_39] : memref<1x128xf32, #tpu.memory_space<vmem>>, vector<1x128xf32>
    tpu.vector_store %arg15[%c0_38, %c0_39], %53 {strides = array<i32>} : memref<1x128xf32, #tpu.memory_space<vmem>>, vector<1x128xf32>,
    %c0_i32_40 = arith.constant 0 : i32
    %55 = arith.cmpi eq, %arg1, %c0_i32_40 : i32
    %56 = arith.extui %55 : i1 to i32
    %c0_i32_41 = arith.constant 0 : i32
    %57 = arith.cmpi ne, %56, %c0_i32_41 : i32
    scf.if %57 {
      %c0_42 = arith.constant 0 : index
      %c0_43 = arith.constant 0 : index
      %58 = vector.load %arg15[%c0_42, %c0_43] : memref<1x128xf32, #tpu.memory_space<vmem>>, vector<1x128xf32>
      %c0_44 = arith.constant 0 : index
      %c0_45 = arith.constant 0 : index
      %c0_46 = arith.constant 0 : index
      %59 = vector.load %arg14[%c0_44, %c0_45, %c0_46] : memref<1x1x128xf32, #tpu.memory_space<vmem>>, vector<1x1x128xf32>
      %60 = vector.shape_cast %59 : vector<1x1x128xf32> to vector<1x128xf32>
      %61 = vector.shape_cast %58 : vector<1x128xf32> to vector<1x1x128xf32>
      tpu.vector_store %arg14[%c0_44, %c0_45, %c0_46], %61 {strides = array<i32>} : memref<1x1x128xf32, #tpu.memory_space<vmem>>, vector<1x1x128xf32>,
    } else {
    }
    return
  }
  func.func @transform_0(%arg0: i32, %arg1: i32) -> (i32, i32, i32) {
    %c0_i32 = arith.constant 0 : i32
    %c0_i32_0 = arith.constant 0 : i32
    return %arg0, %arg1, %c0_i32 : i32, i32, i32
  }
  func.func @transform_1(%arg0: i32, %arg1: i32) -> (i32, i32) {
    %c0_i32 = arith.constant 0 : i32
    %c0_i32_0 = arith.constant 0 : i32
    %c0_i32_1 = arith.constant 0 : i32
    return %c0_i32, %c0_i32_0 : i32, i32
  }
  func.func @transform_2(%arg0: i32, %arg1: i32) -> (i32, i32) {
    %c0_i32 = arith.constant 0 : i32
    %c0_i32_0 = arith.constant 0 : i32
    %c0_i32_1 = arith.constant 0 : i32
    return %c0_i32, %c0_i32_0 : i32, i32
  }
  func.func @transform_3(%arg0: i32, %arg1: i32) -> (i32, i32) {
    %c0_i32 = arith.constant 0 : i32
    %c0_i32_0 = arith.constant 0 : i32
    %c0_i32_1 = arith.constant 0 : i32
    return %c0_i32, %c0_i32_0 : i32, i32
  }
  func.func @transform_4(%arg0: i32, %arg1: i32) -> (i32, i32) {
    %c0_i32 = arith.constant 0 : i32
    %c0_i32_0 = arith.constant 0 : i32
    %c0_i32_1 = arith.constant 0 : i32
    return %c0_i32, %c0_i32_0 : i32, i32
  }
  func.func @transform_5(%arg0: i32, %arg1: i32) -> (i32, i32) {
    %c0_i32 = arith.constant 0 : i32
    %c0_i32_0 = arith.constant 0 : i32
    %c0_i32_1 = arith.constant 0 : i32
    return %c0_i32, %c0_i32_0 : i32, i32
  }
  func.func @transform_6(%arg0: i32, %arg1: i32) -> (i32, i32) {
    %c0_i32 = arith.constant 0 : i32
    %c0_i32_0 = arith.constant 0 : i32
    %c0_i32_1 = arith.constant 0 : i32
    return %c0_i32, %c0_i32_0 : i32, i32
  }
  func.func @transform_7(%arg0: i32, %arg1: i32) -> (i32, i32) {
    %c0_i32 = arith.constant 0 : i32
    %c0_i32_0 = arith.constant 0 : i32
    %c0_i32_1 = arith.constant 0 : i32
    return %c0_i32, %c0_i32_0 : i32, i32
  }
  func.func @transform_8(%arg0: i32, %arg1: i32) -> (i32, i32) {
    %c0_i32 = arith.constant 0 : i32
    %c0_i32_0 = arith.constant 0 : i32
    %c0_i32_1 = arith.constant 0 : i32
    return %c0_i32, %c0_i32_0 : i32, i32
  }
  func.func @transform_9(%arg0: i32, %arg1: i32) -> (i32, i32) {
    %c0_i32 = arith.constant 0 : i32
    %c0_i32_0 = arith.constant 0 : i32
    %c0_i32_1 = arith.constant 0 : i32
    return %c0_i32, %c0_i32_0 : i32, i32
  }
  func.func @transform_10(%arg0: i32, %arg1: i32) -> (i32, i32) {
    %c0_i32 = arith.constant 0 : i32
    %c0_i32_0 = arith.constant 0 : i32
    %c0_i32_1 = arith.constant 0 : i32
    return %c0_i32, %c0_i32_0 : i32, i32
  }
  func.func @transform_11(%arg0: i32, %arg1: i32) -> (i32, i32, i32) {
    %c0_i32 = arith.constant 0 : i32
    %c0_i32_0 = arith.constant 0 : i32
    return %arg0, %arg1, %c0_i32 : i32, i32, i32
  }
  func.func @transform_12(%arg0: i32, %arg1: i32) -> (i32, i32, i32) {
    %c0_i32 = arith.constant 0 : i32
    %c0_i32_0 = arith.constant 0 : i32
    %c0_i32_1 = arith.constant 0 : i32
    return %arg0, %c0_i32, %c0_i32_0 : i32, i32, i32
  }
}

module attributes {stable_mosaic.version = 11 : i64} {
  func.func @_classifier_kernel(%arg0: i32, %arg1: i32, %arg2: memref<1x128x128xbf16, #tpu.memory_space<vmem>>, %arg3: memref<1x1x512xf32, #tpu.memory_space<vmem>>, %arg4: memref<128x512xbf16, #tpu.memory_space<vmem>>, %arg5: memref<512x256xbf16, #tpu.memory_space<vmem>>, %arg6: memref<1x256xf32, #tpu.memory_space<vmem>>, %arg7: memref<256x128xbf16, #tpu.memory_space<vmem>>, %arg8: memref<1x128xf32, #tpu.memory_space<vmem>>, %arg9: memref<128x128xbf16, #tpu.memory_space<vmem>>, %arg10: memref<1x128xf32, #tpu.memory_space<vmem>>, %arg11: memref<128x128xbf16, #tpu.memory_space<vmem>>, %arg12: memref<1x128xf32, #tpu.memory_space<vmem>>, %arg13: memref<1x128x128xf32, #tpu.memory_space<vmem>>) attributes {dimension_semantics = [#tpu.dimension_semantics<parallel>, #tpu.dimension_semantics<parallel>], iteration_bounds = array<i64: 2, 1>, scalar_prefetch = 0 : i64, scratch_operands = 0 : i64, tpu.core_type = #tpu.core_type<tc>, window_params = [{transform_indices = @transform_0, window_bounds = array<i64: 1, 128, 128>}, {transform_indices = @transform_1, window_bounds = array<i64: 1, 1, 512>}, {pipeline_mode = #tpu.pipeline_mode<synchronous>, transform_indices = @transform_2, window_bounds = array<i64: 128, 512>}, {pipeline_mode = #tpu.pipeline_mode<synchronous>, transform_indices = @transform_3, window_bounds = array<i64: 512, 256>}, {pipeline_mode = #tpu.pipeline_mode<synchronous>, transform_indices = @transform_4, window_bounds = array<i64: 1, 256>}, {pipeline_mode = #tpu.pipeline_mode<synchronous>, transform_indices = @transform_5, window_bounds = array<i64: 256, 128>}, {pipeline_mode = #tpu.pipeline_mode<synchronous>, transform_indices = @transform_6, window_bounds = array<i64: 1, 128>}, {pipeline_mode = #tpu.pipeline_mode<synchronous>, transform_indices = @transform_7, window_bounds = array<i64: 128, 128>}, {pipeline_mode = #tpu.pipeline_mode<synchronous>, transform_indices = @transform_8, window_bounds = array<i64: 1, 128>}, {pipeline_mode = #tpu.pipeline_mode<synchronous>, transform_indices = @transform_9, window_bounds = array<i64: 128, 128>}, {pipeline_mode = #tpu.pipeline_mode<synchronous>, transform_indices = @transform_10, window_bounds = array<i64: 1, 128>}, {transform_indices = @transform_11, window_bounds = array<i64: 1, 128, 128>}]} {
    %c0 = arith.constant 0 : index
    %c0_0 = arith.constant 0 : index
    %c0_1 = arith.constant 0 : index
    %0 = vector.load %arg2[%c0, %c0_0, %c0_1] : memref<1x128x128xbf16, #tpu.memory_space<vmem>>, vector<1x128x128xbf16>
    %1 = vector.shape_cast %0 : vector<1x128x128xbf16> to vector<128x128xbf16>
    %c0_2 = arith.constant 0 : index
    %c0_3 = arith.constant 0 : index
    %2 = vector.load %arg4[%c0_2, %c0_3] : memref<128x512xbf16, #tpu.memory_space<vmem>>, vector<128x512xbf16>
    %cst = arith.constant dense<0.000000e+00> : vector<128x512xf32>
    %3 = tpu.matmul %1, %2, %cst {dimension_numbers = #tpu.dot_dimension_numbers<[1], [0], [0], [1], [0, 0, 1, 1], [], []>} : vector<128x128xbf16>, vector<128x512xbf16>, vector<128x512xf32> -> vector<128x512xf32>
    %c0_4 = arith.constant 0 : index
    %c0_5 = arith.constant 0 : index
    %c0_6 = arith.constant 0 : index
    %4 = vector.load %arg3[%c0_4, %c0_5, %c0_6] : memref<1x1x512xf32, #tpu.memory_space<vmem>>, vector<1x1x512xf32>
    %5 = vector.shape_cast %4 : vector<1x1x512xf32> to vector<1x512xf32>
    %6 = vector.broadcast %5 : vector<1x512xf32> to vector<128x512xf32>
    %7 = arith.addf %3, %6 : vector<128x512xf32>
    %cst_7 = arith.constant 0.000000e+00 : f32
    %8 = vector.broadcast %cst_7 : f32 to vector<128x512xf32>
    %9 = arith.maximumf %7, %8 : vector<128x512xf32>
    %10 = arith.truncf %9 : vector<128x512xf32> to vector<128x512xbf16>
    %c0_8 = arith.constant 0 : index
    %c0_9 = arith.constant 0 : index
    %11 = vector.load %arg5[%c0_8, %c0_9] : memref<512x256xbf16, #tpu.memory_space<vmem>>, vector<512x256xbf16>
    %cst_10 = arith.constant dense<0.000000e+00> : vector<128x256xf32>
    %12 = tpu.matmul %10, %11, %cst_10 {dimension_numbers = #tpu.dot_dimension_numbers<[1], [0], [0], [1], [0, 0, 1, 1], [], []>} : vector<128x512xbf16>, vector<512x256xbf16>, vector<128x256xf32> -> vector<128x256xf32>
    %c0_11 = arith.constant 0 : index
    %c0_12 = arith.constant 0 : index
    %13 = vector.load %arg6[%c0_11, %c0_12] : memref<1x256xf32, #tpu.memory_space<vmem>>, vector<1x256xf32>
    %14 = vector.broadcast %13 : vector<1x256xf32> to vector<128x256xf32>
    %15 = arith.addf %12, %14 : vector<128x256xf32>
    %cst_13 = arith.constant 0.000000e+00 : f32
    %16 = vector.broadcast %cst_13 : f32 to vector<128x256xf32>
    %17 = arith.maximumf %15, %16 : vector<128x256xf32>
    %18 = arith.truncf %17 : vector<128x256xf32> to vector<128x256xbf16>
    %c0_14 = arith.constant 0 : index
    %c0_15 = arith.constant 0 : index
    %19 = vector.load %arg7[%c0_14, %c0_15] : memref<256x128xbf16, #tpu.memory_space<vmem>>, vector<256x128xbf16>
    %cst_16 = arith.constant dense<0.000000e+00> : vector<128x128xf32>
    %20 = tpu.matmul %18, %19, %cst_16 {dimension_numbers = #tpu.dot_dimension_numbers<[1], [0], [0], [1], [0, 0, 1, 1], [], []>} : vector<128x256xbf16>, vector<256x128xbf16>, vector<128x128xf32> -> vector<128x128xf32>
    %c0_17 = arith.constant 0 : index
    %c0_18 = arith.constant 0 : index
    %21 = vector.load %arg8[%c0_17, %c0_18] : memref<1x128xf32, #tpu.memory_space<vmem>>, vector<1x128xf32>
    %22 = vector.broadcast %21 : vector<1x128xf32> to vector<128x128xf32>
    %23 = arith.addf %20, %22 : vector<128x128xf32>
    %cst_19 = arith.constant 0.000000e+00 : f32
    %24 = vector.broadcast %cst_19 : f32 to vector<128x128xf32>
    %25 = arith.maximumf %23, %24 : vector<128x128xf32>
    %26 = arith.truncf %25 : vector<128x128xf32> to vector<128x128xbf16>
    %c0_20 = arith.constant 0 : index
    %c0_21 = arith.constant 0 : index
    %27 = vector.load %arg9[%c0_20, %c0_21] : memref<128x128xbf16, #tpu.memory_space<vmem>>, vector<128x128xbf16>
    %cst_22 = arith.constant dense<0.000000e+00> : vector<128x128xf32>
    %28 = tpu.matmul %26, %27, %cst_22 {dimension_numbers = #tpu.dot_dimension_numbers<[1], [0], [0], [1], [0, 0, 1, 1], [], []>} : vector<128x128xbf16>, vector<128x128xbf16>, vector<128x128xf32> -> vector<128x128xf32>
    %c0_23 = arith.constant 0 : index
    %c0_24 = arith.constant 0 : index
    %29 = vector.load %arg10[%c0_23, %c0_24] : memref<1x128xf32, #tpu.memory_space<vmem>>, vector<1x128xf32>
    %30 = vector.broadcast %29 : vector<1x128xf32> to vector<128x128xf32>
    %31 = arith.addf %28, %30 : vector<128x128xf32>
    %cst_25 = arith.constant 0.000000e+00 : f32
    %32 = vector.broadcast %cst_25 : f32 to vector<128x128xf32>
    %33 = arith.maximumf %31, %32 : vector<128x128xf32>
    %34 = arith.truncf %33 : vector<128x128xf32> to vector<128x128xbf16>
    %c0_26 = arith.constant 0 : index
    %c0_27 = arith.constant 0 : index
    %35 = vector.load %arg11[%c0_26, %c0_27] : memref<128x128xbf16, #tpu.memory_space<vmem>>, vector<128x128xbf16>
    %cst_28 = arith.constant dense<0.000000e+00> : vector<128x128xf32>
    %36 = tpu.matmul %34, %35, %cst_28 {dimension_numbers = #tpu.dot_dimension_numbers<[1], [0], [0], [1], [0, 0, 1, 1], [], []>} : vector<128x128xbf16>, vector<128x128xbf16>, vector<128x128xf32> -> vector<128x128xf32>
    %c0_29 = arith.constant 0 : index
    %c0_30 = arith.constant 0 : index
    %37 = vector.load %arg12[%c0_29, %c0_30] : memref<1x128xf32, #tpu.memory_space<vmem>>, vector<1x128xf32>
    %38 = vector.broadcast %37 : vector<1x128xf32> to vector<128x128xf32>
    %39 = arith.addf %36, %38 : vector<128x128xf32>
    %c0_31 = arith.constant 0 : index
    %c0_32 = arith.constant 0 : index
    %c0_33 = arith.constant 0 : index
    %40 = vector.load %arg13[%c0_31, %c0_32, %c0_33] : memref<1x128x128xf32, #tpu.memory_space<vmem>>, vector<1x128x128xf32>
    %41 = vector.shape_cast %40 : vector<1x128x128xf32> to vector<128x128xf32>
    %42 = vector.shape_cast %39 : vector<128x128xf32> to vector<1x128x128xf32>
    tpu.vector_store %arg13[%c0_31, %c0_32, %c0_33], %42 {strides = array<i32>} : memref<1x128x128xf32, #tpu.memory_space<vmem>>, vector<1x128x128xf32>,
    return
  }
  func.func @transform_0(%arg0: i32, %arg1: i32) -> (i32, i32, i32) {
    %c0_i32 = arith.constant 0 : i32
    %c0_i32_0 = arith.constant 0 : i32
    return %arg0, %arg1, %c0_i32 : i32, i32, i32
  }
  func.func @transform_1(%arg0: i32, %arg1: i32) -> (i32, i32, i32) {
    %c0_i32 = arith.constant 0 : i32
    %c0_i32_0 = arith.constant 0 : i32
    %c0_i32_1 = arith.constant 0 : i32
    return %arg0, %c0_i32, %c0_i32_0 : i32, i32, i32
  }
  func.func @transform_2(%arg0: i32, %arg1: i32) -> (i32, i32) {
    %c0_i32 = arith.constant 0 : i32
    %c0_i32_0 = arith.constant 0 : i32
    %c0_i32_1 = arith.constant 0 : i32
    return %c0_i32, %c0_i32_0 : i32, i32
  }
  func.func @transform_3(%arg0: i32, %arg1: i32) -> (i32, i32) {
    %c0_i32 = arith.constant 0 : i32
    %c0_i32_0 = arith.constant 0 : i32
    %c0_i32_1 = arith.constant 0 : i32
    return %c0_i32, %c0_i32_0 : i32, i32
  }
  func.func @transform_4(%arg0: i32, %arg1: i32) -> (i32, i32) {
    %c0_i32 = arith.constant 0 : i32
    %c0_i32_0 = arith.constant 0 : i32
    %c0_i32_1 = arith.constant 0 : i32
    return %c0_i32, %c0_i32_0 : i32, i32
  }
  func.func @transform_5(%arg0: i32, %arg1: i32) -> (i32, i32) {
    %c0_i32 = arith.constant 0 : i32
    %c0_i32_0 = arith.constant 0 : i32
    %c0_i32_1 = arith.constant 0 : i32
    return %c0_i32, %c0_i32_0 : i32, i32
  }
  func.func @transform_6(%arg0: i32, %arg1: i32) -> (i32, i32) {
    %c0_i32 = arith.constant 0 : i32
    %c0_i32_0 = arith.constant 0 : i32
    %c0_i32_1 = arith.constant 0 : i32
    return %c0_i32, %c0_i32_0 : i32, i32
  }
  func.func @transform_7(%arg0: i32, %arg1: i32) -> (i32, i32) {
    %c0_i32 = arith.constant 0 : i32
    %c0_i32_0 = arith.constant 0 : i32
    %c0_i32_1 = arith.constant 0 : i32
    return %c0_i32, %c0_i32_0 : i32, i32
  }
  func.func @transform_8(%arg0: i32, %arg1: i32) -> (i32, i32) {
    %c0_i32 = arith.constant 0 : i32
    %c0_i32_0 = arith.constant 0 : i32
    %c0_i32_1 = arith.constant 0 : i32
    return %c0_i32, %c0_i32_0 : i32, i32
  }
  func.func @transform_9(%arg0: i32, %arg1: i32) -> (i32, i32) {
    %c0_i32 = arith.constant 0 : i32
    %c0_i32_0 = arith.constant 0 : i32
    %c0_i32_1 = arith.constant 0 : i32
    return %c0_i32, %c0_i32_0 : i32, i32
  }
  func.func @transform_10(%arg0: i32, %arg1: i32) -> (i32, i32) {
    %c0_i32 = arith.constant 0 : i32
    %c0_i32_0 = arith.constant 0 : i32
    %c0_i32_1 = arith.constant 0 : i32
    return %c0_i32, %c0_i32_0 : i32, i32
  }
  func.func @transform_11(%arg0: i32, %arg1: i32) -> (i32, i32, i32) {
    %c0_i32 = arith.constant 0 : i32
    %c0_i32_0 = arith.constant 0 : i32
    return %arg0, %arg1, %c0_i32 : i32, i32, i32
  }
}

</mosaic_0001>

<llo_original>
// kernel: instance_segmentation_forward.2
$region0: #{instance_segmentation_forward.2}
  #allocation0 [shape = 'u32[]', space=smem, size = 0x4, offset = 0x4, fixed_abs, tag = 'smem constant byte address 0x4 - core index']
  #allocation1 [shape = 'u32[144,128]{1,0:T(1,128)}', space=vmem, size = 0x12000, scoped, tag = 'internal scratch']
  #allocation2 [shape = 'f32[1,128]{1,0:T(1,128)}', space=vmem, size = 0x200, scoped, tag = 'scratch operand']
  %s0 = inlined_call_operand.vmem [shape: f32[2,128,4], index: 0, kind: input, shape index: {}]
  %s1 = inlined_call_operand.vmem [shape: bf16[4,64], index: 1, kind: input, shape index: {}]
  %s2 = inlined_call_operand.vmem [shape: f32[1,64], index: 2, kind: input, shape index: {}]
  %s3 = inlined_call_operand.vmem [shape: bf16[64,64], index: 3, kind: input, shape index: {}]
  %s4 = inlined_call_operand.vmem [shape: f32[1,64], index: 4, kind: input, shape index: {}]
  %s5 = inlined_call_operand.vmem [shape: bf16[64,128], index: 5, kind: input, shape index: {}]
  %s6 = inlined_call_operand.vmem [shape: f32[1,128], index: 6, kind: input, shape index: {}]
  %s7 = inlined_call_operand.vmem [shape: bf16[128,256], index: 7, kind: input, shape index: {}]
  %s8 = inlined_call_operand.hbm [shape: f32[1,256], index: 8, kind: input, shape index: {}]
  %s9 = inlined_call_operand.vmem [shape: bf16[256,128], index: 9, kind: input, shape index: {}]
  %s10 = inlined_call_operand.hbm [shape: f32[1,128], index: 10, kind: input, shape index: {}]
  %s11 = inlined_call_operand.vmem [shape: bf16[2,128,128], index: 11, kind: output, shape index: {0}]
  %s12 = inlined_call_operand.vmem [shape: f32[2,1,128], index: 12, kind: output, shape index: {1}]
  %13 = xla_tuple %s11, %s12
  %s14 = sld [smem:[#allocation0]]
  $region101: #{instance_segmentation_forward.2} parent=0
    _
  %s16 = ssub.s32 1, %s14
  %s17 = scalar_select 0, %s16, %s14
  $region1: #{instance_segmentation_forward.2} parent=0
    #allocation3 [shape = 'u8[1024]{0}', space=vmem, size = 0x400, scoped, tag = 'input window, operand 8, single buffered']
    #allocation4 [shape = 's32[2]{0}', space=sflag, size = 0x8, scoped, tag = 'scoped memory for instance_segmentation_forward.2']
    #allocation5 [shape = 'u8[512]{0}', space=vmem, size = 0x400, scoped, tag = 'input window, operand 10, single buffered']
    #allocation6 [shape = 's32[1]{0}', space=sflag, size = 0x4, scoped, tag = 'scoped memory for instance_segmentation_forward.2']
    %18 = vsyncpa [#allocation4], 0
    %19 = vsyncpa [#allocation6], 0
    loop: start=0, step=1, limit=4
    $region2: #{instance_segmentation_forward.2} parent=1 // loop_pre_header
      _
    $region3: #{instance_segmentation_forward.2} parent=1 // loop_header
      %s21 = sphi 0, %s25
      %p22 = scmp.ge.s32.totalorder %s21, 4
      %s28 = sphi 0, %s40
      %s29 = sphi 0, %s36
      %s30 = sphi 0, %s28
      %s31 = sphi 0, %s29
      %s32 = sphi 0, %s30
      %s33 = sphi 0, %s31
      %s45 = sphi 0, %s47
      %s48 = sphi 0, %s45
      %s49 = sphi 0, %s48
      %s65 = sphi 0, %s49
      %s69 = sphi 0, %s69
      %s71 = sphi 0, %s69
      %s72 = sphi 0, %s71
      %s86 = sphi 0, %s72
      %s90 = sphi 0, %s90
      %s92 = sphi 0, %s90
      %s93 = sphi 0, %s92
      %s107 = sphi 0, %s93
      %s111 = sphi 0, %s111
      %s113 = sphi 0, %s111
      %s114 = sphi 0, %s113
      %s128 = sphi 0, %s114
      %s132 = sphi 0, %s132
      %s134 = sphi 0, %s132
      %s135 = sphi 0, %s134
      %s149 = sphi 0, %s135
      %s153 = sphi 0, %s153
      %s155 = sphi 0, %s153
      %s156 = sphi 0, %s155
      %s170 = sphi 0, %s156
      %s174 = sphi 0, %s174
      %s176 = sphi 0, %s174
      %s177 = sphi 0, %s176
      %s191 = sphi 0, %s177
      %s195 = sphi 0, %s195
      %s197 = sphi 0, %s195
      %s198 = sphi 0, %s197
      %s212 = sphi 0, %s198
      %s216 = sphi 0, %s216
      %s218 = sphi 0, %s216
      %s219 = sphi 0, %s218
      %s233 = sphi 0, %s219
      %s237 = sphi 0, %s237
      %s239 = sphi 0, %s237
      %s240 = sphi 0, %s239
      %s254 = sphi 0, %s240
      %s258 = sphi 0, %s258
      %s260 = sphi 0, %s258
      %s261 = sphi 0, %s260
      %s275 = sphi 0, %s261
      %s283 = sphi 0, %s285
      %s286 = sphi 0, %s283
      %s287 = sphi 0, %s286
      %s303 = sphi 0, %s287
      %s309 = sphi 0, %s311
      %s312 = sphi 0, %s309
      %s313 = sphi 0, %s312
      %s329 = sphi 0, %s313
    $region4: #{instance_segmentation_forward.2} parent=1 // loop_header_branch
      %24 = sbr.rel (%p22) target = $region8
    $region5: #{instance_segmentation_forward.2} parent=1 // loop_body
      %s26 = ssub.s32 %s21, 1
      %s27 = ssub.s32 %s21, 2
      %s34 = sadd.s32 1, %s29
      %p35 = scmp.ge.s32.totalorder %s34, 1
      %s36 = scalar_select %p35, 0, %s34
      %s37 = sadd.s32 1, %s28
      %s38 = scalar_select %p35, %s37, %s28
      %p39 = scmp.ge.s32.totalorder %s38, 2
      %s40 = scalar_select %p39, 0, %s38
      %s41 = ssub.s32 %s28, %s40
      %s42 = ssub.s32 %s29, %s36
      %s43 = sor.u32 %s41, %s42
      %p44 = scmp.eq.s32.totalorder %s43, 0
      %s46 = sadd.s32 %s45, 1
      %s47 = scalar_select %p44, %s45, %s46
      %p50 = pneg %p44
      %p51 = scmp.eq.s32.totalorder %s21, 1
      %p52 = por %p50, %p51
      %p53 = scmp.ne.s32.totalorder %s45, %s48
      %p54 = scmp.eq.s32.totalorder %s21, 0
      %p55 = por %p53, %p54
      %p56 = scmp.ne.s32.totalorder %s45, %s48
      %p57 = scmp.eq.s32.totalorder %s26, 1
      %p58 = por %p56, %p57
      %p59 = scmp.ne.s32.totalorder %s48, %s49
      %p60 = scmp.eq.s32.totalorder %s26, 0
      %p61 = por %p59, %p60
      %p62 = scmp.ne.s32.totalorder %s48, %s49
      %p63 = scmp.eq.s32.totalorder %s27, 1
      %p64 = por %p62, %p63
      %p66 = scmp.ne.s32.totalorder %s49, %s65
      %p67 = scmp.eq.s32.totalorder %s27, 0
      %p68 = por %p66, %p67
      %s70 = sadd.s32 %s69, 1
      %p73 = scmp.eq.s32.totalorder %s21, 1
      %p74 = scmp.ne.s32.totalorder %s69, %s71
      %p75 = scmp.eq.s32.totalorder %s21, 0
      %p76 = por %p74, %p75
      %p77 = scmp.ne.s32.totalorder %s69, %s71
      %p78 = scmp.eq.s32.totalorder %s26, 1
      %p79 = por %p77, %p78
      %p80 = scmp.ne.s32.totalorder %s71, %s72
      %p81 = scmp.eq.s32.totalorder %s26, 0
      %p82 = por %p80, %p81
      %p83 = scmp.ne.s32.totalorder %s71, %s72
      %p84 = scmp.eq.s32.totalorder %s27, 1
      %p85 = por %p83, %p84
      %p87 = scmp.ne.s32.totalorder %s72, %s86
      %p88 = scmp.eq.s32.totalorder %s27, 0
      %p89 = por %p87, %p88
      %s91 = sadd.s32 %s90, 1
      %p94 = scmp.eq.s32.totalorder %s21, 1
      %p95 = scmp.ne.s32.totalorder %s90, %s92
      %p96 = scmp.eq.s32.totalorder %s21, 0
      %p97 = por %p95, %p96
      %p98 = scmp.ne.s32.totalorder %s90, %s92
      %p99 = scmp.eq.s32.totalorder %s26, 1
      %p100 = por %p98, %p99
      %p101 = scmp.ne.s32.totalorder %s92, %s93
      %p102 = scmp.eq.s32.totalorder %s26, 0
      %p103 = por %p101, %p102
      %p104 = scmp.ne.s32.totalorder %s92, %s93
      %p105 = scmp.eq.s32.totalorder %s27, 1
      %p106 = por %p104, %p105
      %p108 = scmp.ne.s32.totalorder %s93, %s107
      %p109 = scmp.eq.s32.totalorder %s27, 0
      %p110 = por %p108, %p109
      %s112 = sadd.s32 %s111, 1
      %p115 = scmp.eq.s32.totalorder %s21, 1
      %p116 = scmp.ne.s32.totalorder %s111, %s113
      %p117 = scmp.eq.s32.totalorder %s21, 0
      %p118 = por %p116, %p117
      %p119 = scmp.ne.s32.totalorder %s111, %s113
      %p120 = scmp.eq.s32.totalorder %s26, 1
      %p121 = por %p119, %p120
      %p122 = scmp.ne.s32.totalorder %s113, %s114
      %p123 = scmp.eq.s32.totalorder %s26, 0
      %p124 = por %p122, %p123
      %p125 = scmp.ne.s32.totalorder %s113, %s114
      %p126 = scmp.eq.s32.totalorder %s27, 1
      %p127 = por %p125, %p126
      %p129 = scmp.ne.s32.totalorder %s114, %s128
      %p130 = scmp.eq.s32.totalorder %s27, 0
      %p131 = por %p129, %p130
      %s133 = sadd.s32 %s132, 1
      %p136 = scmp.eq.s32.totalorder %s21, 1
      %p137 = scmp.ne.s32.totalorder %s132, %s134
      %p138 = scmp.eq.s32.totalorder %s21, 0
      %p139 = por %p137, %p138
      %p140 = scmp.ne.s32.totalorder %s132, %s134
      %p141 = scmp.eq.s32.totalorder %s26, 1
      %p142 = por %p140, %p141
      %p143 = scmp.ne.s32.totalorder %s134, %s135
      %p144 = scmp.eq.s32.totalorder %s26, 0
      %p145 = por %p143, %p144
      %p146 = scmp.ne.s32.totalorder %s134, %s135
      %p147 = scmp.eq.s32.totalorder %s27, 1
      %p148 = por %p146, %p147
      %p150 = scmp.ne.s32.totalorder %s135, %s149
      %p151 = scmp.eq.s32.totalorder %s27, 0
      %p152 = por %p150, %p151
      %s154 = sadd.s32 %s153, 1
      %p157 = scmp.eq.s32.totalorder %s21, 1
      %p158 = scmp.ne.s32.totalorder %s153, %s155
      %p159 = scmp.eq.s32.totalorder %s21, 0
      %p160 = por %p158, %p159
      %p161 = scmp.ne.s32.totalorder %s153, %s155
      %p162 = scmp.eq.s32.totalorder %s26, 1
      %p163 = por %p161, %p162
      %p164 = scmp.ne.s32.totalorder %s155, %s156
      %p165 = scmp.eq.s32.totalorder %s26, 0
      %p166 = por %p164, %p165
      %p167 = scmp.ne.s32.totalorder %s155, %s156
      %p168 = scmp.eq.s32.totalorder %s27, 1
      %p169 = por %p167, %p168
      %p171 = scmp.ne.s32.totalorder %s156, %s170
      %p172 = scmp.eq.s32.totalorder %s27, 0
      %p173 = por %p171, %p172
      %s175 = sadd.s32 %s174, 1
      %p178 = scmp.eq.s32.totalorder %s21, 1
      %p179 = scmp.ne.s32.totalorder %s174, %s176
      %p180 = scmp.eq.s32.totalorder %s21, 0
      %p181 = por %p179, %p180
      %p182 = scmp.ne.s32.totalorder %s174, %s176
      %p183 = scmp.eq.s32.totalorder %s26, 1
      %p184 = por %p182, %p183
      %p185 = scmp.ne.s32.totalorder %s176, %s177
      %p186 = scmp.eq.s32.totalorder %s26, 0
      %p187 = por %p185, %p186
      %p188 = scmp.ne.s32.totalorder %s176, %s177
      %p189 = scmp.eq.s32.totalorder %s27, 1
      %p190 = por %p188, %p189
      %p192 = scmp.ne.s32.totalorder %s177, %s191
      %p193 = scmp.eq.s32.totalorder %s27, 0
      %p194 = por %p192, %p193
      %s196 = sadd.s32 %s195, 1
      %p199 = scmp.eq.s32.totalorder %s21, 1
      %p200 = scmp.ne.s32.totalorder %s195, %s197
      %p201 = scmp.eq.s32.totalorder %s21, 0
      %p202 = por %p200, %p201
      %p203 = scmp.ne.s32.totalorder %s195, %s197
      %p204 = scmp.eq.s32.totalorder %s26, 1
      %p205 = por %p203, %p204
      %p206 = scmp.ne.s32.totalorder %s197, %s198
      %p207 = scmp.eq.s32.totalorder %s26, 0
      %p208 = por %p206, %p207
      %p209 = scmp.ne.s32.totalorder %s197, %s198
      %p210 = scmp.eq.s32.totalorder %s27, 1
      %p211 = por %p209, %p210
      %p213 = scmp.ne.s32.totalorder %s198, %s212
      %p214 = scmp.eq.s32.totalorder %s27, 0
      %p215 = por %p213, %p214
      %s217 = sadd.s32 %s216, 1
      %p220 = scmp.eq.s32.totalorder %s21, 1
      %p221 = scmp.ne.s32.totalorder %s216, %s218
      %p222 = scmp.eq.s32.totalorder %s21, 0
      %p223 = por %p221, %p222
      %p224 = scmp.ne.s32.totalorder %s216, %s218
      %p225 = scmp.eq.s32.totalorder %s26, 1
      %p226 = por %p224, %p225
      %p227 = scmp.ne.s32.totalorder %s218, %s219
      %p228 = scmp.eq.s32.totalorder %s26, 0
      %p229 = por %p227, %p228
      %p230 = scmp.ne.s32.totalorder %s218, %s219
      %p231 = scmp.eq.s32.totalorder %s27, 1
      %p232 = por %p230, %p231
      %p234 = scmp.ne.s32.totalorder %s219, %s233
      %p235 = scmp.eq.s32.totalorder %s27, 0
      %p236 = por %p234, %p235
      %s238 = sadd.s32 %s237, 1
      %p241 = scmp.eq.s32.totalorder %s21, 1
      %p242 = scmp.ne.s32.totalorder %s237, %s239
      %p243 = scmp.eq.s32.totalorder %s21, 0
      %p244 = por %p242, %p243
      %p245 = scmp.ne.s32.totalorder %s237, %s239
      %p246 = scmp.eq.s32.totalorder %s26, 1
      %p247 = por %p245, %p246
      %p248 = scmp.ne.s32.totalorder %s239, %s240
      %p249 = scmp.eq.s32.totalorder %s26, 0
      %p250 = por %p248, %p249
      %p251 = scmp.ne.s32.totalorder %s239, %s240
      %p252 = scmp.eq.s32.totalorder %s27, 1
      %p253 = por %p251, %p252
      %p255 = scmp.ne.s32.totalorder %s240, %s254
      %p256 = scmp.eq.s32.totalorder %s27, 0
      %p257 = por %p255, %p256
      %s259 = sadd.s32 %s258, 1
      %p262 = scmp.eq.s32.totalorder %s21, 1
      %p263 = scmp.ne.s32.totalorder %s258, %s260
      %p264 = scmp.eq.s32.totalorder %s21, 0
      %p265 = por %p263, %p264
      %p266 = scmp.ne.s32.totalorder %s258, %s260
      %p267 = scmp.eq.s32.totalorder %s26, 1
      %p268 = por %p266, %p267
      %p269 = scmp.ne.s32.totalorder %s260, %s261
      %p270 = scmp.eq.s32.totalorder %s26, 0
      %p271 = por %p269, %p270
      %p272 = scmp.ne.s32.totalorder %s260, %s261
      %p273 = scmp.eq.s32.totalorder %s27, 1
      %p274 = por %p272, %p273
      %p276 = scmp.ne.s32.totalorder %s261, %s275
      %p277 = scmp.eq.s32.totalorder %s27, 0
      %p278 = por %p276, %p277
      %s279 = ssub.s32 %s28, %s40
      %s280 = ssub.s32 %s29, %s36
      %s281 = sor.u32 %s279, %s280
      %p282 = scmp.eq.s32.totalorder %s281, 0
      %s284 = sadd.s32 %s283, 1
      %s285 = scalar_select %p282, %s283, %s284
      %p288 = pneg %p282
      %p289 = scmp.eq.s32.totalorder %s21, 1
      %p290 = por %p288, %p289
      %p291 = scmp.ne.s32.totalorder %s283, %s286
      %p292 = scmp.eq.s32.totalorder %s21, 0
      %p293 = por %p291, %p292
      %p294 = scmp.ne.s32.totalorder %s283, %s286
      %p295 = scmp.eq.s32.totalorder %s26, 1
      %p296 = por %p294, %p295
      %p297 = scmp.ne.s32.totalorder %s286, %s287
      %p298 = scmp.eq.s32.totalorder %s26, 0
      %p299 = por %p297, %p298
      %p300 = scmp.ne.s32.totalorder %s286, %s287
      %p301 = scmp.eq.s32.totalorder %s27, 1
      %p302 = por %p300, %p301
      %p304 = scmp.ne.s32.totalorder %s287, %s303
      %p305 = scmp.eq.s32.totalorder %s27, 0
      %p306 = por %p304, %p305
      %s307 = ssub.s32 %s28, %s40
      %p308 = scmp.eq.s32.totalorder %s307, 0
      %s310 = sadd.s32 %s309, 1
      %s311 = scalar_select %p308, %s309, %s310
      %p314 = pneg %p308
      %p315 = scmp.eq.s32.totalorder %s21, 1
      %p316 = por %p314, %p315
      %p317 = scmp.ne.s32.totalorder %s309, %s312
      %p318 = scmp.eq.s32.totalorder %s21, 0
      %p319 = por %p317, %p318
      %p320 = scmp.ne.s32.totalorder %s309, %s312
      %p321 = scmp.eq.s32.totalorder %s26, 1
      %p322 = por %p320, %p321
      %p323 = scmp.ne.s32.totalorder %s312, %s313
      %p324 = scmp.eq.s32.totalorder %s26, 0
      %p325 = por %p323, %p324
      %p326 = scmp.ne.s32.totalorder %s312, %s313
      %p327 = scmp.eq.s32.totalorder %s27, 1
      %p328 = por %p326, %p327
      %p330 = scmp.ne.s32.totalorder %s313, %s329
      %p331 = scmp.eq.s32.totalorder %s27, 0
      %p332 = por %p330, %p331
      %p333 = scmp.le.s32.totalorder 1, %s21
      %p334 = scmp.lt.s32.totalorder %s21, 3
      %p335 = pnand %p333, %p334
      %p336 = pneg %p335
      // Predicated region
      $region9: #{instance_segmentation_forward.2} parent=5 // pred_check
        _
      $region10: #{instance_segmentation_forward.2} parent=5 // pred_check_branch
        %338 = sbr.rel (%p335) target = $region12
      $region11: #{instance_segmentation_forward.2} parent=5 // pred_region
        %s339 = ssub.s32 %s21, 1
        // Predicated region
        $region13: #{instance_segmentation_forward.2} parent=11 // pred_check
          %p340 = pneg %p82
        $region14: #{instance_segmentation_forward.2} parent=11 // pred_check_branch
          %342 = sbr.rel (%p340) target = $region16
        $region15: #{instance_segmentation_forward.2} parent=11 // pred_region
          _
        $region16: #{instance_segmentation_forward.2} parent=11 // pred_fallthru
          _
        // Predicated region
        $region17: #{instance_segmentation_forward.2} parent=11 // pred_check
          %p343 = pneg %p103
        $region18: #{instance_segmentation_forward.2} parent=11 // pred_check_branch
          %345 = sbr.rel (%p343) target = $region20
        $region19: #{instance_segmentation_forward.2} parent=11 // pred_region
          _
        $region20: #{instance_segmentation_forward.2} parent=11 // pred_fallthru
          _
        // Predicated region
        $region21: #{instance_segmentation_forward.2} parent=11 // pred_check
          %p346 = pneg %p124
        $region22: #{instance_segmentation_forward.2} parent=11 // pred_check_branch
          %348 = sbr.rel (%p346) target = $region24
        $region23: #{instance_segmentation_forward.2} parent=11 // pred_region
          _
        $region24: #{instance_segmentation_forward.2} parent=11 // pred_fallthru
          _
        // Predicated region
        $region25: #{instance_segmentation_forward.2} parent=11 // pred_check
          %p349 = pneg %p145
        $region26: #{instance_segmentation_forward.2} parent=11 // pred_check_branch
          %351 = sbr.rel (%p349) target = $region28
        $region27: #{instance_segmentation_forward.2} parent=11 // pred_region
          _
        $region28: #{instance_segmentation_forward.2} parent=11 // pred_fallthru
          _
        // Predicated region
        $region29: #{instance_segmentation_forward.2} parent=11 // pred_check
          %p352 = pneg %p166
        $region30: #{instance_segmentation_forward.2} parent=11 // pred_check_branch
          %354 = sbr.rel (%p352) target = $region32
        $region31: #{instance_segmentation_forward.2} parent=11 // pred_region
          _
        $region32: #{instance_segmentation_forward.2} parent=11 // pred_fallthru
          _
        // Predicated region
        $region33: #{instance_segmentation_forward.2} parent=11 // pred_check
          %p355 = pneg %p187
        $region34: #{instance_segmentation_forward.2} parent=11 // pred_check_branch
          %357 = sbr.rel (%p355) target = $region36
        $region35: #{instance_segmentation_forward.2} parent=11 // pred_region
          _
        $region36: #{instance_segmentation_forward.2} parent=11 // pred_fallthru
          _
        // Predicated region
        $region37: #{instance_segmentation_forward.2} parent=11 // pred_check
          %p358 = pneg %p208
        $region38: #{instance_segmentation_forward.2} parent=11 // pred_check_branch
          %360 = sbr.rel (%p358) target = $region40
        $region39: #{instance_segmentation_forward.2} parent=11 // pred_region
          _
        $region40: #{instance_segmentation_forward.2} parent=11 // pred_fallthru
          _
        // Predicated region
        $region41: #{instance_segmentation_forward.2} parent=11 // pred_check
          %p361 = pneg %p229
        $region42: #{instance_segmentation_forward.2} parent=11 // pred_check_branch
          %363 = sbr.rel (%p361) target = $region44
        $region43: #{instance_segmentation_forward.2} parent=11 // pred_region
          %s365 = ssub.s32 32, 32
          %366 = vsyncadd [#allocation4], %s365
          %s368 = sshll.u32 [#allocation3], 4
          %s369 = int_to_ptr.vmem [resolvable:$true] %s368
          %371 = dma.hbm_to_vmem [thread:$0]  %s8, 32, %s369, [#allocation4]
        $region44: #{instance_segmentation_forward.2} parent=11 // pred_fallthru
          _
        // Predicated region
        $region45: #{instance_segmentation_forward.2} parent=11 // pred_check
          %p372 = pneg %p250
        $region46: #{instance_segmentation_forward.2} parent=11 // pred_check_branch
          %374 = sbr.rel (%p372) target = $region48
        $region47: #{instance_segmentation_forward.2} parent=11 // pred_region
          _
        $region48: #{instance_segmentation_forward.2} parent=11 // pred_fallthru
          _
        // Predicated region
        $region49: #{instance_segmentation_forward.2} parent=11 // pred_check
          %p375 = pneg %p271
        $region50: #{instance_segmentation_forward.2} parent=11 // pred_check_branch
          %377 = sbr.rel (%p375) target = $region52
        $region51: #{instance_segmentation_forward.2} parent=11 // pred_region
          %s379 = ssub.s32 16, 16
          %380 = vsyncadd [#allocation6], %s379
          %s382 = sshll.u32 [#allocation5], 4
          %s383 = int_to_ptr.vmem [resolvable:$true] %s382
          %385 = dma.hbm_to_vmem [thread:$0]  %s10, 16, %s383, [#allocation6]
        $region52: #{instance_segmentation_forward.2} parent=11 // pred_fallthru
          _
      $region12: #{instance_segmentation_forward.2} parent=5 // pred_fallthru
        _
      %p386 = scmp.lt.s32.totalorder %s21, 2
      // Predicated region
      $region53: #{instance_segmentation_forward.2} parent=5 // pred_check
        %p387 = pneg %p386
      $region54: #{instance_segmentation_forward.2} parent=5 // pred_check_branch
        %389 = sbr.rel (%p387) target = $region56
      $region55: #{instance_segmentation_forward.2} parent=5 // pred_region
        // Predicated region
        $region57: #{instance_segmentation_forward.2} parent=55 // pred_check
          %p390 = pneg %p55
        $region58: #{instance_segmentation_forward.2} parent=55 // pred_check_branch
          %392 = sbr.rel (%p390) target = $region60
        $region59: #{instance_segmentation_forward.2} parent=55 // pred_region
          %s393 = smul.u32 16, %s29
          %p394 = scmp.lt.s32.totalorder %s28, 1
          %s395 = scalar_select %p394, %s28, 1
          %p396 = scmp.lt.s32.totalorder %s393, 15
          %s397 = scalar_select %p396, %s393, 15
          %s398 = smul.addr %s395, 16
          %s399 = sadd.s32 %s397, %s398
          %s400 = smul.addr %s399, 8
          %s401 = scalar_lea.vmem %s0, %s400
          %s402 = smul.u32 16, %s29
        $region60: #{instance_segmentation_forward.2} parent=55 // pred_fallthru
          _
      $region56: #{instance_segmentation_forward.2} parent=5 // pred_fallthru
        _
      %p403 = scmp.le.s32.totalorder 1, %s21
      %p404 = scmp.lt.s32.totalorder %s21, 3
      %p405 = pnand %p403, %p404
      %p406 = pneg %p405
      // Predicated region
      $region61: #{instance_segmentation_forward.2} parent=5 // pred_check
        _
      $region62: #{instance_segmentation_forward.2} parent=5 // pred_check_branch
        %408 = sbr.rel (%p405) target = $region64
      $region63: #{instance_segmentation_forward.2} parent=5 // pred_region
        %s409 = ssub.s32 %s21, 1
        // Predicated region
        $region65: #{instance_segmentation_forward.2} parent=63 // pred_check
          %p410 = pneg %p229
        $region66: #{instance_segmentation_forward.2} parent=63 // pred_check_branch
          %412 = sbr.rel (%p410) target = $region68
        $region67: #{instance_segmentation_forward.2} parent=63 // pred_region
          %413 = dma.done [#allocation4], 32
        $region68: #{instance_segmentation_forward.2} parent=63 // pred_fallthru
          _
        // Predicated region
        $region69: #{instance_segmentation_forward.2} parent=63 // pred_check
          %p414 = pneg %p271
        $region70: #{instance_segmentation_forward.2} parent=63 // pred_check_branch
          %416 = sbr.rel (%p414) target = $region72
        $region71: #{instance_segmentation_forward.2} parent=63 // pred_region
          %417 = dma.done [#allocation6], 16
        $region72: #{instance_segmentation_forward.2} parent=63 // pred_fallthru
          _
        %s418 = smul.u32 16, %s31
        %p419 = scmp.lt.s32.totalorder %s30, 1
        %s420 = scalar_select %p419, %s30, 1
        %p421 = scmp.lt.s32.totalorder %s418, 15
        %s422 = scalar_select %p421, %s418, 15
        %s423 = smul.addr %s420, 16
        %s424 = sadd.s32 %s422, %s423
        %s425 = smul.addr %s424, 8
        %s426 = scalar_lea.vmem %s0, %s425
        %p427 = pneg %p61
        %p428 = pneg %p58
        %p429 = pneg %p82
        %p430 = pneg %p79
        %p431 = pneg %p103
        %p432 = pneg %p100
        %p433 = pneg %p124
        %p434 = pneg %p121
        %p435 = pneg %p145
        %p436 = pneg %p142
        %p437 = pneg %p166
        %p438 = pneg %p163
        %p439 = pneg %p187
        %p440 = pneg %p184
        %p441 = pneg %p208
        %p442 = pneg %p205
        %p443 = pneg %p229
        %p444 = pneg %p226
        %p445 = pneg %p250
        %p446 = pneg %p247
        %p447 = pneg %p271
        %p448 = pneg %p268
        %p449 = pneg %p299
        %p450 = pneg %p296
        %s451 = smul.u32 16, %s31
        %p452 = scmp.lt.s32.totalorder %s30, 1
        %s453 = scalar_select %p452, %s30, 1
        %p454 = scmp.lt.s32.totalorder %s451, 15
        %s455 = scalar_select %p454, %s451, 15
        %s456 = smul.addr %s453, 16
        %s457 = sadd.s32 %s455, %s456
        %s458 = smul.addr %s457, 4
        %s459 = scalar_lea.vmem %s11, %s458
        %p460 = pneg %p325
        %p461 = pneg %p322
        %p462 = scmp.lt.s32.totalorder %s30, 1
        %s463 = scalar_select %p462, %s30, 1
        %s464 = scalar_lea.vmem %s12, %s463
        %s465 = smul.u32 16, %s31
        %p466 = scmp.lt.s32.totalorder %s30, 1
        %s467 = scalar_select %p466, %s30, 1
        %p468 = scmp.lt.s32.totalorder %s465, 15
        %s469 = scalar_select %p468, %s465, 15
        %s470 = smul.addr %s467, 16
        %s471 = sadd.s32 %s469, %s470
        %s472 = smul.addr %s471, 8
        %s473 = scalar_lea.vmem %s0, %s472
        %s474 = smul.u32 16, %s31
        %s475 = smul.u32 16, %s31
        %p476 = scmp.lt.s32.totalorder %s30, 1
        %s477 = scalar_select %p476, %s30, 1
        %p478 = scmp.lt.s32.totalorder %s475, 15
        %s479 = scalar_select %p478, %s475, 15
        %s480 = smul.addr %s477, 16
        %s481 = sadd.s32 %s479, %s480
        %s482 = smul.addr %s481, 4
        %s483 = scalar_lea.vmem %s11, %s482
        %s484 = smul.u32 16, %s31
        %p485 = scmp.lt.s32.totalorder %s30, 1
        %s486 = scalar_select %p485, %s30, 1
        %s487 = scalar_lea.vmem %s12, %s486
        %v489 = vld [vmem:[%s473] sm:$0xff]
        %v490 = vld [vmem:[%s473 + $0x8] sm:$0xff]
        %v491 = vld [vmem:[%s473 + $0x10] sm:$0xff]
        %v492 = vld [vmem:[%s473 + $0x18] sm:$0xff]
        %v493 = vld [vmem:[%s473 + $0x20] sm:$0xff]
        %v494 = vld [vmem:[%s473 + $0x28] sm:$0xff]
        %v495 = vld [vmem:[%s473 + $0x30] sm:$0xff]
        %v496 = vld [vmem:[%s473 + $0x38] sm:$0xff]
        %v497 = vld [vmem:[%s473 + $0x40] sm:$0xff]
        %v498 = vld [vmem:[%s473 + $0x48] sm:$0xff]
        %v499 = vld [vmem:[%s473 + $0x50] sm:$0xff]
        %v500 = vld [vmem:[%s473 + $0x58] sm:$0xff]
        %v501 = vld [vmem:[%s473 + $0x60] sm:$0xff]
        %v502 = vld [vmem:[%s473 + $0x68] sm:$0xff]
        %v503 = vld [vmem:[%s473 + $0x70] sm:$0xff]
        %v504 = vld [vmem:[%s473 + $0x78] sm:$0xff]
        %v505 = vpack.c.bf16 %v490, %v489
        %v506 = vpack.c.bf16 %v492, %v491
        %v507 = vpack.c.bf16 %v494, %v493
        %v508 = vpack.c.bf16 %v496, %v495
        %v509 = vpack.c.bf16 %v498, %v497
        %v510 = vpack.c.bf16 %v500, %v499
        %v511 = vpack.c.bf16 %v502, %v501
        %v512 = vpack.c.bf16 %v504, %v503
        %v513 = vld [vmem:[%s1] sm:$0x3]
        %v514 = vld [vmem:[%s2] sm:$0x1]
        %v516 = vlaneseq
        %v517 = vshrl.u32 %v516, 7
        %v518 = vsub.s32 0, %v517
        %v519 = vrot.slane %v514, %v518
        %vm521 = vcmask 31744
        %v523 = vsel %vm521, %v505, 0
        %v526 = vsel %vm521, %v506, 0
        %v529 = vsel %vm521, %v507, 0
        %v532 = vsel %vm521, %v508, 0
        %v535 = vsel %vm521, %v509, 0
        %v538 = vsel %vm521, %v510, 0
        %v541 = vsel %vm521, %v511, 0
        %v544 = vsel %vm521, %v512, 0
        %vm546 = vcmask 1041408
        %v548 = vsel %vm546, %v513, 0
        %550 = vmatprep.subr.bf16.mxu0 0
        %551 = vmatpush1.bf16.msra.mxu0 %v548
        %552 = vmatprep.subr.bf16.mxu0 0
        %553 = vmatpush1.bf16.msra.mxu0 0
        %554 = vmatprep.subr.bf16.mxu0 0
        %555 = vmatpush1.bf16.msra.mxu0 0
        %556 = vmatprep.subr.bf16.mxu0 0
        %557 = vmatpush1.bf16.msra.mxu0 0
        %558 = vmatprep.subr.bf16.mxu0 0
        %559 = vmatpush1.bf16.msra.mxu0 0
        %560 = vmatprep.subr.bf16.mxu0 0
        %561 = vmatpush1.bf16.msra.mxu0 0
        %562 = vmatprep.subr.bf16.mxu0 0
        %563 = vmatpush1.bf16.msra.mxu0 0
        %564 = vmatprep.subr.bf16.mxu0 0
        %565 = vmatpush1.bf16.msra.mxu0 0
        %566 = vmatprep.subr.bf16.mxu0 0
        %567 = vmatpush1.bf16.msra.mxu0 0
        %568 = vmatprep.subr.bf16.mxu0 0
        %569 = vmatpush1.bf16.msra.mxu0 0
        %570 = vmatprep.subr.bf16.mxu0 0
        %571 = vmatpush1.bf16.msra.mxu0 0
        %572 = vmatprep.subr.bf16.mxu0 0
        %573 = vmatpush1.bf16.msra.mxu0 0
        %574 = vmatprep.subr.bf16.mxu0 0
        %575 = vmatpush1.bf16.msra.mxu0 0
        %576 = vmatprep.subr.bf16.mxu0 0
        %577 = vmatpush1.bf16.msra.mxu0 0
        %578 = vmatprep.subr.bf16.mxu0 0
        %579 = vmatpush1.bf16.msra.mxu0 0
        %580 = vmatprep.subr.bf16.mxu0 0
        %581 = vmatpush1.bf16.msra.mxu0 0
        %582 = vmatprep.mubr.bf16.mxu0 0
        %583 = vmatmul.mubr.bf16.gmra.mrb[0].mxu0 %v523
        %v584 = vpop.f32.mrb[0].mxu0
        %v585 = vadd.f32 %v519, %v584
        %v586 = vpop.f32.mrb[0].mxu0
        %v587 = vpop.f32.mrb[0].mxu0
        %v588 = vadd.f32 %v519, %v587
        %v589 = vpop.f32.mrb[0].mxu0
        %590 = vmatprep.mubr.bf16.mxu0 0
        %591 = vmatmul.mubr.bf16.gmra.mrb[0].mxu0 %v526
        %v592 = vpop.f32.mrb[0].mxu0
        %v593 = vadd.f32 %v519, %v592
        %v594 = vpop.f32.mrb[0].mxu0
        %v595 = vpop.f32.mrb[0].mxu0
        %v596 = vadd.f32 %v519, %v595
        %v597 = vpop.f32.mrb[0].mxu0
        %598 = vmatprep.mubr.bf16.mxu0 0
        %599 = vmatmul.mubr.bf16.gmra.mrb[0].mxu0 %v529
        %v600 = vpop.f32.mrb[0].mxu0
        %v601 = vadd.f32 %v519, %v600
        %v602 = vpop.f32.mrb[0].mxu0
        %v603 = vpop.f32.mrb[0].mxu0
        %v604 = vadd.f32 %v519, %v603
        %v605 = vpop.f32.mrb[0].mxu0
        %606 = vmatprep.mubr.bf16.mxu0 0
        %607 = vmatmul.mubr.bf16.gmra.mrb[0].mxu0 %v532
        %v608 = vpop.f32.mrb[0].mxu0
        %v609 = vadd.f32 %v519, %v608
        %v610 = vpop.f32.mrb[0].mxu0
        %v611 = vpop.f32.mrb[0].mxu0
        %v612 = vadd.f32 %v519, %v611
        %v613 = vpop.f32.mrb[0].mxu0
        %614 = vmatprep.mubr.bf16.mxu0 0
        %615 = vmatmul.mubr.bf16.gmra.mrb[0].mxu0 %v535
        %v616 = vpop.f32.mrb[0].mxu0
        %v617 = vadd.f32 %v519, %v616
        %v618 = vpop.f32.mrb[0].mxu0
        %v619 = vpop.f32.mrb[0].mxu0
        %v620 = vadd.f32 %v519, %v619
        %v621 = vpop.f32.mrb[0].mxu0
        %622 = vmatprep.mubr.bf16.mxu0 0
        %623 = vmatmul.mubr.bf16.gmra.mrb[0].mxu0 %v538
        %v624 = vpop.f32.mrb[0].mxu0
        %v625 = vadd.f32 %v519, %v624
        %v626 = vpop.f32.mrb[0].mxu0
        %v627 = vpop.f32.mrb[0].mxu0
        %v628 = vadd.f32 %v519, %v627
        %v629 = vpop.f32.mrb[0].mxu0
        %630 = vmatprep.mubr.bf16.mxu0 0
        %631 = vmatmul.mubr.bf16.gmra.mrb[0].mxu0 %v541
        %v632 = vpop.f32.mrb[0].mxu0
        %v633 = vadd.f32 %v519, %v632
        %v634 = vpop.f32.mrb[0].mxu0
        %v635 = vpop.f32.mrb[0].mxu0
        %v636 = vadd.f32 %v519, %v635
        %v637 = vpop.f32.mrb[0].mxu0
        %638 = vmatprep.mubr.bf16.mxu0 0
        %639 = vmatmul.mubr.bf16.gmra.mrb[0].mxu0 %v544
        %v640 = vpop.f32.mrb[0].mxu0
        %v641 = vadd.f32 %v519, %v640
        %v642 = vpop.f32.mrb[0].mxu0
        %v643 = vpop.f32.mrb[0].mxu0
        %v644 = vadd.f32 %v519, %v643
        %v645 = vpop.f32.mrb[0].mxu0
        %646 = vdwg.mxu0
        %v647 = vmax.f32 %v585, 0.0
        %v648 = vmax.f32 %v588, 0.0
        %v649 = vmax.f32 %v593, 0.0
        %v650 = vmax.f32 %v596, 0.0
        %v651 = vmax.f32 %v601, 0.0
        %v652 = vmax.f32 %v604, 0.0
        %v653 = vmax.f32 %v609, 0.0
        %v654 = vmax.f32 %v612, 0.0
        %v655 = vmax.f32 %v617, 0.0
        %v656 = vmax.f32 %v620, 0.0
        %v657 = vmax.f32 %v625, 0.0
        %v658 = vmax.f32 %v628, 0.0
        %v659 = vmax.f32 %v633, 0.0
        %v660 = vmax.f32 %v636, 0.0
        %v661 = vmax.f32 %v641, 0.0
        %v662 = vmax.f32 %v644, 0.0
        %v663 = vpack.c.bf16 %v648, %v647
        %v664 = vpack.c.bf16 %v650, %v649
        %v665 = vpack.c.bf16 %v652, %v651
        %v666 = vpack.c.bf16 %v654, %v653
        %v667 = vpack.c.bf16 %v656, %v655
        %v668 = vpack.c.bf16 %v658, %v657
        %v669 = vpack.c.bf16 %v660, %v659
        %v670 = vpack.c.bf16 %v662, %v661
        %v671 = vld [vmem:[%s3] sm:$0xf]
        %v672 = vld [vmem:[%s3 + $0x4] sm:$0xf]
        %v673 = vld [vmem:[%s3 + $0x8] sm:$0xf]
        %v674 = vld [vmem:[%s3 + $0xc] sm:$0xf]
        %v675 = vld [vmem:[%s3 + $0x10] sm:$0xf]
        %v676 = vld [vmem:[%s3 + $0x14] sm:$0xf]
        %v677 = vld [vmem:[%s3 + $0x18] sm:$0xf]
        %v678 = vld [vmem:[%s3 + $0x1c] sm:$0xf]
        %v679 = vld [vmem:[%s4] sm:$0x1]
        %v681 = vlaneseq
        %v682 = vshrl.u32 %v681, 7
        %v683 = vsub.s32 0, %v682
        %v684 = vrot.slane %v679, %v683
        %v694 = vunpack.c.l.b16 %v671
        %v695 = vunpack.c.l.b16 %v672
        %v696 = vunpack.c.l.b16 %v673
        %v697 = vunpack.c.l.b16 %v674
        %v698 = vunpack.c.l.b16 %v675
        %v699 = vunpack.c.l.b16 %v676
        %v700 = vunpack.c.l.b16 %v677
        %v701 = vunpack.c.l.b16 %v678
        %v702 = vpack.c.b16 %v695, %v694
        %v703 = vpack.c.b16 %v697, %v696
        %v704 = vpack.c.b16 %v699, %v698
        %v705 = vpack.c.b16 %v701, %v700
        %vm710 = vcmask 523264
        %v712 = vsel %vm710, %v663, 0
        %v715 = vsel %vm710, %v664, 0
        %v718 = vsel %vm710, %v665, 0
        %v721 = vsel %vm710, %v666, 0
        %v724 = vsel %vm710, %v667, 0
        %v727 = vsel %vm710, %v668, 0
        %v730 = vsel %vm710, %v669, 0
        %v733 = vsel %vm710, %v670, 0
        %735 = vmatprep.subr.bf16.mxu0 0
        %736 = vmatpush1.bf16.msra.mxu0 %v702
        %737 = vmatprep.subr.bf16.mxu0 0
        %738 = vmatpush1.bf16.msra.mxu0 %v703
        %739 = vmatprep.subr.bf16.mxu0 0
        %740 = vmatpush1.bf16.msra.mxu0 %v704
        %741 = vmatprep.subr.bf16.mxu0 0
        %742 = vmatpush1.bf16.msra.mxu0 %v705
        %743 = vmatprep.subr.bf16.mxu0 0
        %744 = vmatpush1.bf16.msra.mxu0 0
        %745 = vmatprep.subr.bf16.mxu0 0
        %746 = vmatpush1.bf16.msra.mxu0 0
        %747 = vmatprep.subr.bf16.mxu0 0
        %748 = vmatpush1.bf16.msra.mxu0 0
        %749 = vmatprep.subr.bf16.mxu0 0
        %750 = vmatpush1.bf16.msra.mxu0 0
        %751 = vmatprep.subr.bf16.mxu0 0
        %752 = vmatpush1.bf16.msra.mxu0 0
        %753 = vmatprep.subr.bf16.mxu0 0
        %754 = vmatpush1.bf16.msra.mxu0 0
        %755 = vmatprep.subr.bf16.mxu0 0
        %756 = vmatpush1.bf16.msra.mxu0 0
        %757 = vmatprep.subr.bf16.mxu0 0
        %758 = vmatpush1.bf16.msra.mxu0 0
        %759 = vmatprep.subr.bf16.mxu0 0
        %760 = vmatpush1.bf16.msra.mxu0 0
        %761 = vmatprep.subr.bf16.mxu0 0
        %762 = vmatpush1.bf16.msra.mxu0 0
        %763 = vmatprep.subr.bf16.mxu0 0
        %764 = vmatpush1.bf16.msra.mxu0 0
        %765 = vmatprep.subr.bf16.mxu0 0
        %766 = vmatpush1.bf16.msra.mxu0 0
        %767 = vmatprep.mubr.bf16.mxu0 0
        %768 = vmatmul.mubr.bf16.gmra.mrb[0].mxu0 %v712
        %v769 = vpop.f32.mrb[0].mxu0
        %v770 = vadd.f32 %v684, %v769
        %v771 = vpop.f32.mrb[0].mxu0
        %v772 = vpop.f32.mrb[0].mxu0
        %v773 = vadd.f32 %v684, %v772
        %v774 = vpop.f32.mrb[0].mxu0
        %775 = vmatprep.mubr.bf16.mxu0 0
        %776 = vmatmul.mubr.bf16.gmra.mrb[0].mxu0 %v715
        %v777 = vpop.f32.mrb[0].mxu0
        %v778 = vadd.f32 %v684, %v777
        %v779 = vpop.f32.mrb[0].mxu0
        %v780 = vpop.f32.mrb[0].mxu0
        %v781 = vadd.f32 %v684, %v780
        %v782 = vpop.f32.mrb[0].mxu0
        %783 = vmatprep.mubr.bf16.mxu0 0
        %784 = vmatmul.mubr.bf16.gmra.mrb[0].mxu0 %v718
        %v785 = vpop.f32.mrb[0].mxu0
        %v786 = vadd.f32 %v684, %v785
        %v787 = vpop.f32.mrb[0].mxu0
        %v788 = vpop.f32.mrb[0].mxu0
        %v789 = vadd.f32 %v684, %v788
        %v790 = vpop.f32.mrb[0].mxu0
        %791 = vmatprep.mubr.bf16.mxu0 0
        %792 = vmatmul.mubr.bf16.gmra.mrb[0].mxu0 %v721
        %v793 = vpop.f32.mrb[0].mxu0
        %v794 = vadd.f32 %v684, %v793
        %v795 = vpop.f32.mrb[0].mxu0
        %v796 = vpop.f32.mrb[0].mxu0
        %v797 = vadd.f32 %v684, %v796
        %v798 = vpop.f32.mrb[0].mxu0
        %799 = vmatprep.mubr.bf16.mxu0 0
        %800 = vmatmul.mubr.bf16.gmra.mrb[0].mxu0 %v724
        %v801 = vpop.f32.mrb[0].mxu0
        %v802 = vadd.f32 %v684, %v801
        %v803 = vpop.f32.mrb[0].mxu0
        %v804 = vpop.f32.mrb[0].mxu0
        %v805 = vadd.f32 %v684, %v804
        %v806 = vpop.f32.mrb[0].mxu0
        %807 = vmatprep.mubr.bf16.mxu0 0
        %808 = vmatmul.mubr.bf16.gmra.mrb[0].mxu0 %v727
        %v809 = vpop.f32.mrb[0].mxu0
        %v810 = vadd.f32 %v684, %v809
        %v811 = vpop.f32.mrb[0].mxu0
        %v812 = vpop.f32.mrb[0].mxu0
        %v813 = vadd.f32 %v684, %v812
        %v814 = vpop.f32.mrb[0].mxu0
        %815 = vmatprep.mubr.bf16.mxu0 0
        %816 = vmatmul.mubr.bf16.gmra.mrb[0].mxu0 %v730
        %v817 = vpop.f32.mrb[0].mxu0
        %v818 = vadd.f32 %v684, %v817
        %v819 = vpop.f32.mrb[0].mxu0
        %v820 = vpop.f32.mrb[0].mxu0
        %v821 = vadd.f32 %v684, %v820
        %v822 = vpop.f32.mrb[0].mxu0
        %823 = vmatprep.mubr.bf16.mxu0 0
        %824 = vmatmul.mubr.bf16.gmra.mrb[0].mxu0 %v733
        %v825 = vpop.f32.mrb[0].mxu0
        %v826 = vadd.f32 %v684, %v825
        %v827 = vpop.f32.mrb[0].mxu0
        %v828 = vpop.f32.mrb[0].mxu0
        %v829 = vadd.f32 %v684, %v828
        %v830 = vpop.f32.mrb[0].mxu0
        %831 = vdwg.mxu0
        %v832 = vmax.f32 %v770, 0.0
        %v833 = vmax.f32 %v773, 0.0
        %v834 = vmax.f32 %v778, 0.0
        %v835 = vmax.f32 %v781, 0.0
        %v836 = vmax.f32 %v786, 0.0
        %v837 = vmax.f32 %v789, 0.0
        %v838 = vmax.f32 %v794, 0.0
        %v839 = vmax.f32 %v797, 0.0
        %v840 = vmax.f32 %v802, 0.0
        %v841 = vmax.f32 %v805, 0.0
        %v842 = vmax.f32 %v810, 0.0
        %v843 = vmax.f32 %v813, 0.0
        %v844 = vmax.f32 %v818, 0.0
        %v845 = vmax.f32 %v821, 0.0
        %v846 = vmax.f32 %v826, 0.0
        %v847 = vmax.f32 %v829, 0.0
        %v848 = vpack.c.bf16 %v833, %v832
        %v849 = vpack.c.bf16 %v835, %v834
        %v850 = vpack.c.bf16 %v837, %v836
        %v851 = vpack.c.bf16 %v839, %v838
        %v852 = vpack.c.bf16 %v841, %v840
        %v853 = vpack.c.bf16 %v843, %v842
        %v854 = vpack.c.bf16 %v845, %v844
        %v855 = vpack.c.bf16 %v847, %v846
        %v856 = vld [vmem:[%s5] sm:$0xf]
        %v857 = vld [vmem:[%s5 + $0x4] sm:$0xf]
        %v858 = vld [vmem:[%s5 + $0x8] sm:$0xf]
        %v859 = vld [vmem:[%s5 + $0xc] sm:$0xf]
        %v860 = vld [vmem:[%s5 + $0x10] sm:$0xf]
        %v861 = vld [vmem:[%s5 + $0x14] sm:$0xf]
        %v862 = vld [vmem:[%s5 + $0x18] sm:$0xf]
        %v863 = vld [vmem:[%s5 + $0x1c] sm:$0xf]
        %v864 = vld [vmem:[%s6] sm:$0x1]
        %v866 = vlaneseq
        %v867 = vshrl.u32 %v866, 7
        %v868 = vsub.s32 0, %v867
        %v869 = vrot.slane %v864, %v868
        %v879 = vunpack.c.l.b16 %v856
        %v880 = vunpack.c.l.b16 %v857
        %v881 = vunpack.c.l.b16 %v858
        %v882 = vunpack.c.l.b16 %v859
        %v883 = vunpack.c.l.b16 %v860
        %v884 = vunpack.c.l.b16 %v861
        %v885 = vunpack.c.l.b16 %v862
        %v886 = vunpack.c.l.b16 %v863
        %v887 = vpack.c.b16 %v880, %v879
        %v888 = vpack.c.b16 %v882, %v881
        %v889 = vpack.c.b16 %v884, %v883
        %v890 = vpack.c.b16 %v886, %v885
        %v896 = vsel %vm710, %v848, 0
        %v899 = vsel %vm710, %v849, 0
        %v902 = vsel %vm710, %v850, 0
        %v905 = vsel %vm710, %v851, 0
        %v908 = vsel %vm710, %v852, 0
        %v911 = vsel %vm710, %v853, 0
        %v914 = vsel %vm710, %v854, 0
        %v917 = vsel %vm710, %v855, 0
        %919 = vmatprep.subr.bf16.mxu0 0
        %920 = vmatpush1.bf16.msra.mxu0 %v887
        %921 = vmatprep.subr.bf16.mxu0 0
        %922 = vmatpush1.bf16.msra.mxu0 %v888
        %923 = vmatprep.subr.bf16.mxu0 0
        %924 = vmatpush1.bf16.msra.mxu0 %v889
        %925 = vmatprep.subr.bf16.mxu0 0
        %926 = vmatpush1.bf16.msra.mxu0 %v890
        %927 = vmatprep.subr.bf16.mxu0 0
        %928 = vmatpush1.bf16.msra.mxu0 0
        %929 = vmatprep.subr.bf16.mxu0 0
        %930 = vmatpush1.bf16.msra.mxu0 0
        %931 = vmatprep.subr.bf16.mxu0 0
        %932 = vmatpush1.bf16.msra.mxu0 0
        %933 = vmatprep.subr.bf16.mxu0 0
        %934 = vmatpush1.bf16.msra.mxu0 0
        %935 = vmatprep.subr.bf16.mxu0 0
        %936 = vmatpush1.bf16.msra.mxu0 0
        %937 = vmatprep.subr.bf16.mxu0 0
        %938 = vmatpush1.bf16.msra.mxu0 0
        %939 = vmatprep.subr.bf16.mxu0 0
        %940 = vmatpush1.bf16.msra.mxu0 0
        %941 = vmatprep.subr.bf16.mxu0 0
        %942 = vmatpush1.bf16.msra.mxu0 0
        %943 = vmatprep.subr.bf16.mxu0 0
        %944 = vmatpush1.bf16.msra.mxu0 0
        %945 = vmatprep.subr.bf16.mxu0 0
        %946 = vmatpush1.bf16.msra.mxu0 0
        %947 = vmatprep.subr.bf16.mxu0 0
        %948 = vmatpush1.bf16.msra.mxu0 0
        %949 = vmatprep.subr.bf16.mxu0 0
        %950 = vmatpush1.bf16.msra.mxu0 0
        %951 = vmatprep.mubr.bf16.mxu0 0
        %952 = vmatmul.mubr.bf16.gmra.mrb[0].mxu0 %v896
        %v953 = vpop.f32.mrb[0].mxu0
        %v954 = vadd.f32 %v869, %v953
        %v955 = vpop.f32.mrb[0].mxu0
        %v956 = vpop.f32.mrb[0].mxu0
        %v957 = vadd.f32 %v869, %v956
        %v958 = vpop.f32.mrb[0].mxu0
        %959 = vmatprep.mubr.bf16.mxu0 0
        %960 = vmatmul.mubr.bf16.gmra.mrb[0].mxu0 %v899
        %v961 = vpop.f32.mrb[0].mxu0
        %v962 = vadd.f32 %v869, %v961
        %v963 = vpop.f32.mrb[0].mxu0
        %v964 = vpop.f32.mrb[0].mxu0
        %v965 = vadd.f32 %v869, %v964
        %v966 = vpop.f32.mrb[0].mxu0
        %967 = vmatprep.mubr.bf16.mxu0 0
        %968 = vmatmul.mubr.bf16.gmra.mrb[0].mxu0 %v902
        %v969 = vpop.f32.mrb[0].mxu0
        %v970 = vadd.f32 %v869, %v969
        %v971 = vpop.f32.mrb[0].mxu0
        %v972 = vpop.f32.mrb[0].mxu0
        %v973 = vadd.f32 %v869, %v972
        %v974 = vpop.f32.mrb[0].mxu0
        %975 = vmatprep.mubr.bf16.mxu0 0
        %976 = vmatmul.mubr.bf16.gmra.mrb[0].mxu0 %v905
        %v977 = vpop.f32.mrb[0].mxu0
        %v978 = vadd.f32 %v869, %v977
        %v979 = vpop.f32.mrb[0].mxu0
        %v980 = vpop.f32.mrb[0].mxu0
        %v981 = vadd.f32 %v869, %v980
        %v982 = vpop.f32.mrb[0].mxu0
        %983 = vmatprep.mubr.bf16.mxu0 0
        %984 = vmatmul.mubr.bf16.gmra.mrb[0].mxu0 %v908
        %v985 = vpop.f32.mrb[0].mxu0
        %v986 = vadd.f32 %v869, %v985
        %v987 = vpop.f32.mrb[0].mxu0
        %v988 = vpop.f32.mrb[0].mxu0
        %v989 = vadd.f32 %v869, %v988
        %v990 = vpop.f32.mrb[0].mxu0
        %991 = vmatprep.mubr.bf16.mxu0 0
        %992 = vmatmul.mubr.bf16.gmra.mrb[0].mxu0 %v911
        %v993 = vpop.f32.mrb[0].mxu0
        %v994 = vadd.f32 %v869, %v993
        %v995 = vpop.f32.mrb[0].mxu0
        %v996 = vpop.f32.mrb[0].mxu0
        %v997 = vadd.f32 %v869, %v996
        %v998 = vpop.f32.mrb[0].mxu0
        %999 = vmatprep.mubr.bf16.mxu0 0
        %1000 = vmatmul.mubr.bf16.gmra.mrb[0].mxu0 %v914
        %v1001 = vpop.f32.mrb[0].mxu0
        %v1002 = vadd.f32 %v869, %v1001
        %v1003 = vpop.f32.mrb[0].mxu0
        %v1004 = vpop.f32.mrb[0].mxu0
        %v1005 = vadd.f32 %v869, %v1004
        %v1006 = vpop.f32.mrb[0].mxu0
        %1007 = vmatprep.mubr.bf16.mxu0 0
        %1008 = vmatmul.mubr.bf16.gmra.mrb[0].mxu0 %v917
        %v1009 = vpop.f32.mrb[0].mxu0
        %v1010 = vadd.f32 %v869, %v1009
        %v1011 = vpop.f32.mrb[0].mxu0
        %v1012 = vpop.f32.mrb[0].mxu0
        %v1013 = vadd.f32 %v869, %v1012
        %v1014 = vpop.f32.mrb[0].mxu0
        %1015 = vdwg.mxu0
        %v1016 = vmax.f32 %v954, 0.0
        %v1017 = vmax.f32 %v957, 0.0
        %v1018 = vmax.f32 %v962, 0.0
        %v1019 = vmax.f32 %v965, 0.0
        %v1020 = vmax.f32 %v970, 0.0
        %v1021 = vmax.f32 %v973, 0.0
        %v1022 = vmax.f32 %v978, 0.0
        %v1023 = vmax.f32 %v981, 0.0
        %v1024 = vmax.f32 %v986, 0.0
        %v1025 = vmax.f32 %v989, 0.0
        %v1026 = vmax.f32 %v994, 0.0
        %v1027 = vmax.f32 %v997, 0.0
        %v1028 = vmax.f32 %v1002, 0.0
        %v1029 = vmax.f32 %v1005, 0.0
        %v1030 = vmax.f32 %v1010, 0.0
        %v1031 = vmax.f32 %v1013, 0.0
        %v1032 = vpack.c.bf16 %v1017, %v1016
        %v1033 = vpack.c.bf16 %v1019, %v1018
        %v1034 = vpack.c.bf16 %v1021, %v1020
        %v1035 = vpack.c.bf16 %v1023, %v1022
        %v1036 = vpack.c.bf16 %v1025, %v1024
        %v1037 = vpack.c.bf16 %v1027, %v1026
        %v1038 = vpack.c.bf16 %v1029, %v1028
        %v1039 = vpack.c.bf16 %v1031, %v1030
        %v1048 = vunpack.c.l.b16 %v1032
        %v1049 = vunpack.c.h.b16 %v1032
        %v1050 = vunpack.c.l.b16 %v1033
        %v1051 = vunpack.c.h.b16 %v1033
        %v1052 = vunpack.c.l.b16 %v1034
        %v1053 = vunpack.c.h.b16 %v1034
        %v1054 = vunpack.c.l.b16 %v1035
        %v1055 = vunpack.c.h.b16 %v1035
        %v1056 = vunpack.c.l.b16 %v1036
        %v1057 = vunpack.c.h.b16 %v1036
        %v1058 = vunpack.c.l.b16 %v1037
        %v1059 = vunpack.c.h.b16 %v1037
        %v1060 = vunpack.c.l.b16 %v1038
        %v1061 = vunpack.c.h.b16 %v1038
        %v1062 = vunpack.c.l.b16 %v1039
        %v1063 = vunpack.c.h.b16 %v1039
        %v1064 = vpack.c.b16 %v1048, %v1048
        %v1065 = vpack.c.b16 %v1049, %v1049
        %v1066 = vpack.c.b16 %v1050, %v1050
        %v1067 = vpack.c.b16 %v1051, %v1051
        %v1068 = vpack.c.b16 %v1052, %v1052
        %v1069 = vpack.c.b16 %v1053, %v1053
        %v1070 = vpack.c.b16 %v1054, %v1054
        %v1071 = vpack.c.b16 %v1055, %v1055
        %v1072 = vpack.c.b16 %v1056, %v1056
        %v1073 = vpack.c.b16 %v1057, %v1057
        %v1074 = vpack.c.b16 %v1058, %v1058
        %v1075 = vpack.c.b16 %v1059, %v1059
        %v1076 = vpack.c.b16 %v1060, %v1060
        %v1077 = vpack.c.b16 %v1061, %v1061
        %v1078 = vpack.c.b16 %v1062, %v1062
        %v1079 = vpack.c.b16 %v1063, %v1063
        %1096 = vst [vmem:[%s483] sm:$0xf] %v1064
        %1097 = vst [vmem:[%s483 + $0x4] sm:$0xf] %v1065
        %1098 = vst [vmem:[%s483 + $0x8] sm:$0xf] %v1066
        %1099 = vst [vmem:[%s483 + $0xc] sm:$0xf] %v1067
        %1100 = vst [vmem:[%s483 + $0x10] sm:$0xf] %v1068
        %1101 = vst [vmem:[%s483 + $0x14] sm:$0xf] %v1069
        %1102 = vst [vmem:[%s483 + $0x18] sm:$0xf] %v1070
        %1103 = vst [vmem:[%s483 + $0x1c] sm:$0xf] %v1071
        %1104 = vst [vmem:[%s483 + $0x20] sm:$0xf] %v1072
        %1105 = vst [vmem:[%s483 + $0x24] sm:$0xf] %v1073
        %1106 = vst [vmem:[%s483 + $0x28] sm:$0xf] %v1074
        %1107 = vst [vmem:[%s483 + $0x2c] sm:$0xf] %v1075
        %1108 = vst [vmem:[%s483 + $0x30] sm:$0xf] %v1076
        %1109 = vst [vmem:[%s483 + $0x34] sm:$0xf] %v1077
        %1110 = vst [vmem:[%s483 + $0x38] sm:$0xf] %v1078
        %1111 = vst [vmem:[%s483 + $0x3c] sm:$0xf] %v1079
        %v1112 = vld [vmem:[%s7] sm:$0xff]
        %v1113 = vld [vmem:[%s7 + $0x8] sm:$0xff]
        %v1114 = vld [vmem:[%s7 + $0x10] sm:$0xff]
        %v1115 = vld [vmem:[%s7 + $0x18] sm:$0xff]
        %v1116 = vld [vmem:[%s7 + $0x20] sm:$0xff]
        %v1117 = vld [vmem:[%s7 + $0x28] sm:$0xff]
        %v1118 = vld [vmem:[%s7 + $0x30] sm:$0xff]
        %v1119 = vld [vmem:[%s7 + $0x38] sm:$0xff]
        %v1120 = vld [vmem:[%s7 + $0x40] sm:$0xff]
        %v1121 = vld [vmem:[%s7 + $0x48] sm:$0xff]
        %v1122 = vld [vmem:[%s7 + $0x50] sm:$0xff]
        %v1123 = vld [vmem:[%s7 + $0x58] sm:$0xff]
        %v1124 = vld [vmem:[%s7 + $0x60] sm:$0xff]
        %v1125 = vld [vmem:[%s7 + $0x68] sm:$0xff]
        %v1126 = vld [vmem:[%s7 + $0x70] sm:$0xff]
        %v1127 = vld [vmem:[%s7 + $0x78] sm:$0xff]
        %v1128 = vld [vmem:[#allocation3] sm:$0x3]
        %v1130 = vlaneseq
        %v1131 = vshrl.u32 %v1130, 7
        %v1132 = vsub.s32 0, %v1131
        %v1133 = vrot.slane %v1128, %v1132
        %v1134 = vlaneseq
        %v1135 = vshrl.u32 %v1134, 7
        %v1136 = vsub.s32 1, %v1135
        %v1137 = vrot.slane %v1128, %v1136
        %v1156 = vunpack.c.l.b16 %v1112
        %v1157 = vunpack.c.h.b16 %v1112
        %v1158 = vunpack.c.l.b16 %v1113
        %v1159 = vunpack.c.h.b16 %v1113
        %v1160 = vunpack.c.l.b16 %v1114
        %v1161 = vunpack.c.h.b16 %v1114
        %v1162 = vunpack.c.l.b16 %v1115
        %v1163 = vunpack.c.h.b16 %v1115
        %v1164 = vunpack.c.l.b16 %v1116
        %v1165 = vunpack.c.h.b16 %v1116
        %v1166 = vunpack.c.l.b16 %v1117
        %v1167 = vunpack.c.h.b16 %v1117
        %v1168 = vunpack.c.l.b16 %v1118
        %v1169 = vunpack.c.h.b16 %v1118
        %v1170 = vunpack.c.l.b16 %v1119
        %v1171 = vunpack.c.h.b16 %v1119
        %v1172 = vunpack.c.l.b16 %v1120
        %v1173 = vunpack.c.h.b16 %v1120
        %v1174 = vunpack.c.l.b16 %v1121
        %v1175 = vunpack.c.h.b16 %v1121
        %v1176 = vunpack.c.l.b16 %v1122
        %v1177 = vunpack.c.h.b16 %v1122
        %v1178 = vunpack.c.l.b16 %v1123
        %v1179 = vunpack.c.h.b16 %v1123
        %v1180 = vunpack.c.l.b16 %v1124
        %v1181 = vunpack.c.h.b16 %v1124
        %v1182 = vunpack.c.l.b16 %v1125
        %v1183 = vunpack.c.h.b16 %v1125
        %v1184 = vunpack.c.l.b16 %v1126
        %v1185 = vunpack.c.h.b16 %v1126
        %v1186 = vunpack.c.l.b16 %v1127
        %v1187 = vunpack.c.h.b16 %v1127
        %v1188 = vpack.c.b16 %v1158, %v1156
        %v1189 = vpack.c.b16 %v1159, %v1157
        %v1190 = vpack.c.b16 %v1162, %v1160
        %v1191 = vpack.c.b16 %v1163, %v1161
        %v1192 = vpack.c.b16 %v1166, %v1164
        %v1193 = vpack.c.b16 %v1167, %v1165
        %v1194 = vpack.c.b16 %v1170, %v1168
        %v1195 = vpack.c.b16 %v1171, %v1169
        %v1196 = vpack.c.b16 %v1174, %v1172
        %v1197 = vpack.c.b16 %v1175, %v1173
        %v1198 = vpack.c.b16 %v1178, %v1176
        %v1199 = vpack.c.b16 %v1179, %v1177
        %v1200 = vpack.c.b16 %v1182, %v1180
        %v1201 = vpack.c.b16 %v1183, %v1181
        %v1202 = vpack.c.b16 %v1186, %v1184
        %v1203 = vpack.c.b16 %v1187, %v1185
        %1220 = vmatprep.subr.bf16.mxu0 %v1189
        %1221 = vmatpush1.bf16.msra.mxu0 %v1188
        %1222 = vmatprep.subr.bf16.mxu0 %v1191
        %1223 = vmatpush1.bf16.msra.mxu0 %v1190
        %1224 = vmatprep.subr.bf16.mxu0 %v1193
        %1225 = vmatpush1.bf16.msra.mxu0 %v1192
        %1226 = vmatprep.subr.bf16.mxu0 %v1195
        %1227 = vmatpush1.bf16.msra.mxu0 %v1194
        %1228 = vmatprep.subr.bf16.mxu0 %v1197
        %1229 = vmatpush1.bf16.msra.mxu0 %v1196
        %1230 = vmatprep.subr.bf16.mxu0 %v1199
        %1231 = vmatpush1.bf16.msra.mxu0 %v1198
        %1232 = vmatprep.subr.bf16.mxu0 %v1201
        %1233 = vmatpush1.bf16.msra.mxu0 %v1200
        %1234 = vmatprep.subr.bf16.mxu0 %v1203
        %1235 = vmatpush1.bf16.msra.mxu0 %v1202
        %1236 = vmatprep.subr.bf16.mxu0 0
        %1237 = vmatpush1.bf16.msra.mxu0 0
        %1238 = vmatprep.subr.bf16.mxu0 0
        %1239 = vmatpush1.bf16.msra.mxu0 0
        %1240 = vmatprep.subr.bf16.mxu0 0
        %1241 = vmatpush1.bf16.msra.mxu0 0
        %1242 = vmatprep.subr.bf16.mxu0 0
        %1243 = vmatpush1.bf16.msra.mxu0 0
        %1244 = vmatprep.subr.bf16.mxu0 0
        %1245 = vmatpush1.bf16.msra.mxu0 0
        %1246 = vmatprep.subr.bf16.mxu0 0
        %1247 = vmatpush1.bf16.msra.mxu0 0
        %1248 = vmatprep.subr.bf16.mxu0 0
        %1249 = vmatpush1.bf16.msra.mxu0 0
        %1250 = vmatprep.subr.bf16.mxu0 0
        %1251 = vmatpush1.bf16.msra.mxu0 0
        %1252 = vmatprep.mubr.bf16.mxu0 0
        %1253 = vmatmul.mubr.bf16.gmra.mrb[0].mxu0 %v1032
        %v1254 = vpop.f32.mrb[0].mxu0
        %v1255 = vadd.f32 %v1133, %v1254
        %v1256 = vpop.f32.mrb[0].mxu0
        %v1257 = vadd.f32 %v1137, %v1256
        %v1258 = vpop.f32.mrb[0].mxu0
        %v1259 = vadd.f32 %v1133, %v1258
        %v1260 = vpop.f32.mrb[0].mxu0
        %v1261 = vadd.f32 %v1137, %v1260
        %1262 = vmatprep.mubr.bf16.mxu0 0
        %1263 = vmatmul.mubr.bf16.gmra.mrb[0].mxu0 %v1033
        %v1264 = vpop.f32.mrb[0].mxu0
        %v1265 = vadd.f32 %v1133, %v1264
        %v1266 = vpop.f32.mrb[0].mxu0
        %v1267 = vadd.f32 %v1137, %v1266
        %v1268 = vpop.f32.mrb[0].mxu0
        %v1269 = vadd.f32 %v1133, %v1268
        %v1270 = vpop.f32.mrb[0].mxu0
        %v1271 = vadd.f32 %v1137, %v1270
        %1272 = vmatprep.mubr.bf16.mxu0 0
        %1273 = vmatmul.mubr.bf16.gmra.mrb[0].mxu0 %v1034
        %v1274 = vpop.f32.mrb[0].mxu0
        %v1275 = vadd.f32 %v1133, %v1274
        %v1276 = vpop.f32.mrb[0].mxu0
        %v1277 = vadd.f32 %v1137, %v1276
        %v1278 = vpop.f32.mrb[0].mxu0
        %v1279 = vadd.f32 %v1133, %v1278
        %v1280 = vpop.f32.mrb[0].mxu0
        %v1281 = vadd.f32 %v1137, %v1280
        %1282 = vmatprep.mubr.bf16.mxu0 0
        %1283 = vmatmul.mubr.bf16.gmra.mrb[0].mxu0 %v1035
        %v1284 = vpop.f32.mrb[0].mxu0
        %v1285 = vadd.f32 %v1133, %v1284
        %v1286 = vpop.f32.mrb[0].mxu0
        %v1287 = vadd.f32 %v1137, %v1286
        %v1288 = vpop.f32.mrb[0].mxu0
        %v1289 = vadd.f32 %v1133, %v1288
        %v1290 = vpop.f32.mrb[0].mxu0
        %v1291 = vadd.f32 %v1137, %v1290
        %1292 = vmatprep.mubr.bf16.mxu0 0
        %1293 = vmatmul.mubr.bf16.gmra.mrb[0].mxu0 %v1036
        %v1294 = vpop.f32.mrb[0].mxu0
        %v1295 = vadd.f32 %v1133, %v1294
        %v1296 = vpop.f32.mrb[0].mxu0
        %v1297 = vadd.f32 %v1137, %v1296
        %v1298 = vpop.f32.mrb[0].mxu0
        %v1299 = vadd.f32 %v1133, %v1298
        %v1300 = vpop.f32.mrb[0].mxu0
        %v1301 = vadd.f32 %v1137, %v1300
        %1302 = vmatprep.mubr.bf16.mxu0 0
        %1303 = vmatmul.mubr.bf16.gmra.mrb[0].mxu0 %v1037
        %v1304 = vpop.f32.mrb[0].mxu0
        %v1305 = vadd.f32 %v1133, %v1304
        %v1306 = vpop.f32.mrb[0].mxu0
        %v1307 = vadd.f32 %v1137, %v1306
        %v1308 = vpop.f32.mrb[0].mxu0
        %v1309 = vadd.f32 %v1133, %v1308
        %v1310 = vpop.f32.mrb[0].mxu0
        %v1311 = vadd.f32 %v1137, %v1310
        %1312 = vmatprep.mubr.bf16.mxu0 0
        %1313 = vmatmul.mubr.bf16.gmra.mrb[0].mxu0 %v1038
        %v1314 = vpop.f32.mrb[0].mxu0
        %v1315 = vadd.f32 %v1133, %v1314
        %v1316 = vpop.f32.mrb[0].mxu0
        %v1317 = vadd.f32 %v1137, %v1316
        %v1318 = vpop.f32.mrb[0].mxu0
        %v1319 = vadd.f32 %v1133, %v1318
        %v1320 = vpop.f32.mrb[0].mxu0
        %v1321 = vadd.f32 %v1137, %v1320
        %1322 = vmatprep.mubr.bf16.mxu0 0
        %1323 = vmatmul.mubr.bf16.gmra.mrb[0].mxu0 %v1039
        %v1324 = vpop.f32.mrb[0].mxu0
        %v1325 = vadd.f32 %v1133, %v1324
        %v1326 = vpop.f32.mrb[0].mxu0
        %v1327 = vadd.f32 %v1137, %v1326
        %v1328 = vpop.f32.mrb[0].mxu0
        %v1329 = vadd.f32 %v1133, %v1328
        %v1330 = vpop.f32.mrb[0].mxu0
        %v1331 = vadd.f32 %v1137, %v1330
        %1332 = vdwg.mxu0
        %v1333 = vmax.f32 %v1255, 0.0
        %v1334 = vmax.f32 %v1257, 0.0
        %v1335 = vmax.f32 %v1259, 0.0
        %v1336 = vmax.f32 %v1261, 0.0
        %v1337 = vmax.f32 %v1265, 0.0
        %v1338 = vmax.f32 %v1267, 0.0
        %v1339 = vmax.f32 %v1269, 0.0
        %v1340 = vmax.f32 %v1271, 0.0
        %v1341 = vmax.f32 %v1275, 0.0
        %v1342 = vmax.f32 %v1277, 0.0
        %v1343 = vmax.f32 %v1279, 0.0
        %v1344 = vmax.f32 %v1281, 0.0
        %v1345 = vmax.f32 %v1285, 0.0
        %v1346 = vmax.f32 %v1287, 0.0
        %v1347 = vmax.f32 %v1289, 0.0
        %v1348 = vmax.f32 %v1291, 0.0
        %v1349 = vmax.f32 %v1295, 0.0
        %v1350 = vmax.f32 %v1297, 0.0
        %v1351 = vmax.f32 %v1299, 0.0
        %v1352 = vmax.f32 %v1301, 0.0
        %v1353 = vmax.f32 %v1305, 0.0
        %v1354 = vmax.f32 %v1307, 0.0
        %v1355 = vmax.f32 %v1309, 0.0
        %v1356 = vmax.f32 %v1311, 0.0
        %v1357 = vmax.f32 %v1315, 0.0
        %v1358 = vmax.f32 %v1317, 0.0
        %v1359 = vmax.f32 %v1319, 0.0
        %v1360 = vmax.f32 %v1321, 0.0
        %v1361 = vmax.f32 %v1325, 0.0
        %v1362 = vmax.f32 %v1327, 0.0
        %v1363 = vmax.f32 %v1329, 0.0
        %v1364 = vmax.f32 %v1331, 0.0
        %v1365 = vpack.c.bf16 %v1335, %v1333
        %v1366 = vpack.c.bf16 %v1336, %v1334
        %v1367 = vpack.c.bf16 %v1339, %v1337
        %v1368 = vpack.c.bf16 %v1340, %v1338
        %v1369 = vpack.c.bf16 %v1343, %v1341
        %v1370 = vpack.c.bf16 %v1344, %v1342
        %v1371 = vpack.c.bf16 %v1347, %v1345
        %v1372 = vpack.c.bf16 %v1348, %v1346
        %v1373 = vpack.c.bf16 %v1351, %v1349
        %v1374 = vpack.c.bf16 %v1352, %v1350
        %v1375 = vpack.c.bf16 %v1355, %v1353
        %v1376 = vpack.c.bf16 %v1356, %v1354
        %v1377 = vpack.c.bf16 %v1359, %v1357
        %v1378 = vpack.c.bf16 %v1360, %v1358
        %v1379 = vpack.c.bf16 %v1363, %v1361
        %v1380 = vpack.c.bf16 %v1364, %v1362
        %v1381 = vld [vmem:[%s9] sm:$0xf]
        %v1382 = vld [vmem:[%s9 + $0x4] sm:$0xf]
        %v1383 = vld [vmem:[%s9 + $0x8] sm:$0xf]
        %v1384 = vld [vmem:[%s9 + $0xc] sm:$0xf]
        %v1385 = vld [vmem:[%s9 + $0x10] sm:$0xf]
        %v1386 = vld [vmem:[%s9 + $0x14] sm:$0xf]
        %v1387 = vld [vmem:[%s9 + $0x18] sm:$0xf]
        %v1388 = vld [vmem:[%s9 + $0x1c] sm:$0xf]
        %v1389 = vld [vmem:[%s9 + $0x20] sm:$0xf]
        %v1390 = vld [vmem:[%s9 + $0x24] sm:$0xf]
        %v1391 = vld [vmem:[%s9 + $0x28] sm:$0xf]
        %v1392 = vld [vmem:[%s9 + $0x2c] sm:$0xf]
        %v1393 = vld [vmem:[%s9 + $0x30] sm:$0xf]
        %v1394 = vld [vmem:[%s9 + $0x34] sm:$0xf]
        %v1395 = vld [vmem:[%s9 + $0x38] sm:$0xf]
        %v1396 = vld [vmem:[%s9 + $0x3c] sm:$0xf]
        %v1397 = vld [vmem:[%s9 + $0x40] sm:$0xf]
        %v1398 = vld [vmem:[%s9 + $0x44] sm:$0xf]
        %v1399 = vld [vmem:[%s9 + $0x48] sm:$0xf]
        %v1400 = vld [vmem:[%s9 + $0x4c] sm:$0xf]
        %v1401 = vld [vmem:[%s9 + $0x50] sm:$0xf]
        %v1402 = vld [vmem:[%s9 + $0x54] sm:$0xf]
        %v1403 = vld [vmem:[%s9 + $0x58] sm:$0xf]
        %v1404 = vld [vmem:[%s9 + $0x5c] sm:$0xf]
        %v1405 = vld [vmem:[%s9 + $0x60] sm:$0xf]
        %v1406 = vld [vmem:[%s9 + $0x64] sm:$0xf]
        %v1407 = vld [vmem:[%s9 + $0x68] sm:$0xf]
        %v1408 = vld [vmem:[%s9 + $0x6c] sm:$0xf]
        %v1409 = vld [vmem:[%s9 + $0x70] sm:$0xf]
        %v1410 = vld [vmem:[%s9 + $0x74] sm:$0xf]
        %v1411 = vld [vmem:[%s9 + $0x78] sm:$0xf]
        %v1412 = vld [vmem:[%s9 + $0x7c] sm:$0xf]
        %v1413 = vld [vmem:[#allocation5] sm:$0x1]
        %v1415 = vlaneseq
        %v1416 = vshrl.u32 %v1415, 7
        %v1417 = vsub.s32 0, %v1416
        %v1418 = vrot.slane %v1413, %v1417
        %v1452 = vunpack.c.l.b16 %v1381
        %v1453 = vunpack.c.l.b16 %v1382
        %v1454 = vunpack.c.l.b16 %v1383
        %v1455 = vunpack.c.l.b16 %v1384
        %v1456 = vunpack.c.l.b16 %v1385
        %v1457 = vunpack.c.l.b16 %v1386
        %v1458 = vunpack.c.l.b16 %v1387
        %v1459 = vunpack.c.l.b16 %v1388
        %v1460 = vunpack.c.l.b16 %v1389
        %v1461 = vunpack.c.l.b16 %v1390
        %v1462 = vunpack.c.l.b16 %v1391
        %v1463 = vunpack.c.l.b16 %v1392
        %v1464 = vunpack.c.l.b16 %v1393
        %v1465 = vunpack.c.l.b16 %v1394
        %v1466 = vunpack.c.l.b16 %v1395
        %v1467 = vunpack.c.l.b16 %v1396
        %v1468 = vunpack.c.l.b16 %v1397
        %v1469 = vunpack.c.l.b16 %v1398
        %v1470 = vunpack.c.l.b16 %v1399
        %v1471 = vunpack.c.l.b16 %v1400
        %v1472 = vunpack.c.l.b16 %v1401
        %v1473 = vunpack.c.l.b16 %v1402
        %v1474 = vunpack.c.l.b16 %v1403
        %v1475 = vunpack.c.l.b16 %v1404
        %v1476 = vunpack.c.l.b16 %v1405
        %v1477 = vunpack.c.l.b16 %v1406
        %v1478 = vunpack.c.l.b16 %v1407
        %v1479 = vunpack.c.l.b16 %v1408
        %v1480 = vunpack.c.l.b16 %v1409
        %v1481 = vunpack.c.l.b16 %v1410
        %v1482 = vunpack.c.l.b16 %v1411
        %v1483 = vunpack.c.l.b16 %v1412
        %v1484 = vpack.c.b16 %v1453, %v1452
        %v1485 = vpack.c.b16 %v1455, %v1454
        %v1486 = vpack.c.b16 %v1457, %v1456
        %v1487 = vpack.c.b16 %v1459, %v1458
        %v1488 = vpack.c.b16 %v1461, %v1460
        %v1489 = vpack.c.b16 %v1463, %v1462
        %v1490 = vpack.c.b16 %v1465, %v1464
        %v1491 = vpack.c.b16 %v1467, %v1466
        %v1492 = vpack.c.b16 %v1469, %v1468
        %v1493 = vpack.c.b16 %v1471, %v1470
        %v1494 = vpack.c.b16 %v1473, %v1472
        %v1495 = vpack.c.b16 %v1475, %v1474
        %v1496 = vpack.c.b16 %v1477, %v1476
        %v1497 = vpack.c.b16 %v1479, %v1478
        %v1498 = vpack.c.b16 %v1481, %v1480
        %v1499 = vpack.c.b16 %v1483, %v1482
        %1516 = vmatprep.subr.bf16.mxu0 0
        %1517 = vmatpush1.bf16.msra.mxu0 %v1484
        %1518 = vmatprep.subr.bf16.mxu0 0
        %1519 = vmatpush1.bf16.msra.mxu0 %v1485
        %1520 = vmatprep.subr.bf16.mxu0 0
        %1521 = vmatpush1.bf16.msra.mxu0 %v1486
        %1522 = vmatprep.subr.bf16.mxu0 0
        %1523 = vmatpush1.bf16.msra.mxu0 %v1487
        %1524 = vmatprep.subr.bf16.mxu0 0
        %1525 = vmatpush1.bf16.msra.mxu0 %v1488
        %1526 = vmatprep.subr.bf16.mxu0 0
        %1527 = vmatpush1.bf16.msra.mxu0 %v1489
        %1528 = vmatprep.subr.bf16.mxu0 0
        %1529 = vmatpush1.bf16.msra.mxu0 %v1490
        %1530 = vmatprep.subr.bf16.mxu0 0
        %1531 = vmatpush1.bf16.msra.mxu0 %v1491
        %1532 = vmatprep.subr.bf16.mxu0 0
        %1533 = vmatpush1.bf16.msra.mxu0 %v1492
        %1534 = vmatprep.subr.bf16.mxu0 0
        %1535 = vmatpush1.bf16.msra.mxu0 %v1493
        %1536 = vmatprep.subr.bf16.mxu0 0
        %1537 = vmatpush1.bf16.msra.mxu0 %v1494
        %1538 = vmatprep.subr.bf16.mxu0 0
        %1539 = vmatpush1.bf16.msra.mxu0 %v1495
        %1540 = vmatprep.subr.bf16.mxu0 0
        %1541 = vmatpush1.bf16.msra.mxu0 %v1496
        %1542 = vmatprep.subr.bf16.mxu0 0
        %1543 = vmatpush1.bf16.msra.mxu0 %v1497
        %1544 = vmatprep.subr.bf16.mxu0 0
        %1545 = vmatpush1.bf16.msra.mxu0 %v1498
        %1546 = vmatprep.subr.bf16.mxu0 0
        %1547 = vmatpush1.bf16.msra.mxu0 %v1499
        %1548 = vmatprep.mubr.bf16.mxu0 %v1366
        %1549 = vmatmul.mubr.bf16.gmra.mrb[0].mxu0 %v1365
        %v1550 = vpop.f32.mrb[0].mxu0
        %v1551 = vadd.f32 %v1418, %v1550
        %v1552 = vpop.f32.mrb[0].mxu0
        %v1553 = vpop.f32.mrb[0].mxu0
        %v1554 = vadd.f32 %v1418, %v1553
        %v1555 = vpop.f32.mrb[0].mxu0
        %1556 = vmatprep.mubr.bf16.mxu0 %v1368
        %1557 = vmatmul.mubr.bf16.gmra.mrb[0].mxu0 %v1367
        %v1558 = vpop.f32.mrb[0].mxu0
        %v1559 = vadd.f32 %v1418, %v1558
        %v1560 = vpop.f32.mrb[0].mxu0
        %v1561 = vpop.f32.mrb[0].mxu0
        %v1562 = vadd.f32 %v1418, %v1561
        %v1563 = vpop.f32.mrb[0].mxu0
        %1564 = vmatprep.mubr.bf16.mxu0 %v1370
        %1565 = vmatmul.mubr.bf16.gmra.mrb[0].mxu0 %v1369
        %v1566 = vpop.f32.mrb[0].mxu0
        %v1567 = vadd.f32 %v1418, %v1566
        %v1568 = vpop.f32.mrb[0].mxu0
        %v1569 = vpop.f32.mrb[0].mxu0
        %v1570 = vadd.f32 %v1418, %v1569
        %v1571 = vpop.f32.mrb[0].mxu0
        %1572 = vmatprep.mubr.bf16.mxu0 %v1372
        %1573 = vmatmul.mubr.bf16.gmra.mrb[0].mxu0 %v1371
        %v1574 = vpop.f32.mrb[0].mxu0
        %v1575 = vadd.f32 %v1418, %v1574
        %v1576 = vpop.f32.mrb[0].mxu0
        %v1577 = vpop.f32.mrb[0].mxu0
        %v1578 = vadd.f32 %v1418, %v1577
        %v1579 = vpop.f32.mrb[0].mxu0
        %1580 = vmatprep.mubr.bf16.mxu0 %v1374
        %1581 = vmatmul.mubr.bf16.gmra.mrb[0].mxu0 %v1373
        %v1582 = vpop.f32.mrb[0].mxu0
        %v1583 = vadd.f32 %v1418, %v1582
        %v1584 = vpop.f32.mrb[0].mxu0
        %v1585 = vpop.f32.mrb[0].mxu0
        %v1586 = vadd.f32 %v1418, %v1585
        %v1587 = vpop.f32.mrb[0].mxu0
        %1588 = vmatprep.mubr.bf16.mxu0 %v1376
        %1589 = vmatmul.mubr.bf16.gmra.mrb[0].mxu0 %v1375
        %v1590 = vpop.f32.mrb[0].mxu0
        %v1591 = vadd.f32 %v1418, %v1590
        %v1592 = vpop.f32.mrb[0].mxu0
        %v1593 = vpop.f32.mrb[0].mxu0
        %v1594 = vadd.f32 %v1418, %v1593
        %v1595 = vpop.f32.mrb[0].mxu0
        %1596 = vmatprep.mubr.bf16.mxu0 %v1378
        %1597 = vmatmul.mubr.bf16.gmra.mrb[0].mxu0 %v1377
        %v1598 = vpop.f32.mrb[0].mxu0
        %v1599 = vadd.f32 %v1418, %v1598
        %v1600 = vpop.f32.mrb[0].mxu0
        %v1601 = vpop.f32.mrb[0].mxu0
        %v1602 = vadd.f32 %v1418, %v1601
        %v1603 = vpop.f32.mrb[0].mxu0
        %1604 = vmatprep.mubr.bf16.mxu0 %v1380
        %1605 = vmatmul.mubr.bf16.gmra.mrb[0].mxu0 %v1379
        %v1606 = vpop.f32.mrb[0].mxu0
        %v1607 = vadd.f32 %v1418, %v1606
        %v1608 = vpop.f32.mrb[0].mxu0
        %v1609 = vpop.f32.mrb[0].mxu0
        %v1610 = vadd.f32 %v1418, %v1609
        %v1611 = vpop.f32.mrb[0].mxu0
        %1612 = vdwg.mxu0
        %v1613 = vmax.f32 %v1551, 0.0
        %v1614 = vmax.f32 %v1554, 0.0
        %v1615 = vmax.f32 %v1559, 0.0
        %v1616 = vmax.f32 %v1562, 0.0
        %v1617 = vmax.f32 %v1567, 0.0
        %v1618 = vmax.f32 %v1570, 0.0
        %v1619 = vmax.f32 %v1575, 0.0
        %v1620 = vmax.f32 %v1578, 0.0
        %v1621 = vmax.f32 %v1583, 0.0
        %v1622 = vmax.f32 %v1586, 0.0
        %v1623 = vmax.f32 %v1591, 0.0
        %v1624 = vmax.f32 %v1594, 0.0
        %v1625 = vmax.f32 %v1599, 0.0
        %v1626 = vmax.f32 %v1602, 0.0
        %v1627 = vmax.f32 %v1607, 0.0
        %v1628 = vmax.f32 %v1610, 0.0
        %v1629 = vpack.c.bf16 %v1614, %v1613
        %v1630 = vpack.c.bf16 %v1616, %v1615
        %v1631 = vpack.c.bf16 %v1618, %v1617
        %v1632 = vpack.c.bf16 %v1620, %v1619
        %v1633 = vpack.c.bf16 %v1622, %v1621
        %v1634 = vpack.c.bf16 %v1624, %v1623
        %v1635 = vpack.c.bf16 %v1626, %v1625
        %v1636 = vpack.c.bf16 %v1628, %v1627
        %v1637 = vunpack.c.l.bf16 %v1629
        %v1638 = vunpack.c.h.bf16 %v1629
        %v1639 = vunpack.c.l.bf16 %v1630
        %v1640 = vunpack.c.h.bf16 %v1630
        %v1641 = vunpack.c.l.bf16 %v1631
        %v1642 = vunpack.c.h.bf16 %v1631
        %v1643 = vunpack.c.l.bf16 %v1632
        %v1644 = vunpack.c.h.bf16 %v1632
        %v1645 = vunpack.c.l.bf16 %v1633
        %v1646 = vunpack.c.h.bf16 %v1633
        %v1647 = vunpack.c.l.bf16 %v1634
        %v1648 = vunpack.c.h.bf16 %v1634
        %v1649 = vunpack.c.l.bf16 %v1635
        %v1650 = vunpack.c.h.bf16 %v1635
        %v1651 = vunpack.c.l.bf16 %v1636
        %v1652 = vunpack.c.h.bf16 %v1636
        %v1653 = vmax.f32 %v1637, %v1641
        %v1654 = vmax.f32 %v1638, %v1642
        %v1655 = vmax.f32 %v1639, %v1643
        %v1656 = vmax.f32 %v1640, %v1644
        %v1657 = vmax.f32 %v1653, %v1645
        %v1658 = vmax.f32 %v1654, %v1646
        %v1659 = vmax.f32 %v1655, %v1647
        %v1660 = vmax.f32 %v1656, %v1648
        %v1661 = vmax.f32 %v1657, %v1649
        %v1662 = vmax.f32 %v1658, %v1650
        %v1663 = vmax.f32 %v1659, %v1651
        %v1664 = vmax.f32 %v1660, %v1652
        %v1665 = vmax.f32 %v1661, %v1662
        %v1666 = vmax.f32 %v1663, %v1664
        %v1667 = vmax.f32 %v1665, %v1666
        %v1668 = vrot.slane %v1667, 4
        %v1669 = vmax.f32 %v1667, %v1668
        %v1670 = vrot.slane %v1669, 2
        %v1671 = vmax.f32 %v1669, %v1670
        %v1672 = vrot.slane %v1671, 1
        %v1673 = vmax.f32 %v1671, %v1672
        %p1674 = scmp.eq.s32.totalorder %s31, 0
        // Predicated region
        $region73: #{instance_segmentation_forward.2} parent=63 // pred_check
          %p1675 = pneg %p1674
        $region74: #{instance_segmentation_forward.2} parent=63 // pred_check_branch
          %1677 = sbr.rel (%p1675) target = $region76
        $region75: #{instance_segmentation_forward.2} parent=63 // pred_region
          %1678 = vst [vmem:[#allocation2] sm:$0x1] -inf
        $region76: #{instance_segmentation_forward.2} parent=63 // pred_fallthru
          _
        %v1679 = vld [vmem:[#allocation2] sm:$0x1]
        %v1680 = vmax.f32 %v1679, %v1673
        %1681 = vst [vmem:[#allocation2] sm:$0x1] %v1680
        // Predicated region
        $region77: #{instance_segmentation_forward.2} parent=63 // pred_check
          %p1682 = pneg %p1674
        $region78: #{instance_segmentation_forward.2} parent=63 // pred_check_branch
          %1684 = sbr.rel (%p1682) target = $region80
        $region79: #{instance_segmentation_forward.2} parent=63 // pred_region
          %v1685 = vld [vmem:[#allocation2] sm:$0x1]
          %1686 = vst [vmem:[%s487] sm:$0x1] %v1685
        $region80: #{instance_segmentation_forward.2} parent=63 // pred_fallthru
          _
        %s1687 = smul.u32 16, %s31
        %p1688 = scmp.lt.s32.totalorder %s30, 1
        %s1689 = scalar_select %p1688, %s30, 1
        %p1690 = scmp.lt.s32.totalorder %s1687, 15
        %s1691 = scalar_select %p1690, %s1687, 15
        %s1692 = smul.addr %s1689, 16
        %s1693 = sadd.s32 %s1691, %s1692
        %s1694 = smul.addr %s1693, 4
        %s1695 = scalar_lea.vmem %s11, %s1694
        %p1696 = scmp.lt.s32.totalorder %s30, 1
        %s1697 = scalar_select %p1696, %s30, 1
        %s1698 = scalar_lea.vmem %s12, %s1697
        // Predicated region
        $region81: #{instance_segmentation_forward.2} parent=63 // pred_check
          %p1699 = pneg %p296
        $region82: #{instance_segmentation_forward.2} parent=63 // pred_check_branch
          %1701 = sbr.rel (%p1699) target = $region84
        $region83: #{instance_segmentation_forward.2} parent=63 // pred_region
          %s1702 = smul.u32 16, %s31
        $region84: #{instance_segmentation_forward.2} parent=63 // pred_fallthru
          _
        // Predicated region
        $region85: #{instance_segmentation_forward.2} parent=63 // pred_check
          %p1703 = pneg %p322
        $region86: #{instance_segmentation_forward.2} parent=63 // pred_check_branch
          %1705 = sbr.rel (%p1703) target = $region88
        $region87: #{instance_segmentation_forward.2} parent=63 // pred_region
          _
        $region88: #{instance_segmentation_forward.2} parent=63 // pred_fallthru
          _
      $region64: #{instance_segmentation_forward.2} parent=5 // pred_fallthru
        _
      %p1706 = scmp.le.s32.totalorder 2, %s21
      // Predicated region
      $region89: #{instance_segmentation_forward.2} parent=5 // pred_check
        %p1707 = pneg %p1706
      $region90: #{instance_segmentation_forward.2} parent=5 // pred_check_branch
        %1709 = sbr.rel (%p1707) target = $region92
      $region91: #{instance_segmentation_forward.2} parent=5 // pred_region
        %s1710 = ssub.s32 %s21, 2
        // Predicated region
        $region93: #{instance_segmentation_forward.2} parent=91 // pred_check
          %p1711 = pneg %p302
        $region94: #{instance_segmentation_forward.2} parent=91 // pred_check_branch
          %1713 = sbr.rel (%p1711) target = $region96
        $region95: #{instance_segmentation_forward.2} parent=91 // pred_region
          %s1714 = smul.u32 16, %s33
          %p1715 = scmp.lt.s32.totalorder %s32, 1
          %s1716 = scalar_select %p1715, %s32, 1
          %p1717 = scmp.lt.s32.totalorder %s1714, 15
          %s1718 = scalar_select %p1717, %s1714, 15
          %s1719 = smul.addr %s1716, 16
          %s1720 = sadd.s32 %s1718, %s1719
          %s1721 = smul.addr %s1720, 4
          %s1722 = scalar_lea.vmem %s11, %s1721
        $region96: #{instance_segmentation_forward.2} parent=91 // pred_fallthru
          _
        // Predicated region
        $region97: #{instance_segmentation_forward.2} parent=91 // pred_check
          %p1723 = pneg %p328
        $region98: #{instance_segmentation_forward.2} parent=91 // pred_check_branch
          %1725 = sbr.rel (%p1723) target = $region100
        $region99: #{instance_segmentation_forward.2} parent=91 // pred_region
          %p1726 = scmp.lt.s32.totalorder %s32, 1
          %s1727 = scalar_select %p1726, %s32, 1
          %s1728 = scalar_lea.vmem %s12, %s1727
        $region100: #{instance_segmentation_forward.2} parent=91 // pred_fallthru
          _
      $region92: #{instance_segmentation_forward.2} parent=5 // pred_fallthru
        _
    $region6: #{instance_segmentation_forward.2} parent=1 // loop_footer
      %s25 = sadd.s32 1, %s21
    $region7: #{instance_segmentation_forward.2} parent=1 // loop_footer_branch
      %20 = sbr.rel target = $region3
    $region8: #{instance_segmentation_forward.2} parent=1 // loop_exit
      _
    %1729 = vsyncpa [#allocation4], 1
    %s1730 = scalar_lea.sflag [#allocation4], 1
    %1731 = vsyncpa %s1730, 1
    %1732 = vsyncpa [#allocation6], 1

// kernel: instance_segmentation_forward.3
$region0: #{instance_segmentation_forward.3}
  #allocation0 [shape = 'u32[]', space=smem, size = 0x4, offset = 0x4, fixed_abs, tag = 'smem constant byte address 0x4 - core index']
  #allocation1 [shape = 'u32[144,128]{1,0:T(1,128)}', space=vmem, size = 0x12000, scoped, tag = 'internal scratch']
  %s0 = inlined_call_operand.vmem [shape: bf16[2,128,128], index: 0, kind: input, shape index: {}]
  %s1 = inlined_call_operand.vmem [shape: f32[2,1,512], index: 1, kind: input, shape index: {}]
  %s2 = inlined_call_operand.vmem [shape: bf16[128,512], index: 2, kind: input, shape index: {}]
  %s3 = inlined_call_operand.vmem [shape: bf16[512,256], index: 3, kind: input, shape index: {}]
  %s4 = inlined_call_operand.vmem [shape: f32[1,256], index: 4, kind: input, shape index: {}]
  %s5 = inlined_call_operand.vmem [shape: bf16[256,128], index: 5, kind: input, shape index: {}]
  %s6 = inlined_call_operand.vmem [shape: f32[1,128], index: 6, kind: input, shape index: {}]
  %s7 = inlined_call_operand.vmem [shape: bf16[128,128], index: 7, kind: input, shape index: {}]
  %s8 = inlined_call_operand.vmem [shape: f32[1,128], index: 8, kind: input, shape index: {}]
  %s9 = inlined_call_operand.vmem [shape: bf16[128,128], index: 9, kind: input, shape index: {}]
  %s10 = inlined_call_operand.vmem [shape: f32[1,128], index: 10, kind: input, shape index: {}]
  %s11 = inlined_call_operand.vmem [shape: f32[2,128,128], index: 11, kind: output, shape index: {}]
  %s12 = sld [smem:[#allocation0]]
  $region77: #{instance_segmentation_forward.3} parent=0
    _
  %s14 = ssub.s32 1, %s12
  %s15 = scalar_select 0, %s14, %s12
  loop: start=0, step=1, limit=4
  $region2: #{instance_segmentation_forward.3} parent=0 // loop_pre_header
    _
  $region3: #{instance_segmentation_forward.3} parent=0 // loop_header
    %s17 = sphi 0, %s21
    %p18 = scmp.ge.s32.totalorder %s17, 4
    %s24 = sphi 0, %s36
    %s25 = sphi 0, %s32
    %s26 = sphi 0, %s24
    %s27 = sphi 0, %s25
    %s28 = sphi 0, %s26
    %s29 = sphi 0, %s27
    %s41 = sphi 0, %s43
    %s44 = sphi 0, %s41
    %s45 = sphi 0, %s44
    %s61 = sphi 0, %s45
    %s67 = sphi 0, %s69
    %s70 = sphi 0, %s67
    %s71 = sphi 0, %s70
    %s87 = sphi 0, %s71
    %s91 = sphi 0, %s91
    %s93 = sphi 0, %s91
    %s94 = sphi 0, %s93
    %s108 = sphi 0, %s94
    %s112 = sphi 0, %s112
    %s114 = sphi 0, %s112
    %s115 = sphi 0, %s114
    %s129 = sphi 0, %s115
    %s133 = sphi 0, %s133
    %s135 = sphi 0, %s133
    %s136 = sphi 0, %s135
    %s150 = sphi 0, %s136
    %s154 = sphi 0, %s154
    %s156 = sphi 0, %s154
    %s157 = sphi 0, %s156
    %s171 = sphi 0, %s157
    %s175 = sphi 0, %s175
    %s177 = sphi 0, %s175
    %s178 = sphi 0, %s177
    %s192 = sphi 0, %s178
    %s196 = sphi 0, %s196
    %s198 = sphi 0, %s196
    %s199 = sphi 0, %s198
    %s213 = sphi 0, %s199
    %s217 = sphi 0, %s217
    %s219 = sphi 0, %s217
    %s220 = sphi 0, %s219
    %s234 = sphi 0, %s220
    %s238 = sphi 0, %s238
    %s240 = sphi 0, %s238
    %s241 = sphi 0, %s240
    %s255 = sphi 0, %s241
    %s259 = sphi 0, %s259
    %s261 = sphi 0, %s259
    %s262 = sphi 0, %s261
    %s276 = sphi 0, %s262
    %s284 = sphi 0, %s286
    %s287 = sphi 0, %s284
    %s288 = sphi 0, %s287
    %s304 = sphi 0, %s288
  $region4: #{instance_segmentation_forward.3} parent=0 // loop_header_branch
    %20 = sbr.rel (%p18) target = $region8
  $region5: #{instance_segmentation_forward.3} parent=0 // loop_body
    %s22 = ssub.s32 %s17, 1
    %s23 = ssub.s32 %s17, 2
    %s30 = sadd.s32 1, %s25
    %p31 = scmp.ge.s32.totalorder %s30, 1
    %s32 = scalar_select %p31, 0, %s30
    %s33 = sadd.s32 1, %s24
    %s34 = scalar_select %p31, %s33, %s24
    %p35 = scmp.ge.s32.totalorder %s34, 2
    %s36 = scalar_select %p35, 0, %s34
    %s37 = ssub.s32 %s24, %s36
    %s38 = ssub.s32 %s25, %s32
    %s39 = sor.u32 %s37, %s38
    %p40 = scmp.eq.s32.totalorder %s39, 0
    %s42 = sadd.s32 %s41, 1
    %s43 = scalar_select %p40, %s41, %s42
    %p46 = pneg %p40
    %p47 = scmp.eq.s32.totalorder %s17, 1
    %p48 = por %p46, %p47
    %p49 = scmp.ne.s32.totalorder %s41, %s44
    %p50 = scmp.eq.s32.totalorder %s17, 0
    %p51 = por %p49, %p50
    %p52 = scmp.ne.s32.totalorder %s41, %s44
    %p53 = scmp.eq.s32.totalorder %s22, 1
    %p54 = por %p52, %p53
    %p55 = scmp.ne.s32.totalorder %s44, %s45
    %p56 = scmp.eq.s32.totalorder %s22, 0
    %p57 = por %p55, %p56
    %p58 = scmp.ne.s32.totalorder %s44, %s45
    %p59 = scmp.eq.s32.totalorder %s23, 1
    %p60 = por %p58, %p59
    %p62 = scmp.ne.s32.totalorder %s45, %s61
    %p63 = scmp.eq.s32.totalorder %s23, 0
    %p64 = por %p62, %p63
    %s65 = ssub.s32 %s24, %s36
    %p66 = scmp.eq.s32.totalorder %s65, 0
    %s68 = sadd.s32 %s67, 1
    %s69 = scalar_select %p66, %s67, %s68
    %p72 = pneg %p66
    %p73 = scmp.eq.s32.totalorder %s17, 1
    %p74 = por %p72, %p73
    %p75 = scmp.ne.s32.totalorder %s67, %s70
    %p76 = scmp.eq.s32.totalorder %s17, 0
    %p77 = por %p75, %p76
    %p78 = scmp.ne.s32.totalorder %s67, %s70
    %p79 = scmp.eq.s32.totalorder %s22, 1
    %p80 = por %p78, %p79
    %p81 = scmp.ne.s32.totalorder %s70, %s71
    %p82 = scmp.eq.s32.totalorder %s22, 0
    %p83 = por %p81, %p82
    %p84 = scmp.ne.s32.totalorder %s70, %s71
    %p85 = scmp.eq.s32.totalorder %s23, 1
    %p86 = por %p84, %p85
    %p88 = scmp.ne.s32.totalorder %s71, %s87
    %p89 = scmp.eq.s32.totalorder %s23, 0
    %p90 = por %p88, %p89
    %s92 = sadd.s32 %s91, 1
    %p95 = scmp.eq.s32.totalorder %s17, 1
    %p96 = scmp.ne.s32.totalorder %s91, %s93
    %p97 = scmp.eq.s32.totalorder %s17, 0
    %p98 = por %p96, %p97
    %p99 = scmp.ne.s32.totalorder %s91, %s93
    %p100 = scmp.eq.s32.totalorder %s22, 1
    %p101 = por %p99, %p100
    %p102 = scmp.ne.s32.totalorder %s93, %s94
    %p103 = scmp.eq.s32.totalorder %s22, 0
    %p104 = por %p102, %p103
    %p105 = scmp.ne.s32.totalorder %s93, %s94
    %p106 = scmp.eq.s32.totalorder %s23, 1
    %p107 = por %p105, %p106
    %p109 = scmp.ne.s32.totalorder %s94, %s108
    %p110 = scmp.eq.s32.totalorder %s23, 0
    %p111 = por %p109, %p110
    %s113 = sadd.s32 %s112, 1
    %p116 = scmp.eq.s32.totalorder %s17, 1
    %p117 = scmp.ne.s32.totalorder %s112, %s114
    %p118 = scmp.eq.s32.totalorder %s17, 0
    %p119 = por %p117, %p118
    %p120 = scmp.ne.s32.totalorder %s112, %s114
    %p121 = scmp.eq.s32.totalorder %s22, 1
    %p122 = por %p120, %p121
    %p123 = scmp.ne.s32.totalorder %s114, %s115
    %p124 = scmp.eq.s32.totalorder %s22, 0
    %p125 = por %p123, %p124
    %p126 = scmp.ne.s32.totalorder %s114, %s115
    %p127 = scmp.eq.s32.totalorder %s23, 1
    %p128 = por %p126, %p127
    %p130 = scmp.ne.s32.totalorder %s115, %s129
    %p131 = scmp.eq.s32.totalorder %s23, 0
    %p132 = por %p130, %p131
    %s134 = sadd.s32 %s133, 1
    %p137 = scmp.eq.s32.totalorder %s17, 1
    %p138 = scmp.ne.s32.totalorder %s133, %s135
    %p139 = scmp.eq.s32.totalorder %s17, 0
    %p140 = por %p138, %p139
    %p141 = scmp.ne.s32.totalorder %s133, %s135
    %p142 = scmp.eq.s32.totalorder %s22, 1
    %p143 = por %p141, %p142
    %p144 = scmp.ne.s32.totalorder %s135, %s136
    %p145 = scmp.eq.s32.totalorder %s22, 0
    %p146 = por %p144, %p145
    %p147 = scmp.ne.s32.totalorder %s135, %s136
    %p148 = scmp.eq.s32.totalorder %s23, 1
    %p149 = por %p147, %p148
    %p151 = scmp.ne.s32.totalorder %s136, %s150
    %p152 = scmp.eq.s32.totalorder %s23, 0
    %p153 = por %p151, %p152
    %s155 = sadd.s32 %s154, 1
    %p158 = scmp.eq.s32.totalorder %s17, 1
    %p159 = scmp.ne.s32.totalorder %s154, %s156
    %p160 = scmp.eq.s32.totalorder %s17, 0
    %p161 = por %p159, %p160
    %p162 = scmp.ne.s32.totalorder %s154, %s156
    %p163 = scmp.eq.s32.totalorder %s22, 1
    %p164 = por %p162, %p163
    %p165 = scmp.ne.s32.totalorder %s156, %s157
    %p166 = scmp.eq.s32.totalorder %s22, 0
    %p167 = por %p165, %p166
    %p168 = scmp.ne.s32.totalorder %s156, %s157
    %p169 = scmp.eq.s32.totalorder %s23, 1
    %p170 = por %p168, %p169
    %p172 = scmp.ne.s32.totalorder %s157, %s171
    %p173 = scmp.eq.s32.totalorder %s23, 0
    %p174 = por %p172, %p173
    %s176 = sadd.s32 %s175, 1
    %p179 = scmp.eq.s32.totalorder %s17, 1
    %p180 = scmp.ne.s32.totalorder %s175, %s177
    %p181 = scmp.eq.s32.totalorder %s17, 0
    %p182 = por %p180, %p181
    %p183 = scmp.ne.s32.totalorder %s175, %s177
    %p184 = scmp.eq.s32.totalorder %s22, 1
    %p185 = por %p183, %p184
    %p186 = scmp.ne.s32.totalorder %s177, %s178
    %p187 = scmp.eq.s32.totalorder %s22, 0
    %p188 = por %p186, %p187
    %p189 = scmp.ne.s32.totalorder %s177, %s178
    %p190 = scmp.eq.s32.totalorder %s23, 1
    %p191 = por %p189, %p190
    %p193 = scmp.ne.s32.totalorder %s178, %s192
    %p194 = scmp.eq.s32.totalorder %s23, 0
    %p195 = por %p193, %p194
    %s197 = sadd.s32 %s196, 1
    %p200 = scmp.eq.s32.totalorder %s17, 1
    %p201 = scmp.ne.s32.totalorder %s196, %s198
    %p202 = scmp.eq.s32.totalorder %s17, 0
    %p203 = por %p201, %p202
    %p204 = scmp.ne.s32.totalorder %s196, %s198
    %p205 = scmp.eq.s32.totalorder %s22, 1
    %p206 = por %p204, %p205
    %p207 = scmp.ne.s32.totalorder %s198, %s199
    %p208 = scmp.eq.s32.totalorder %s22, 0
    %p209 = por %p207, %p208
    %p210 = scmp.ne.s32.totalorder %s198, %s199
    %p211 = scmp.eq.s32.totalorder %s23, 1
    %p212 = por %p210, %p211
    %p214 = scmp.ne.s32.totalorder %s199, %s213
    %p215 = scmp.eq.s32.totalorder %s23, 0
    %p216 = por %p214, %p215
    %s218 = sadd.s32 %s217, 1
    %p221 = scmp.eq.s32.totalorder %s17, 1
    %p222 = scmp.ne.s32.totalorder %s217, %s219
    %p223 = scmp.eq.s32.totalorder %s17, 0
    %p224 = por %p222, %p223
    %p225 = scmp.ne.s32.totalorder %s217, %s219
    %p226 = scmp.eq.s32.totalorder %s22, 1
    %p227 = por %p225, %p226
    %p228 = scmp.ne.s32.totalorder %s219, %s220
    %p229 = scmp.eq.s32.totalorder %s22, 0
    %p230 = por %p228, %p229
    %p231 = scmp.ne.s32.totalorder %s219, %s220
    %p232 = scmp.eq.s32.totalorder %s23, 1
    %p233 = por %p231, %p232
    %p235 = scmp.ne.s32.totalorder %s220, %s234
    %p236 = scmp.eq.s32.totalorder %s23, 0
    %p237 = por %p235, %p236
    %s239 = sadd.s32 %s238, 1
    %p242 = scmp.eq.s32.totalorder %s17, 1
    %p243 = scmp.ne.s32.totalorder %s238, %s240
    %p244 = scmp.eq.s32.totalorder %s17, 0
    %p245 = por %p243, %p244
    %p246 = scmp.ne.s32.totalorder %s238, %s240
    %p247 = scmp.eq.s32.totalorder %s22, 1
    %p248 = por %p246, %p247
    %p249 = scmp.ne.s32.totalorder %s240, %s241
    %p250 = scmp.eq.s32.totalorder %s22, 0
    %p251 = por %p249, %p250
    %p252 = scmp.ne.s32.totalorder %s240, %s241
    %p253 = scmp.eq.s32.totalorder %s23, 1
    %p254 = por %p252, %p253
    %p256 = scmp.ne.s32.totalorder %s241, %s255
    %p257 = scmp.eq.s32.totalorder %s23, 0
    %p258 = por %p256, %p257
    %s260 = sadd.s32 %s259, 1
    %p263 = scmp.eq.s32.totalorder %s17, 1
    %p264 = scmp.ne.s32.totalorder %s259, %s261
    %p265 = scmp.eq.s32.totalorder %s17, 0
    %p266 = por %p264, %p265
    %p267 = scmp.ne.s32.totalorder %s259, %s261
    %p268 = scmp.eq.s32.totalorder %s22, 1
    %p269 = por %p267, %p268
    %p270 = scmp.ne.s32.totalorder %s261, %s262
    %p271 = scmp.eq.s32.totalorder %s22, 0
    %p272 = por %p270, %p271
    %p273 = scmp.ne.s32.totalorder %s261, %s262
    %p274 = scmp.eq.s32.totalorder %s23, 1
    %p275 = por %p273, %p274
    %p277 = scmp.ne.s32.totalorder %s262, %s276
    %p278 = scmp.eq.s32.totalorder %s23, 0
    %p279 = por %p277, %p278
    %s280 = ssub.s32 %s24, %s36
    %s281 = ssub.s32 %s25, %s32
    %s282 = sor.u32 %s280, %s281
    %p283 = scmp.eq.s32.totalorder %s282, 0
    %s285 = sadd.s32 %s284, 1
    %s286 = scalar_select %p283, %s284, %s285
    %p289 = pneg %p283
    %p290 = scmp.eq.s32.totalorder %s17, 1
    %p291 = por %p289, %p290
    %p292 = scmp.ne.s32.totalorder %s284, %s287
    %p293 = scmp.eq.s32.totalorder %s17, 0
    %p294 = por %p292, %p293
    %p295 = scmp.ne.s32.totalorder %s284, %s287
    %p296 = scmp.eq.s32.totalorder %s22, 1
    %p297 = por %p295, %p296
    %p298 = scmp.ne.s32.totalorder %s287, %s288
    %p299 = scmp.eq.s32.totalorder %s22, 0
    %p300 = por %p298, %p299
    %p301 = scmp.ne.s32.totalorder %s287, %s288
    %p302 = scmp.eq.s32.totalorder %s23, 1
    %p303 = por %p301, %p302
    %p305 = scmp.ne.s32.totalorder %s288, %s304
    %p306 = scmp.eq.s32.totalorder %s23, 0
    %p307 = por %p305, %p306
    %p308 = scmp.le.s32.totalorder 1, %s17
    %p309 = scmp.lt.s32.totalorder %s17, 3
    %p310 = pnand %p308, %p309
    %p311 = pneg %p310
    // Predicated region
    $region9: #{instance_segmentation_forward.3} parent=5 // pred_check
      _
    $region10: #{instance_segmentation_forward.3} parent=5 // pred_check_branch
      %313 = sbr.rel (%p310) target = $region12
    $region11: #{instance_segmentation_forward.3} parent=5 // pred_region
      %s314 = ssub.s32 %s17, 1
      // Predicated region
      $region13: #{instance_segmentation_forward.3} parent=11 // pred_check
        %p315 = pneg %p104
      $region14: #{instance_segmentation_forward.3} parent=11 // pred_check_branch
        %317 = sbr.rel (%p315) target = $region16
      $region15: #{instance_segmentation_forward.3} parent=11 // pred_region
        _
      $region16: #{instance_segmentation_forward.3} parent=11 // pred_fallthru
        _
      // Predicated region
      $region17: #{instance_segmentation_forward.3} parent=11 // pred_check
        %p318 = pneg %p125
      $region18: #{instance_segmentation_forward.3} parent=11 // pred_check_branch
        %320 = sbr.rel (%p318) target = $region20
      $region19: #{instance_segmentation_forward.3} parent=11 // pred_region
        _
      $region20: #{instance_segmentation_forward.3} parent=11 // pred_fallthru
        _
      // Predicated region
      $region21: #{instance_segmentation_forward.3} parent=11 // pred_check
        %p321 = pneg %p146
      $region22: #{instance_segmentation_forward.3} parent=11 // pred_check_branch
        %323 = sbr.rel (%p321) target = $region24
      $region23: #{instance_segmentation_forward.3} parent=11 // pred_region
        _
      $region24: #{instance_segmentation_forward.3} parent=11 // pred_fallthru
        _
      // Predicated region
      $region25: #{instance_segmentation_forward.3} parent=11 // pred_check
        %p324 = pneg %p167
      $region26: #{instance_segmentation_forward.3} parent=11 // pred_check_branch
        %326 = sbr.rel (%p324) target = $region28
      $region27: #{instance_segmentation_forward.3} parent=11 // pred_region
        _
      $region28: #{instance_segmentation_forward.3} parent=11 // pred_fallthru
        _
      // Predicated region
      $region29: #{instance_segmentation_forward.3} parent=11 // pred_check
        %p327 = pneg %p188
      $region30: #{instance_segmentation_forward.3} parent=11 // pred_check_branch
        %329 = sbr.rel (%p327) target = $region32
      $region31: #{instance_segmentation_forward.3} parent=11 // pred_region
        _
      $region32: #{instance_segmentation_forward.3} parent=11 // pred_fallthru
        _
      // Predicated region
      $region33: #{instance_segmentation_forward.3} parent=11 // pred_check
        %p330 = pneg %p209
      $region34: #{instance_segmentation_forward.3} parent=11 // pred_check_branch
        %332 = sbr.rel (%p330) target = $region36
      $region35: #{instance_segmentation_forward.3} parent=11 // pred_region
        _
      $region36: #{instance_segmentation_forward.3} parent=11 // pred_fallthru
        _
      // Predicated region
      $region37: #{instance_segmentation_forward.3} parent=11 // pred_check
        %p333 = pneg %p230
      $region38: #{instance_segmentation_forward.3} parent=11 // pred_check_branch
        %335 = sbr.rel (%p333) target = $region40
      $region39: #{instance_segmentation_forward.3} parent=11 // pred_region
        _
      $region40: #{instance_segmentation_forward.3} parent=11 // pred_fallthru
        _
      // Predicated region
      $region41: #{instance_segmentation_forward.3} parent=11 // pred_check
        %p336 = pneg %p251
      $region42: #{instance_segmentation_forward.3} parent=11 // pred_check_branch
        %338 = sbr.rel (%p336) target = $region44
      $region43: #{instance_segmentation_forward.3} parent=11 // pred_region
        _
      $region44: #{instance_segmentation_forward.3} parent=11 // pred_fallthru
        _
      // Predicated region
      $region45: #{instance_segmentation_forward.3} parent=11 // pred_check
        %p339 = pneg %p272
      $region46: #{instance_segmentation_forward.3} parent=11 // pred_check_branch
        %341 = sbr.rel (%p339) target = $region48
      $region47: #{instance_segmentation_forward.3} parent=11 // pred_region
        _
      $region48: #{instance_segmentation_forward.3} parent=11 // pred_fallthru
        _
    $region12: #{instance_segmentation_forward.3} parent=5 // pred_fallthru
      _
    %p342 = scmp.lt.s32.totalorder %s17, 2
    // Predicated region
    $region49: #{instance_segmentation_forward.3} parent=5 // pred_check
      %p343 = pneg %p342
    $region50: #{instance_segmentation_forward.3} parent=5 // pred_check_branch
      %345 = sbr.rel (%p343) target = $region52
    $region51: #{instance_segmentation_forward.3} parent=5 // pred_region
      // Predicated region
      $region53: #{instance_segmentation_forward.3} parent=51 // pred_check
        %p346 = pneg %p51
      $region54: #{instance_segmentation_forward.3} parent=51 // pred_check_branch
        %348 = sbr.rel (%p346) target = $region56
      $region55: #{instance_segmentation_forward.3} parent=51 // pred_region
        %s349 = smul.u32 16, %s25
        %p350 = scmp.lt.s32.totalorder %s24, 1
        %s351 = scalar_select %p350, %s24, 1
        %p352 = scmp.lt.s32.totalorder %s349, 15
        %s353 = scalar_select %p352, %s349, 15
        %s354 = smul.addr %s351, 16
        %s355 = sadd.s32 %s353, %s354
        %s356 = smul.addr %s355, 4
        %s357 = scalar_lea.vmem %s0, %s356
        %s358 = smul.u32 16, %s25
      $region56: #{instance_segmentation_forward.3} parent=51 // pred_fallthru
        _
      // Predicated region
      $region57: #{instance_segmentation_forward.3} parent=51 // pred_check
        %p359 = pneg %p77
      $region58: #{instance_segmentation_forward.3} parent=51 // pred_check_branch
        %361 = sbr.rel (%p359) target = $region60
      $region59: #{instance_segmentation_forward.3} parent=51 // pred_region
        %p362 = scmp.lt.s32.totalorder %s24, 1
        %s363 = scalar_select %p362, %s24, 1
        %s364 = smul.addr %s363, 4
        %s365 = scalar_lea.vmem %s1, %s364
      $region60: #{instance_segmentation_forward.3} parent=51 // pred_fallthru
        _
    $region52: #{instance_segmentation_forward.3} parent=5 // pred_fallthru
      _
    %p366 = scmp.le.s32.totalorder 1, %s17
    %p367 = scmp.lt.s32.totalorder %s17, 3
    %p368 = pnand %p366, %p367
    %p369 = pneg %p368
    // Predicated region
    $region61: #{instance_segmentation_forward.3} parent=5 // pred_check
      _
    $region62: #{instance_segmentation_forward.3} parent=5 // pred_check_branch
      %371 = sbr.rel (%p368) target = $region64
    $region63: #{instance_segmentation_forward.3} parent=5 // pred_region
      %s372 = ssub.s32 %s17, 1
      %s373 = smul.u32 16, %s27
      %p374 = scmp.lt.s32.totalorder %s26, 1
      %s375 = scalar_select %p374, %s26, 1
      %p376 = scmp.lt.s32.totalorder %s373, 15
      %s377 = scalar_select %p376, %s373, 15
      %s378 = smul.addr %s375, 16
      %s379 = sadd.s32 %s377, %s378
      %s380 = smul.addr %s379, 4
      %s381 = scalar_lea.vmem %s0, %s380
      %p382 = pneg %p57
      %p383 = pneg %p54
      %p384 = scmp.lt.s32.totalorder %s26, 1
      %s385 = scalar_select %p384, %s26, 1
      %s386 = smul.addr %s385, 4
      %s387 = scalar_lea.vmem %s1, %s386
      %p388 = pneg %p83
      %p389 = pneg %p80
      %p390 = pneg %p104
      %p391 = pneg %p101
      %p392 = pneg %p125
      %p393 = pneg %p122
      %p394 = pneg %p146
      %p395 = pneg %p143
      %p396 = pneg %p167
      %p397 = pneg %p164
      %p398 = pneg %p188
      %p399 = pneg %p185
      %p400 = pneg %p209
      %p401 = pneg %p206
      %p402 = pneg %p230
      %p403 = pneg %p227
      %p404 = pneg %p251
      %p405 = pneg %p248
      %p406 = pneg %p272
      %p407 = pneg %p269
      %p408 = pneg %p300
      %p409 = pneg %p297
      %s410 = smul.u32 16, %s27
      %p411 = scmp.lt.s32.totalorder %s26, 1
      %s412 = scalar_select %p411, %s26, 1
      %p413 = scmp.lt.s32.totalorder %s410, 15
      %s414 = scalar_select %p413, %s410, 15
      %s415 = smul.addr %s412, 16
      %s416 = sadd.s32 %s414, %s415
      %s417 = smul.addr %s416, 8
      %s418 = scalar_lea.vmem %s11, %s417
      %s419 = smul.u32 16, %s27
      %p420 = scmp.lt.s32.totalorder %s26, 1
      %s421 = scalar_select %p420, %s26, 1
      %p422 = scmp.lt.s32.totalorder %s419, 15
      %s423 = scalar_select %p422, %s419, 15
      %s424 = smul.addr %s421, 16
      %s425 = sadd.s32 %s423, %s424
      %s426 = smul.addr %s425, 4
      %s427 = scalar_lea.vmem %s0, %s426
      %s428 = smul.u32 16, %s27
      %p429 = scmp.lt.s32.totalorder %s26, 1
      %s430 = scalar_select %p429, %s26, 1
      %s431 = smul.addr %s430, 4
      %s432 = scalar_lea.vmem %s1, %s431
      %s433 = smul.u32 16, %s27
      %p434 = scmp.lt.s32.totalorder %s26, 1
      %s435 = scalar_select %p434, %s26, 1
      %p436 = scmp.lt.s32.totalorder %s433, 15
      %s437 = scalar_select %p436, %s433, 15
      %s438 = smul.addr %s435, 16
      %s439 = sadd.s32 %s437, %s438
      %s440 = smul.addr %s439, 8
      %s441 = scalar_lea.vmem %s11, %s440
      %s442 = smul.u32 16, %s27
      %v444 = vld [vmem:[%s427] sm:$0xf]
      %v445 = vld [vmem:[%s427 + $0x4] sm:$0xf]
      %v446 = vld [vmem:[%s427 + $0x8] sm:$0xf]
      %v447 = vld [vmem:[%s427 + $0xc] sm:$0xf]
      %v448 = vld [vmem:[%s427 + $0x10] sm:$0xf]
      %v449 = vld [vmem:[%s427 + $0x14] sm:$0xf]
      %v450 = vld [vmem:[%s427 + $0x18] sm:$0xf]
      %v451 = vld [vmem:[%s427 + $0x1c] sm:$0xf]
      %v452 = vld [vmem:[%s427 + $0x20] sm:$0xf]
      %v453 = vld [vmem:[%s427 + $0x24] sm:$0xf]
      %v454 = vld [vmem:[%s427 + $0x28] sm:$0xf]
      %v455 = vld [vmem:[%s427 + $0x2c] sm:$0xf]
      %v456 = vld [vmem:[%s427 + $0x30] sm:$0xf]
      %v457 = vld [vmem:[%s427 + $0x34] sm:$0xf]
      %v458 = vld [vmem:[%s427 + $0x38] sm:$0xf]
      %v459 = vld [vmem:[%s427 + $0x3c] sm:$0xf]
      %v460 = vld [vmem:[%s2] sm:$0xff]
      %v461 = vld [vmem:[%s2 + $0x8] sm:$0xff]
      %v462 = vld [vmem:[%s2 + $0x10] sm:$0xff]
      %v463 = vld [vmem:[%s2 + $0x18] sm:$0xff]
      %v464 = vld [vmem:[%s2 + $0x20] sm:$0xff]
      %v465 = vld [vmem:[%s2 + $0x28] sm:$0xff]
      %v466 = vld [vmem:[%s2 + $0x30] sm:$0xff]
      %v467 = vld [vmem:[%s2 + $0x38] sm:$0xff]
      %v468 = vld [vmem:[%s2 + $0x40] sm:$0xff]
      %v469 = vld [vmem:[%s2 + $0x48] sm:$0xff]
      %v470 = vld [vmem:[%s2 + $0x50] sm:$0xff]
      %v471 = vld [vmem:[%s2 + $0x58] sm:$0xff]
      %v472 = vld [vmem:[%s2 + $0x60] sm:$0xff]
      %v473 = vld [vmem:[%s2 + $0x68] sm:$0xff]
      %v474 = vld [vmem:[%s2 + $0x70] sm:$0xff]
      %v475 = vld [vmem:[%s2 + $0x78] sm:$0xff]
      %v476 = vld [vmem:[%s2 + $0x80] sm:$0xff]
      %v477 = vld [vmem:[%s2 + $0x88] sm:$0xff]
      %v478 = vld [vmem:[%s2 + $0x90] sm:$0xff]
      %v479 = vld [vmem:[%s2 + $0x98] sm:$0xff]
      %v480 = vld [vmem:[%s2 + $0xa0] sm:$0xff]
      %v481 = vld [vmem:[%s2 + $0xa8] sm:$0xff]
      %v482 = vld [vmem:[%s2 + $0xb0] sm:$0xff]
      %v483 = vld [vmem:[%s2 + $0xb8] sm:$0xff]
      %v484 = vld [vmem:[%s2 + $0xc0] sm:$0xff]
      %v485 = vld [vmem:[%s2 + $0xc8] sm:$0xff]
      %v486 = vld [vmem:[%s2 + $0xd0] sm:$0xff]
      %v487 = vld [vmem:[%s2 + $0xd8] sm:$0xff]
      %v488 = vld [vmem:[%s2 + $0xe0] sm:$0xff]
      %v489 = vld [vmem:[%s2 + $0xe8] sm:$0xff]
      %v490 = vld [vmem:[%s2 + $0xf0] sm:$0xff]
      %v491 = vld [vmem:[%s2 + $0xf8] sm:$0xff]
      %v492 = vld [vmem:[%s432] sm:$0xf]
      %v494 = vlaneseq
      %v495 = vshrl.u32 %v494, 7
      %v496 = vsub.s32 0, %v495
      %v497 = vrot.slane %v492, %v496
      %v498 = vlaneseq
      %v499 = vshrl.u32 %v498, 7
      %v500 = vsub.s32 1, %v499
      %v501 = vrot.slane %v492, %v500
      %v502 = vlaneseq
      %v503 = vshrl.u32 %v502, 7
      %v504 = vsub.s32 2, %v503
      %v505 = vrot.slane %v492, %v504
      %v506 = vlaneseq
      %v507 = vshrl.u32 %v506, 7
      %v508 = vsub.s32 3, %v507
      %v509 = vrot.slane %v492, %v508
      %v530 = vunpack.c.l.b16 %v444
      %v531 = vunpack.c.l.b16 %v445
      %v532 = vunpack.c.l.b16 %v446
      %v533 = vunpack.c.l.b16 %v447
      %v534 = vunpack.c.l.b16 %v448
      %v535 = vunpack.c.l.b16 %v449
      %v536 = vunpack.c.l.b16 %v450
      %v537 = vunpack.c.l.b16 %v451
      %v538 = vunpack.c.l.b16 %v452
      %v539 = vunpack.c.l.b16 %v453
      %v540 = vunpack.c.l.b16 %v454
      %v541 = vunpack.c.l.b16 %v455
      %v542 = vunpack.c.l.b16 %v456
      %v543 = vunpack.c.l.b16 %v457
      %v544 = vunpack.c.l.b16 %v458
      %v545 = vunpack.c.l.b16 %v459
      %v546 = vpack.c.b16 %v531, %v530
      %v547 = vpack.c.b16 %v533, %v532
      %v548 = vpack.c.b16 %v535, %v534
      %v549 = vpack.c.b16 %v537, %v536
      %v550 = vpack.c.b16 %v539, %v538
      %v551 = vpack.c.b16 %v541, %v540
      %v552 = vpack.c.b16 %v543, %v542
      %v553 = vpack.c.b16 %v545, %v544
      %v594 = vunpack.c.l.b16 %v460
      %v595 = vunpack.c.h.b16 %v460
      %v596 = vunpack.c.l.b16 %v461
      %v597 = vunpack.c.h.b16 %v461
      %v598 = vunpack.c.l.b16 %v462
      %v599 = vunpack.c.h.b16 %v462
      %v600 = vunpack.c.l.b16 %v463
      %v601 = vunpack.c.h.b16 %v463
      %v602 = vunpack.c.l.b16 %v464
      %v603 = vunpack.c.h.b16 %v464
      %v604 = vunpack.c.l.b16 %v465
      %v605 = vunpack.c.h.b16 %v465
      %v606 = vunpack.c.l.b16 %v466
      %v607 = vunpack.c.h.b16 %v466
      %v608 = vunpack.c.l.b16 %v467
      %v609 = vunpack.c.h.b16 %v467
      %v610 = vunpack.c.l.b16 %v468
      %v611 = vunpack.c.h.b16 %v468
      %v612 = vunpack.c.l.b16 %v469
      %v613 = vunpack.c.h.b16 %v469
      %v614 = vunpack.c.l.b16 %v470
      %v615 = vunpack.c.h.b16 %v470
      %v616 = vunpack.c.l.b16 %v471
      %v617 = vunpack.c.h.b16 %v471
      %v618 = vunpack.c.l.b16 %v472
      %v619 = vunpack.c.h.b16 %v472
      %v620 = vunpack.c.l.b16 %v473
      %v621 = vunpack.c.h.b16 %v473
      %v622 = vunpack.c.l.b16 %v474
      %v623 = vunpack.c.h.b16 %v474
      %v624 = vunpack.c.l.b16 %v475
      %v625 = vunpack.c.h.b16 %v475
      %v626 = vunpack.c.l.b16 %v476
      %v627 = vunpack.c.h.b16 %v476
      %v628 = vunpack.c.l.b16 %v477
      %v629 = vunpack.c.h.b16 %v477
      %v630 = vunpack.c.l.b16 %v478
      %v631 = vunpack.c.h.b16 %v478
      %v632 = vunpack.c.l.b16 %v479
      %v633 = vunpack.c.h.b16 %v479
      %v634 = vunpack.c.l.b16 %v480
      %v635 = vunpack.c.h.b16 %v480
      %v636 = vunpack.c.l.b16 %v481
      %v637 = vunpack.c.h.b16 %v481
      %v638 = vunpack.c.l.b16 %v482
      %v639 = vunpack.c.h.b16 %v482
      %v640 = vunpack.c.l.b16 %v483
      %v641 = vunpack.c.h.b16 %v483
      %v642 = vunpack.c.l.b16 %v484
      %v643 = vunpack.c.h.b16 %v484
      %v644 = vunpack.c.l.b16 %v485
      %v645 = vunpack.c.h.b16 %v485
      %v646 = vunpack.c.l.b16 %v486
      %v647 = vunpack.c.h.b16 %v486
      %v648 = vunpack.c.l.b16 %v487
      %v649 = vunpack.c.h.b16 %v487
      %v650 = vunpack.c.l.b16 %v488
      %v651 = vunpack.c.h.b16 %v488
      %v652 = vunpack.c.l.b16 %v489
      %v653 = vunpack.c.h.b16 %v489
      %v654 = vunpack.c.l.b16 %v490
      %v655 = vunpack.c.h.b16 %v490
      %v656 = vunpack.c.l.b16 %v491
      %v657 = vunpack.c.h.b16 %v491
      %v658 = vpack.c.b16 %v598, %v594
      %v659 = vpack.c.b16 %v599, %v595
      %v660 = vpack.c.b16 %v600, %v596
      %v661 = vpack.c.b16 %v601, %v597
      %v662 = vpack.c.b16 %v606, %v602
      %v663 = vpack.c.b16 %v607, %v603
      %v664 = vpack.c.b16 %v608, %v604
      %v665 = vpack.c.b16 %v609, %v605
      %v666 = vpack.c.b16 %v614, %v610
      %v667 = vpack.c.b16 %v615, %v611
      %v668 = vpack.c.b16 %v616, %v612
      %v669 = vpack.c.b16 %v617, %v613
      %v670 = vpack.c.b16 %v622, %v618
      %v671 = vpack.c.b16 %v623, %v619
      %v672 = vpack.c.b16 %v624, %v620
      %v673 = vpack.c.b16 %v625, %v621
      %v674 = vpack.c.b16 %v630, %v626
      %v675 = vpack.c.b16 %v631, %v627
      %v676 = vpack.c.b16 %v632, %v628
      %v677 = vpack.c.b16 %v633, %v629
      %v678 = vpack.c.b16 %v638, %v634
      %v679 = vpack.c.b16 %v639, %v635
      %v680 = vpack.c.b16 %v640, %v636
      %v681 = vpack.c.b16 %v641, %v637
      %v682 = vpack.c.b16 %v646, %v642
      %v683 = vpack.c.b16 %v647, %v643
      %v684 = vpack.c.b16 %v648, %v644
      %v685 = vpack.c.b16 %v649, %v645
      %v686 = vpack.c.b16 %v654, %v650
      %v687 = vpack.c.b16 %v655, %v651
      %v688 = vpack.c.b16 %v656, %v652
      %v689 = vpack.c.b16 %v657, %v653
      %722 = vmatprep.subr.bf16.mxu0 %v659
      %723 = vmatpush1.bf16.msra.mxu0 %v658
      %724 = vmatprep.subr.bf16.mxu0 %v663
      %725 = vmatpush1.bf16.msra.mxu0 %v662
      %726 = vmatprep.subr.bf16.mxu0 %v667
      %727 = vmatpush1.bf16.msra.mxu0 %v666
      %728 = vmatprep.subr.bf16.mxu0 %v671
      %729 = vmatpush1.bf16.msra.mxu0 %v670
      %730 = vmatprep.subr.bf16.mxu0 %v675
      %731 = vmatpush1.bf16.msra.mxu0 %v674
      %732 = vmatprep.subr.bf16.mxu0 %v679
      %733 = vmatpush1.bf16.msra.mxu0 %v678
      %734 = vmatprep.subr.bf16.mxu0 %v683
      %735 = vmatpush1.bf16.msra.mxu0 %v682
      %736 = vmatprep.subr.bf16.mxu0 %v687
      %737 = vmatpush1.bf16.msra.mxu0 %v686
      %738 = vmatprep.subr.bf16.mxu0 0
      %739 = vmatpush1.bf16.msra.mxu0 0
      %740 = vmatprep.subr.bf16.mxu0 0
      %741 = vmatpush1.bf16.msra.mxu0 0
      %742 = vmatprep.subr.bf16.mxu0 0
      %743 = vmatpush1.bf16.msra.mxu0 0
      %744 = vmatprep.subr.bf16.mxu0 0
      %745 = vmatpush1.bf16.msra.mxu0 0
      %746 = vmatprep.subr.bf16.mxu0 0
      %747 = vmatpush1.bf16.msra.mxu0 0
      %748 = vmatprep.subr.bf16.mxu0 0
      %749 = vmatpush1.bf16.msra.mxu0 0
      %750 = vmatprep.subr.bf16.mxu0 0
      %751 = vmatpush1.bf16.msra.mxu0 0
      %752 = vmatprep.subr.bf16.mxu0 0
      %753 = vmatpush1.bf16.msra.mxu0 0
      %754 = vmatprep.mubr.bf16.mxu0 0
      %755 = vmatmul.mubr.bf16.gmra.mrb[0].mxu0 %v546
      %v756 = vpop.f32.mrb[0].mxu0
      %v757 = vadd.f32 %v497, %v756
      %v758 = vpop.f32.mrb[0].mxu0
      %v759 = vadd.f32 %v501, %v758
      %v760 = vpop.f32.mrb[0].mxu0
      %v761 = vadd.f32 %v497, %v760
      %v762 = vpop.f32.mrb[0].mxu0
      %v763 = vadd.f32 %v501, %v762
      %764 = vmatprep.mubr.bf16.mxu0 0
      %765 = vmatmul.mubr.bf16.gmra.mrb[0].mxu0 %v547
      %v766 = vpop.f32.mrb[0].mxu0
      %v767 = vadd.f32 %v497, %v766
      %v768 = vpop.f32.mrb[0].mxu0
      %v769 = vadd.f32 %v501, %v768
      %v770 = vpop.f32.mrb[0].mxu0
      %v771 = vadd.f32 %v497, %v770
      %v772 = vpop.f32.mrb[0].mxu0
      %v773 = vadd.f32 %v501, %v772
      %774 = vmatprep.mubr.bf16.mxu0 0
      %775 = vmatmul.mubr.bf16.gmra.mrb[0].mxu0 %v548
      %v776 = vpop.f32.mrb[0].mxu0
      %v777 = vadd.f32 %v497, %v776
      %v778 = vpop.f32.mrb[0].mxu0
      %v779 = vadd.f32 %v501, %v778
      %v780 = vpop.f32.mrb[0].mxu0
      %v781 = vadd.f32 %v497, %v780
      %v782 = vpop.f32.mrb[0].mxu0
      %v783 = vadd.f32 %v501, %v782
      %784 = vmatprep.mubr.bf16.mxu0 0
      %785 = vmatmul.mubr.bf16.gmra.mrb[0].mxu0 %v549
      %v786 = vpop.f32.mrb[0].mxu0
      %v787 = vadd.f32 %v497, %v786
      %v788 = vpop.f32.mrb[0].mxu0
      %v789 = vadd.f32 %v501, %v788
      %v790 = vpop.f32.mrb[0].mxu0
      %v791 = vadd.f32 %v497, %v790
      %v792 = vpop.f32.mrb[0].mxu0
      %v793 = vadd.f32 %v501, %v792
      %794 = vmatprep.mubr.bf16.mxu0 0
      %795 = vmatmul.mubr.bf16.gmra.mrb[0].mxu0 %v550
      %v796 = vpop.f32.mrb[0].mxu0
      %v797 = vadd.f32 %v497, %v796
      %v798 = vpop.f32.mrb[0].mxu0
      %v799 = vadd.f32 %v501, %v798
      %v800 = vpop.f32.mrb[0].mxu0
      %v801 = vadd.f32 %v497, %v800
      %v802 = vpop.f32.mrb[0].mxu0
      %v803 = vadd.f32 %v501, %v802
      %804 = vmatprep.mubr.bf16.mxu0 0
      %805 = vmatmul.mubr.bf16.gmra.mrb[0].mxu0 %v551
      %v806 = vpop.f32.mrb[0].mxu0
      %v807 = vadd.f32 %v497, %v806
      %v808 = vpop.f32.mrb[0].mxu0
      %v809 = vadd.f32 %v501, %v808
      %v810 = vpop.f32.mrb[0].mxu0
      %v811 = vadd.f32 %v497, %v810
      %v812 = vpop.f32.mrb[0].mxu0
      %v813 = vadd.f32 %v501, %v812
      %814 = vmatprep.mubr.bf16.mxu0 0
      %815 = vmatmul.mubr.bf16.gmra.mrb[0].mxu0 %v552
      %v816 = vpop.f32.mrb[0].mxu0
      %v817 = vadd.f32 %v497, %v816
      %v818 = vpop.f32.mrb[0].mxu0
      %v819 = vadd.f32 %v501, %v818
      %v820 = vpop.f32.mrb[0].mxu0
      %v821 = vadd.f32 %v497, %v820
      %v822 = vpop.f32.mrb[0].mxu0
      %v823 = vadd.f32 %v501, %v822
      %824 = vmatprep.mubr.bf16.mxu0 0
      %825 = vmatmul.mubr.bf16.gmra.mrb[0].mxu0 %v553
      %v826 = vpop.f32.mrb[0].mxu0
      %v827 = vadd.f32 %v497, %v826
      %v828 = vpop.f32.mrb[0].mxu0
      %v829 = vadd.f32 %v501, %v828
      %v830 = vpop.f32.mrb[0].mxu0
      %v831 = vadd.f32 %v497, %v830
      %v832 = vpop.f32.mrb[0].mxu0
      %v833 = vadd.f32 %v501, %v832
      %834 = vdwg.mxu0
      %835 = vmatprep.subr.bf16.mxu0 %v661
      %836 = vmatpush1.bf16.msra.mxu0 %v660
      %837 = vmatprep.subr.bf16.mxu0 %v665
      %838 = vmatpush1.bf16.msra.mxu0 %v664
      %839 = vmatprep.subr.bf16.mxu0 %v669
      %840 = vmatpush1.bf16.msra.mxu0 %v668
      %841 = vmatprep.subr.bf16.mxu0 %v673
      %842 = vmatpush1.bf16.msra.mxu0 %v672
      %843 = vmatprep.subr.bf16.mxu0 %v677
      %844 = vmatpush1.bf16.msra.mxu0 %v676
      %845 = vmatprep.subr.bf16.mxu0 %v681
      %846 = vmatpush1.bf16.msra.mxu0 %v680
      %847 = vmatprep.subr.bf16.mxu0 %v685
      %848 = vmatpush1.bf16.msra.mxu0 %v684
      %849 = vmatprep.subr.bf16.mxu0 %v689
      %850 = vmatpush1.bf16.msra.mxu0 %v688
      %851 = vmatprep.subr.bf16.mxu0 0
      %852 = vmatpush1.bf16.msra.mxu0 0
      %853 = vmatprep.subr.bf16.mxu0 0
      %854 = vmatpush1.bf16.msra.mxu0 0
      %855 = vmatprep.subr.bf16.mxu0 0
      %856 = vmatpush1.bf16.msra.mxu0 0
      %857 = vmatprep.subr.bf16.mxu0 0
      %858 = vmatpush1.bf16.msra.mxu0 0
      %859 = vmatprep.subr.bf16.mxu0 0
      %860 = vmatpush1.bf16.msra.mxu0 0
      %861 = vmatprep.subr.bf16.mxu0 0
      %862 = vmatpush1.bf16.msra.mxu0 0
      %863 = vmatprep.subr.bf16.mxu0 0
      %864 = vmatpush1.bf16.msra.mxu0 0
      %865 = vmatprep.subr.bf16.mxu0 0
      %866 = vmatpush1.bf16.msra.mxu0 0
      %867 = vmatprep.mubr.bf16.mxu0 0
      %868 = vmatmul.mubr.bf16.gmra.mrb[0].mxu0 %v546
      %v869 = vpop.f32.mrb[0].mxu0
      %v870 = vadd.f32 %v505, %v869
      %v871 = vpop.f32.mrb[0].mxu0
      %v872 = vadd.f32 %v509, %v871
      %v873 = vpop.f32.mrb[0].mxu0
      %v874 = vadd.f32 %v505, %v873
      %v875 = vpop.f32.mrb[0].mxu0
      %v876 = vadd.f32 %v509, %v875
      %877 = vmatprep.mubr.bf16.mxu0 0
      %878 = vmatmul.mubr.bf16.gmra.mrb[0].mxu0 %v547
      %v879 = vpop.f32.mrb[0].mxu0
      %v880 = vadd.f32 %v505, %v879
      %v881 = vpop.f32.mrb[0].mxu0
      %v882 = vadd.f32 %v509, %v881
      %v883 = vpop.f32.mrb[0].mxu0
      %v884 = vadd.f32 %v505, %v883
      %v885 = vpop.f32.mrb[0].mxu0
      %v886 = vadd.f32 %v509, %v885
      %887 = vmatprep.mubr.bf16.mxu0 0
      %888 = vmatmul.mubr.bf16.gmra.mrb[0].mxu0 %v548
      %v889 = vpop.f32.mrb[0].mxu0
      %v890 = vadd.f32 %v505, %v889
      %v891 = vpop.f32.mrb[0].mxu0
      %v892 = vadd.f32 %v509, %v891
      %v893 = vpop.f32.mrb[0].mxu0
      %v894 = vadd.f32 %v505, %v893
      %v895 = vpop.f32.mrb[0].mxu0
      %v896 = vadd.f32 %v509, %v895
      %897 = vmatprep.mubr.bf16.mxu0 0
      %898 = vmatmul.mubr.bf16.gmra.mrb[0].mxu0 %v549
      %v899 = vpop.f32.mrb[0].mxu0
      %v900 = vadd.f32 %v505, %v899
      %v901 = vpop.f32.mrb[0].mxu0
      %v902 = vadd.f32 %v509, %v901
      %v903 = vpop.f32.mrb[0].mxu0
      %v904 = vadd.f32 %v505, %v903
      %v905 = vpop.f32.mrb[0].mxu0
      %v906 = vadd.f32 %v509, %v905
      %907 = vmatprep.mubr.bf16.mxu0 0
      %908 = vmatmul.mubr.bf16.gmra.mrb[0].mxu0 %v550
      %v909 = vpop.f32.mrb[0].mxu0
      %v910 = vadd.f32 %v505, %v909
      %v911 = vpop.f32.mrb[0].mxu0
      %v912 = vadd.f32 %v509, %v911
      %v913 = vpop.f32.mrb[0].mxu0
      %v914 = vadd.f32 %v505, %v913
      %v915 = vpop.f32.mrb[0].mxu0
      %v916 = vadd.f32 %v509, %v915
      %917 = vmatprep.mubr.bf16.mxu0 0
      %918 = vmatmul.mubr.bf16.gmra.mrb[0].mxu0 %v551
      %v919 = vpop.f32.mrb[0].mxu0
      %v920 = vadd.f32 %v505, %v919
      %v921 = vpop.f32.mrb[0].mxu0
      %v922 = vadd.f32 %v509, %v921
      %v923 = vpop.f32.mrb[0].mxu0
      %v924 = vadd.f32 %v505, %v923
      %v925 = vpop.f32.mrb[0].mxu0
      %v926 = vadd.f32 %v509, %v925
      %927 = vmatprep.mubr.bf16.mxu0 0
      %928 = vmatmul.mubr.bf16.gmra.mrb[0].mxu0 %v552
      %v929 = vpop.f32.mrb[0].mxu0
      %v930 = vadd.f32 %v505, %v929
      %v931 = vpop.f32.mrb[0].mxu0
      %v932 = vadd.f32 %v509, %v931
      %v933 = vpop.f32.mrb[0].mxu0
      %v934 = vadd.f32 %v505, %v933
      %v935 = vpop.f32.mrb[0].mxu0
      %v936 = vadd.f32 %v509, %v935
      %937 = vmatprep.mubr.bf16.mxu0 0
      %938 = vmatmul.mubr.bf16.gmra.mrb[0].mxu0 %v553
      %v939 = vpop.f32.mrb[0].mxu0
      %v940 = vadd.f32 %v505, %v939
      %v941 = vpop.f32.mrb[0].mxu0
      %v942 = vadd.f32 %v509, %v941
      %v943 = vpop.f32.mrb[0].mxu0
      %v944 = vadd.f32 %v505, %v943
      %v945 = vpop.f32.mrb[0].mxu0
      %v946 = vadd.f32 %v509, %v945
      %947 = vdwg.mxu0
      %v948 = vmax.f32 %v757, 0.0
      %v949 = vmax.f32 %v759, 0.0
      %v950 = vmax.f32 %v870, 0.0
      %v951 = vmax.f32 %v872, 0.0
      %v952 = vmax.f32 %v761, 0.0
      %v953 = vmax.f32 %v763, 0.0
      %v954 = vmax.f32 %v874, 0.0
      %v955 = vmax.f32 %v876, 0.0
      %v956 = vmax.f32 %v767, 0.0
      %v957 = vmax.f32 %v769, 0.0
      %v958 = vmax.f32 %v880, 0.0
      %v959 = vmax.f32 %v882, 0.0
      %v960 = vmax.f32 %v771, 0.0
      %v961 = vmax.f32 %v773, 0.0
      %v962 = vmax.f32 %v884, 0.0
      %v963 = vmax.f32 %v886, 0.0
      %v964 = vmax.f32 %v777, 0.0
      %v965 = vmax.f32 %v779, 0.0
      %v966 = vmax.f32 %v890, 0.0
      %v967 = vmax.f32 %v892, 0.0
      %v968 = vmax.f32 %v781, 0.0
      %v969 = vmax.f32 %v783, 0.0
      %v970 = vmax.f32 %v894, 0.0
      %v971 = vmax.f32 %v896, 0.0
      %v972 = vmax.f32 %v787, 0.0
      %v973 = vmax.f32 %v789, 0.0
      %v974 = vmax.f32 %v900, 0.0
      %v975 = vmax.f32 %v902, 0.0
      %v976 = vmax.f32 %v791, 0.0
      %v977 = vmax.f32 %v793, 0.0
      %v978 = vmax.f32 %v904, 0.0
      %v979 = vmax.f32 %v906, 0.0
      %v980 = vmax.f32 %v797, 0.0
      %v981 = vmax.f32 %v799, 0.0
      %v982 = vmax.f32 %v910, 0.0
      %v983 = vmax.f32 %v912, 0.0
      %v984 = vmax.f32 %v801, 0.0
      %v985 = vmax.f32 %v803, 0.0
      %v986 = vmax.f32 %v914, 0.0
      %v987 = vmax.f32 %v916, 0.0
      %v988 = vmax.f32 %v807, 0.0
      %v989 = vmax.f32 %v809, 0.0
      %v990 = vmax.f32 %v920, 0.0
      %v991 = vmax.f32 %v922, 0.0
      %v992 = vmax.f32 %v811, 0.0
      %v993 = vmax.f32 %v813, 0.0
      %v994 = vmax.f32 %v924, 0.0
      %v995 = vmax.f32 %v926, 0.0
      %v996 = vmax.f32 %v817, 0.0
      %v997 = vmax.f32 %v819, 0.0
      %v998 = vmax.f32 %v930, 0.0
      %v999 = vmax.f32 %v932, 0.0
      %v1000 = vmax.f32 %v821, 0.0
      %v1001 = vmax.f32 %v823, 0.0
      %v1002 = vmax.f32 %v934, 0.0
      %v1003 = vmax.f32 %v936, 0.0
      %v1004 = vmax.f32 %v827, 0.0
      %v1005 = vmax.f32 %v829, 0.0
      %v1006 = vmax.f32 %v940, 0.0
      %v1007 = vmax.f32 %v942, 0.0
      %v1008 = vmax.f32 %v831, 0.0
      %v1009 = vmax.f32 %v833, 0.0
      %v1010 = vmax.f32 %v944, 0.0
      %v1011 = vmax.f32 %v946, 0.0
      %v1012 = vpack.c.bf16 %v952, %v948
      %v1013 = vpack.c.bf16 %v953, %v949
      %v1014 = vpack.c.bf16 %v954, %v950
      %v1015 = vpack.c.bf16 %v955, %v951
      %v1016 = vpack.c.bf16 %v960, %v956
      %v1017 = vpack.c.bf16 %v961, %v957
      %v1018 = vpack.c.bf16 %v962, %v958
      %v1019 = vpack.c.bf16 %v963, %v959
      %v1020 = vpack.c.bf16 %v968, %v964
      %v1021 = vpack.c.bf16 %v969, %v965
      %v1022 = vpack.c.bf16 %v970, %v966
      %v1023 = vpack.c.bf16 %v971, %v967
      %v1024 = vpack.c.bf16 %v976, %v972
      %v1025 = vpack.c.bf16 %v977, %v973
      %v1026 = vpack.c.bf16 %v978, %v974
      %v1027 = vpack.c.bf16 %v979, %v975
      %v1028 = vpack.c.bf16 %v984, %v980
      %v1029 = vpack.c.bf16 %v985, %v981
      %v1030 = vpack.c.bf16 %v986, %v982
      %v1031 = vpack.c.bf16 %v987, %v983
      %v1032 = vpack.c.bf16 %v992, %v988
      %v1033 = vpack.c.bf16 %v993, %v989
      %v1034 = vpack.c.bf16 %v994, %v990
      %v1035 = vpack.c.bf16 %v995, %v991
      %v1036 = vpack.c.bf16 %v1000, %v996
      %v1037 = vpack.c.bf16 %v1001, %v997
      %v1038 = vpack.c.bf16 %v1002, %v998
      %v1039 = vpack.c.bf16 %v1003, %v999
      %v1040 = vpack.c.bf16 %v1008, %v1004
      %v1041 = vpack.c.bf16 %v1009, %v1005
      %v1042 = vpack.c.bf16 %v1010, %v1006
      %v1043 = vpack.c.bf16 %v1011, %v1007
      %v1044 = vld [vmem:[%s3] sm:$0xff]
      %v1045 = vld [vmem:[%s3 + $0x8] sm:$0xff]
      %v1046 = vld [vmem:[%s3 + $0x10] sm:$0xff]
      %v1047 = vld [vmem:[%s3 + $0x18] sm:$0xff]
      %v1048 = vld [vmem:[%s3 + $0x20] sm:$0xff]
      %v1049 = vld [vmem:[%s3 + $0x28] sm:$0xff]
      %v1050 = vld [vmem:[%s3 + $0x30] sm:$0xff]
      %v1051 = vld [vmem:[%s3 + $0x38] sm:$0xff]
      %v1052 = vld [vmem:[%s3 + $0x40] sm:$0xff]
      %v1053 = vld [vmem:[%s3 + $0x48] sm:$0xff]
      %v1054 = vld [vmem:[%s3 + $0x50] sm:$0xff]
      %v1055 = vld [vmem:[%s3 + $0x58] sm:$0xff]
      %v1056 = vld [vmem:[%s3 + $0x60] sm:$0xff]
      %v1057 = vld [vmem:[%s3 + $0x68] sm:$0xff]
      %v1058 = vld [vmem:[%s3 + $0x70] sm:$0xff]
      %v1059 = vld [vmem:[%s3 + $0x78] sm:$0xff]
      %v1060 = vld [vmem:[%s3 + $0x80] sm:$0xff]
      %v1061 = vld [vmem:[%s3 + $0x88] sm:$0xff]
      %v1062 = vld [vmem:[%s3 + $0x90] sm:$0xff]
      %v1063 = vld [vmem:[%s3 + $0x98] sm:$0xff]
      %v1064 = vld [vmem:[%s3 + $0xa0] sm:$0xff]
      %v1065 = vld [vmem:[%s3 + $0xa8] sm:$0xff]
      %v1066 = vld [vmem:[%s3 + $0xb0] sm:$0xff]
      %v1067 = vld [vmem:[%s3 + $0xb8] sm:$0xff]
      %v1068 = vld [vmem:[%s3 + $0xc0] sm:$0xff]
      %v1069 = vld [vmem:[%s3 + $0xc8] sm:$0xff]
      %v1070 = vld [vmem:[%s3 + $0xd0] sm:$0xff]
      %v1071 = vld [vmem:[%s3 + $0xd8] sm:$0xff]
      %v1072 = vld [vmem:[%s3 + $0xe0] sm:$0xff]
      %v1073 = vld [vmem:[%s3 + $0xe8] sm:$0xff]
      %v1074 = vld [vmem:[%s3 + $0xf0] sm:$0xff]
      %v1075 = vld [vmem:[%s3 + $0xf8] sm:$0xff]
      %v1076 = vld [vmem:[%s3 + $0x100] sm:$0xff]
      %v1077 = vld [vmem:[%s3 + $0x108] sm:$0xff]
      %v1078 = vld [vmem:[%s3 + $0x110] sm:$0xff]
      %v1079 = vld [vmem:[%s3 + $0x118] sm:$0xff]
      %v1080 = vld [vmem:[%s3 + $0x120] sm:$0xff]
      %v1081 = vld [vmem:[%s3 + $0x128] sm:$0xff]
      %v1082 = vld [vmem:[%s3 + $0x130] sm:$0xff]
      %v1083 = vld [vmem:[%s3 + $0x138] sm:$0xff]
      %v1084 = vld [vmem:[%s3 + $0x140] sm:$0xff]
      %v1085 = vld [vmem:[%s3 + $0x148] sm:$0xff]
      %v1086 = vld [vmem:[%s3 + $0x150] sm:$0xff]
      %v1087 = vld [vmem:[%s3 + $0x158] sm:$0xff]
      %v1088 = vld [vmem:[%s3 + $0x160] sm:$0xff]
      %v1089 = vld [vmem:[%s3 + $0x168] sm:$0xff]
      %v1090 = vld [vmem:[%s3 + $0x170] sm:$0xff]
      %v1091 = vld [vmem:[%s3 + $0x178] sm:$0xff]
      %v1092 = vld [vmem:[%s3 + $0x180] sm:$0xff]
      %v1093 = vld [vmem:[%s3 + $0x188] sm:$0xff]
      %v1094 = vld [vmem:[%s3 + $0x190] sm:$0xff]
      %v1095 = vld [vmem:[%s3 + $0x198] sm:$0xff]
      %v1096 = vld [vmem:[%s3 + $0x1a0] sm:$0xff]
      %v1097 = vld [vmem:[%s3 + $0x1a8] sm:$0xff]
      %v1098 = vld [vmem:[%s3 + $0x1b0] sm:$0xff]
      %v1099 = vld [vmem:[%s3 + $0x1b8] sm:$0xff]
      %v1100 = vld [vmem:[%s3 + $0x1c0] sm:$0xff]
      %v1101 = vld [vmem:[%s3 + $0x1c8] sm:$0xff]
      %v1102 = vld [vmem:[%s3 + $0x1d0] sm:$0xff]
      %v1103 = vld [vmem:[%s3 + $0x1d8] sm:$0xff]
      %v1104 = vld [vmem:[%s3 + $0x1e0] sm:$0xff]
      %v1105 = vld [vmem:[%s3 + $0x1e8] sm:$0xff]
      %v1106 = vld [vmem:[%s3 + $0x1f0] sm:$0xff]
      %v1107 = vld [vmem:[%s3 + $0x1f8] sm:$0xff]
      %v1108 = vld [vmem:[%s4] sm:$0x3]
      %v1110 = vlaneseq
      %v1111 = vshrl.u32 %v1110, 7
      %v1112 = vsub.s32 0, %v1111
      %v1113 = vrot.slane %v1108, %v1112
      %v1114 = vlaneseq
      %v1115 = vshrl.u32 %v1114, 7
      %v1116 = vsub.s32 1, %v1115
      %v1117 = vrot.slane %v1108, %v1116
      %v1184 = vunpack.c.l.b16 %v1044
      %v1185 = vunpack.c.h.b16 %v1044
      %v1186 = vunpack.c.l.b16 %v1045
      %v1187 = vunpack.c.h.b16 %v1045
      %v1188 = vunpack.c.l.b16 %v1046
      %v1189 = vunpack.c.h.b16 %v1046
      %v1190 = vunpack.c.l.b16 %v1047
      %v1191 = vunpack.c.h.b16 %v1047
      %v1192 = vunpack.c.l.b16 %v1048
      %v1193 = vunpack.c.h.b16 %v1048
      %v1194 = vunpack.c.l.b16 %v1049
      %v1195 = vunpack.c.h.b16 %v1049
      %v1196 = vunpack.c.l.b16 %v1050
      %v1197 = vunpack.c.h.b16 %v1050
      %v1198 = vunpack.c.l.b16 %v1051
      %v1199 = vunpack.c.h.b16 %v1051
      %v1200 = vunpack.c.l.b16 %v1052
      %v1201 = vunpack.c.h.b16 %v1052
      %v1202 = vunpack.c.l.b16 %v1053
      %v1203 = vunpack.c.h.b16 %v1053
      %v1204 = vunpack.c.l.b16 %v1054
      %v1205 = vunpack.c.h.b16 %v1054
      %v1206 = vunpack.c.l.b16 %v1055
      %v1207 = vunpack.c.h.b16 %v1055
      %v1208 = vunpack.c.l.b16 %v1056
      %v1209 = vunpack.c.h.b16 %v1056
      %v1210 = vunpack.c.l.b16 %v1057
      %v1211 = vunpack.c.h.b16 %v1057
      %v1212 = vunpack.c.l.b16 %v1058
      %v1213 = vunpack.c.h.b16 %v1058
      %v1214 = vunpack.c.l.b16 %v1059
      %v1215 = vunpack.c.h.b16 %v1059
      %v1216 = vunpack.c.l.b16 %v1060
      %v1217 = vunpack.c.h.b16 %v1060
      %v1218 = vunpack.c.l.b16 %v1061
      %v1219 = vunpack.c.h.b16 %v1061
      %v1220 = vunpack.c.l.b16 %v1062
      %v1221 = vunpack.c.h.b16 %v1062
      %v1222 = vunpack.c.l.b16 %v1063
      %v1223 = vunpack.c.h.b16 %v1063
      %v1224 = vunpack.c.l.b16 %v1064
      %v1225 = vunpack.c.h.b16 %v1064
      %v1226 = vunpack.c.l.b16 %v1065
      %v1227 = vunpack.c.h.b16 %v1065
      %v1228 = vunpack.c.l.b16 %v1066
      %v1229 = vunpack.c.h.b16 %v1066
      %v1230 = vunpack.c.l.b16 %v1067
      %v1231 = vunpack.c.h.b16 %v1067
      %v1232 = vunpack.c.l.b16 %v1068
      %v1233 = vunpack.c.h.b16 %v1068
      %v1234 = vunpack.c.l.b16 %v1069
      %v1235 = vunpack.c.h.b16 %v1069
      %v1236 = vunpack.c.l.b16 %v1070
      %v1237 = vunpack.c.h.b16 %v1070
      %v1238 = vunpack.c.l.b16 %v1071
      %v1239 = vunpack.c.h.b16 %v1071
      %v1240 = vunpack.c.l.b16 %v1072
      %v1241 = vunpack.c.h.b16 %v1072
      %v1242 = vunpack.c.l.b16 %v1073
      %v1243 = vunpack.c.h.b16 %v1073
      %v1244 = vunpack.c.l.b16 %v1074
      %v1245 = vunpack.c.h.b16 %v1074
      %v1246 = vunpack.c.l.b16 %v1075
      %v1247 = vunpack.c.h.b16 %v1075
      %v1248 = vunpack.c.l.b16 %v1076
      %v1249 = vunpack.c.h.b16 %v1076
      %v1250 = vunpack.c.l.b16 %v1077
      %v1251 = vunpack.c.h.b16 %v1077
      %v1252 = vunpack.c.l.b16 %v1078
      %v1253 = vunpack.c.h.b16 %v1078
      %v1254 = vunpack.c.l.b16 %v1079
      %v1255 = vunpack.c.h.b16 %v1079
      %v1256 = vunpack.c.l.b16 %v1080
      %v1257 = vunpack.c.h.b16 %v1080
      %v1258 = vunpack.c.l.b16 %v1081
      %v1259 = vunpack.c.h.b16 %v1081
      %v1260 = vunpack.c.l.b16 %v1082
      %v1261 = vunpack.c.h.b16 %v1082
      %v1262 = vunpack.c.l.b16 %v1083
      %v1263 = vunpack.c.h.b16 %v1083
      %v1264 = vunpack.c.l.b16 %v1084
      %v1265 = vunpack.c.h.b16 %v1084
      %v1266 = vunpack.c.l.b16 %v1085
      %v1267 = vunpack.c.h.b16 %v1085
      %v1268 = vunpack.c.l.b16 %v1086
      %v1269 = vunpack.c.h.b16 %v1086
      %v1270 = vunpack.c.l.b16 %v1087
      %v1271 = vunpack.c.h.b16 %v1087
      %v1272 = vunpack.c.l.b16 %v1088
      %v1273 = vunpack.c.h.b16 %v1088
      %v1274 = vunpack.c.l.b16 %v1089
      %v1275 = vunpack.c.h.b16 %v1089
      %v1276 = vunpack.c.l.b16 %v1090
      %v1277 = vunpack.c.h.b16 %v1090
      %v1278 = vunpack.c.l.b16 %v1091
      %v1279 = vunpack.c.h.b16 %v1091
      %v1280 = vunpack.c.l.b16 %v1092
      %v1281 = vunpack.c.h.b16 %v1092
      %v1282 = vunpack.c.l.b16 %v1093
      %v1283 = vunpack.c.h.b16 %v1093
      %v1284 = vunpack.c.l.b16 %v1094
      %v1285 = vunpack.c.h.b16 %v1094
      %v1286 = vunpack.c.l.b16 %v1095
      %v1287 = vunpack.c.h.b16 %v1095
      %v1288 = vunpack.c.l.b16 %v1096
      %v1289 = vunpack.c.h.b16 %v1096
      %v1290 = vunpack.c.l.b16 %v1097
      %v1291 = vunpack.c.h.b16 %v1097
      %v1292 = vunpack.c.l.b16 %v1098
      %v1293 = vunpack.c.h.b16 %v1098
      %v1294 = vunpack.c.l.b16 %v1099
      %v1295 = vunpack.c.h.b16 %v1099
      %v1296 = vunpack.c.l.b16 %v1100
      %v1297 = vunpack.c.h.b16 %v1100
      %v1298 = vunpack.c.l.b16 %v1101
      %v1299 = vunpack.c.h.b16 %v1101
      %v1300 = vunpack.c.l.b16 %v1102
      %v1301 = vunpack.c.h.b16 %v1102
      %v1302 = vunpack.c.l.b16 %v1103
      %v1303 = vunpack.c.h.b16 %v1103
      %v1304 = vunpack.c.l.b16 %v1104
      %v1305 = vunpack.c.h.b16 %v1104
      %v1306 = vunpack.c.l.b16 %v1105
      %v1307 = vunpack.c.h.b16 %v1105
      %v1308 = vunpack.c.l.b16 %v1106
      %v1309 = vunpack.c.h.b16 %v1106
      %v1310 = vunpack.c.l.b16 %v1107
      %v1311 = vunpack.c.h.b16 %v1107
      %v1312 = vpack.c.b16 %v1186, %v1184
      %v1313 = vpack.c.b16 %v1187, %v1185
      %v1314 = vpack.c.b16 %v1190, %v1188
      %v1315 = vpack.c.b16 %v1191, %v1189
      %v1316 = vpack.c.b16 %v1194, %v1192
      %v1317 = vpack.c.b16 %v1195, %v1193
      %v1318 = vpack.c.b16 %v1198, %v1196
      %v1319 = vpack.c.b16 %v1199, %v1197
      %v1320 = vpack.c.b16 %v1202, %v1200
      %v1321 = vpack.c.b16 %v1203, %v1201
      %v1322 = vpack.c.b16 %v1206, %v1204
      %v1323 = vpack.c.b16 %v1207, %v1205
      %v1324 = vpack.c.b16 %v1210, %v1208
      %v1325 = vpack.c.b16 %v1211, %v1209
      %v1326 = vpack.c.b16 %v1214, %v1212
      %v1327 = vpack.c.b16 %v1215, %v1213
      %v1328 = vpack.c.b16 %v1218, %v1216
      %v1329 = vpack.c.b16 %v1219, %v1217
      %v1330 = vpack.c.b16 %v1222, %v1220
      %v1331 = vpack.c.b16 %v1223, %v1221
      %v1332 = vpack.c.b16 %v1226, %v1224
      %v1333 = vpack.c.b16 %v1227, %v1225
      %v1334 = vpack.c.b16 %v1230, %v1228
      %v1335 = vpack.c.b16 %v1231, %v1229
      %v1336 = vpack.c.b16 %v1234, %v1232
      %v1337 = vpack.c.b16 %v1235, %v1233
      %v1338 = vpack.c.b16 %v1238, %v1236
      %v1339 = vpack.c.b16 %v1239, %v1237
      %v1340 = vpack.c.b16 %v1242, %v1240
      %v1341 = vpack.c.b16 %v1243, %v1241
      %v1342 = vpack.c.b16 %v1246, %v1244
      %v1343 = vpack.c.b16 %v1247, %v1245
      %v1344 = vpack.c.b16 %v1250, %v1248
      %v1345 = vpack.c.b16 %v1251, %v1249
      %v1346 = vpack.c.b16 %v1254, %v1252
      %v1347 = vpack.c.b16 %v1255, %v1253
      %v1348 = vpack.c.b16 %v1258, %v1256
      %v1349 = vpack.c.b16 %v1259, %v1257
      %v1350 = vpack.c.b16 %v1262, %v1260
      %v1351 = vpack.c.b16 %v1263, %v1261
      %v1352 = vpack.c.b16 %v1266, %v1264
      %v1353 = vpack.c.b16 %v1267, %v1265
      %v1354 = vpack.c.b16 %v1270, %v1268
      %v1355 = vpack.c.b16 %v1271, %v1269
      %v1356 = vpack.c.b16 %v1274, %v1272
      %v1357 = vpack.c.b16 %v1275, %v1273
      %v1358 = vpack.c.b16 %v1278, %v1276
      %v1359 = vpack.c.b16 %v1279, %v1277
      %v1360 = vpack.c.b16 %v1282, %v1280
      %v1361 = vpack.c.b16 %v1283, %v1281
      %v1362 = vpack.c.b16 %v1286, %v1284
      %v1363 = vpack.c.b16 %v1287, %v1285
      %v1364 = vpack.c.b16 %v1290, %v1288
      %v1365 = vpack.c.b16 %v1291, %v1289
      %v1366 = vpack.c.b16 %v1294, %v1292
      %v1367 = vpack.c.b16 %v1295, %v1293
      %v1368 = vpack.c.b16 %v1298, %v1296
      %v1369 = vpack.c.b16 %v1299, %v1297
      %v1370 = vpack.c.b16 %v1302, %v1300
      %v1371 = vpack.c.b16 %v1303, %v1301
      %v1372 = vpack.c.b16 %v1306, %v1304
      %v1373 = vpack.c.b16 %v1307, %v1305
      %v1374 = vpack.c.b16 %v1310, %v1308
      %v1375 = vpack.c.b16 %v1311, %v1309
      %1440 = vmatprep.subr.bf16.mxu0 %v1313
      %1441 = vmatpush1.bf16.msra.mxu0 %v1312
      %1442 = vmatprep.subr.bf16.mxu0 %v1315
      %1443 = vmatpush1.bf16.msra.mxu0 %v1314
      %1444 = vmatprep.subr.bf16.mxu0 %v1317
      %1445 = vmatpush1.bf16.msra.mxu0 %v1316
      %1446 = vmatprep.subr.bf16.mxu0 %v1319
      %1447 = vmatpush1.bf16.msra.mxu0 %v1318
      %1448 = vmatprep.subr.bf16.mxu0 %v1321
      %1449 = vmatpush1.bf16.msra.mxu0 %v1320
      %1450 = vmatprep.subr.bf16.mxu0 %v1323
      %1451 = vmatpush1.bf16.msra.mxu0 %v1322
      %1452 = vmatprep.subr.bf16.mxu0 %v1325
      %1453 = vmatpush1.bf16.msra.mxu0 %v1324
      %1454 = vmatprep.subr.bf16.mxu0 %v1327
      %1455 = vmatpush1.bf16.msra.mxu0 %v1326
      %1456 = vmatprep.subr.bf16.mxu0 %v1329
      %1457 = vmatpush1.bf16.msra.mxu0 %v1328
      %1458 = vmatprep.subr.bf16.mxu0 %v1331
      %1459 = vmatpush1.bf16.msra.mxu0 %v1330
      %1460 = vmatprep.subr.bf16.mxu0 %v1333
      %1461 = vmatpush1.bf16.msra.mxu0 %v1332
      %1462 = vmatprep.subr.bf16.mxu0 %v1335
      %1463 = vmatpush1.bf16.msra.mxu0 %v1334
      %1464 = vmatprep.subr.bf16.mxu0 %v1337
      %1465 = vmatpush1.bf16.msra.mxu0 %v1336
      %1466 = vmatprep.subr.bf16.mxu0 %v1339
      %1467 = vmatpush1.bf16.msra.mxu0 %v1338
      %1468 = vmatprep.subr.bf16.mxu0 %v1341
      %1469 = vmatpush1.bf16.msra.mxu0 %v1340
      %1470 = vmatprep.subr.bf16.mxu0 %v1343
      %1471 = vmatpush1.bf16.msra.mxu0 %v1342
      %1472 = vmatprep.mubr.bf16.mxu0 %v1013
      %1473 = vmatmul.mubr.bf16.gmra.mrb[0].mxu0 %v1012
      %v1474 = vpop.f32.mrb[0].mxu0
      %v1475 = vadd.f32 %v1113, %v1474
      %v1476 = vpop.f32.mrb[0].mxu0
      %v1477 = vadd.f32 %v1117, %v1476
      %v1478 = vpop.f32.mrb[0].mxu0
      %v1479 = vadd.f32 %v1113, %v1478
      %v1480 = vpop.f32.mrb[0].mxu0
      %v1481 = vadd.f32 %v1117, %v1480
      %1482 = vmatprep.mubr.bf16.mxu0 %v1017
      %1483 = vmatmul.mubr.bf16.gmra.mrb[0].mxu0 %v1016
      %v1484 = vpop.f32.mrb[0].mxu0
      %v1485 = vadd.f32 %v1113, %v1484
      %v1486 = vpop.f32.mrb[0].mxu0
      %v1487 = vadd.f32 %v1117, %v1486
      %v1488 = vpop.f32.mrb[0].mxu0
      %v1489 = vadd.f32 %v1113, %v1488
      %v1490 = vpop.f32.mrb[0].mxu0
      %v1491 = vadd.f32 %v1117, %v1490
      %1492 = vmatprep.mubr.bf16.mxu0 %v1021
      %1493 = vmatmul.mubr.bf16.gmra.mrb[0].mxu0 %v1020
      %v1494 = vpop.f32.mrb[0].mxu0
      %v1495 = vadd.f32 %v1113, %v1494
      %v1496 = vpop.f32.mrb[0].mxu0
      %v1497 = vadd.f32 %v1117, %v1496
      %v1498 = vpop.f32.mrb[0].mxu0
      %v1499 = vadd.f32 %v1113, %v1498
      %v1500 = vpop.f32.mrb[0].mxu0
      %v1501 = vadd.f32 %v1117, %v1500
      %1502 = vmatprep.mubr.bf16.mxu0 %v1025
      %1503 = vmatmul.mubr.bf16.gmra.mrb[0].mxu0 %v1024
      %v1504 = vpop.f32.mrb[0].mxu0
      %v1505 = vadd.f32 %v1113, %v1504
      %v1506 = vpop.f32.mrb[0].mxu0
      %v1507 = vadd.f32 %v1117, %v1506
      %v1508 = vpop.f32.mrb[0].mxu0
      %v1509 = vadd.f32 %v1113, %v1508
      %v1510 = vpop.f32.mrb[0].mxu0
      %v1511 = vadd.f32 %v1117, %v1510
      %1512 = vmatprep.mubr.bf16.mxu0 %v1029
      %1513 = vmatmul.mubr.bf16.gmra.mrb[0].mxu0 %v1028
      %v1514 = vpop.f32.mrb[0].mxu0
      %v1515 = vadd.f32 %v1113, %v1514
      %v1516 = vpop.f32.mrb[0].mxu0
      %v1517 = vadd.f32 %v1117, %v1516
      %v1518 = vpop.f32.mrb[0].mxu0
      %v1519 = vadd.f32 %v1113, %v1518
      %v1520 = vpop.f32.mrb[0].mxu0
      %v1521 = vadd.f32 %v1117, %v1520
      %1522 = vmatprep.mubr.bf16.mxu0 %v1033
      %1523 = vmatmul.mubr.bf16.gmra.mrb[0].mxu0 %v1032
      %v1524 = vpop.f32.mrb[0].mxu0
      %v1525 = vadd.f32 %v1113, %v1524
      %v1526 = vpop.f32.mrb[0].mxu0
      %v1527 = vadd.f32 %v1117, %v1526
      %v1528 = vpop.f32.mrb[0].mxu0
      %v1529 = vadd.f32 %v1113, %v1528
      %v1530 = vpop.f32.mrb[0].mxu0
      %v1531 = vadd.f32 %v1117, %v1530
      %1532 = vmatprep.mubr.bf16.mxu0 %v1037
      %1533 = vmatmul.mubr.bf16.gmra.mrb[0].mxu0 %v1036
      %v1534 = vpop.f32.mrb[0].mxu0
      %v1535 = vadd.f32 %v1113, %v1534
      %v1536 = vpop.f32.mrb[0].mxu0
      %v1537 = vadd.f32 %v1117, %v1536
      %v1538 = vpop.f32.mrb[0].mxu0
      %v1539 = vadd.f32 %v1113, %v1538
      %v1540 = vpop.f32.mrb[0].mxu0
      %v1541 = vadd.f32 %v1117, %v1540
      %1542 = vmatprep.mubr.bf16.mxu0 %v1041
      %1543 = vmatmul.mubr.bf16.gmra.mrb[0].mxu0 %v1040
      %v1544 = vpop.f32.mrb[0].mxu0
      %v1545 = vadd.f32 %v1113, %v1544
      %v1546 = vpop.f32.mrb[0].mxu0
      %v1547 = vadd.f32 %v1117, %v1546
      %v1548 = vpop.f32.mrb[0].mxu0
      %v1549 = vadd.f32 %v1113, %v1548
      %v1550 = vpop.f32.mrb[0].mxu0
      %v1551 = vadd.f32 %v1117, %v1550
      %1552 = vdwg.mxu0
      %1553 = vmatprep.subr.bf16.mxu0 %v1345
      %1554 = vmatpush1.bf16.msra.mxu0 %v1344
      %1555 = vmatprep.subr.bf16.mxu0 %v1347
      %1556 = vmatpush1.bf16.msra.mxu0 %v1346
      %1557 = vmatprep.subr.bf16.mxu0 %v1349
      %1558 = vmatpush1.bf16.msra.mxu0 %v1348
      %1559 = vmatprep.subr.bf16.mxu0 %v1351
      %1560 = vmatpush1.bf16.msra.mxu0 %v1350
      %1561 = vmatprep.subr.bf16.mxu0 %v1353
      %1562 = vmatpush1.bf16.msra.mxu0 %v1352
      %1563 = vmatprep.subr.bf16.mxu0 %v1355
      %1564 = vmatpush1.bf16.msra.mxu0 %v1354
      %1565 = vmatprep.subr.bf16.mxu0 %v1357
      %1566 = vmatpush1.bf16.msra.mxu0 %v1356
      %1567 = vmatprep.subr.bf16.mxu0 %v1359
      %1568 = vmatpush1.bf16.msra.mxu0 %v1358
      %1569 = vmatprep.subr.bf16.mxu0 %v1361
      %1570 = vmatpush1.bf16.msra.mxu0 %v1360
      %1571 = vmatprep.subr.bf16.mxu0 %v1363
      %1572 = vmatpush1.bf16.msra.mxu0 %v1362
      %1573 = vmatprep.subr.bf16.mxu0 %v1365
      %1574 = vmatpush1.bf16.msra.mxu0 %v1364
      %1575 = vmatprep.subr.bf16.mxu0 %v1367
      %1576 = vmatpush1.bf16.msra.mxu0 %v1366
      %1577 = vmatprep.subr.bf16.mxu0 %v1369
      %1578 = vmatpush1.bf16.msra.mxu0 %v1368
      %1579 = vmatprep.subr.bf16.mxu0 %v1371
      %1580 = vmatpush1.bf16.msra.mxu0 %v1370
      %1581 = vmatprep.subr.bf16.mxu0 %v1373
      %1582 = vmatpush1.bf16.msra.mxu0 %v1372
      %1583 = vmatprep.subr.bf16.mxu0 %v1375
      %1584 = vmatpush1.bf16.msra.mxu0 %v1374
      %1585 = vmatprep.mubr.bf16.mxu0 %v1015
      %1586 = vmatmul.mubr.bf16.gmra.mrb[0].mxu0 %v1014
      %v1587 = vpop.f32.mrb[0].mxu0
      %v1588 = vadd.f32 %v1475, %v1587
      %v1589 = vpop.f32.mrb[0].mxu0
      %v1590 = vadd.f32 %v1477, %v1589
      %v1591 = vpop.f32.mrb[0].mxu0
      %v1592 = vadd.f32 %v1479, %v1591
      %v1593 = vpop.f32.mrb[0].mxu0
      %v1594 = vadd.f32 %v1481, %v1593
      %1595 = vmatprep.mubr.bf16.mxu0 %v1019
      %1596 = vmatmul.mubr.bf16.gmra.mrb[0].mxu0 %v1018
      %v1597 = vpop.f32.mrb[0].mxu0
      %v1598 = vadd.f32 %v1485, %v1597
      %v1599 = vpop.f32.mrb[0].mxu0
      %v1600 = vadd.f32 %v1487, %v1599
      %v1601 = vpop.f32.mrb[0].mxu0
      %v1602 = vadd.f32 %v1489, %v1601
      %v1603 = vpop.f32.mrb[0].mxu0
      %v1604 = vadd.f32 %v1491, %v1603
      %1605 = vmatprep.mubr.bf16.mxu0 %v1023
      %1606 = vmatmul.mubr.bf16.gmra.mrb[0].mxu0 %v1022
      %v1607 = vpop.f32.mrb[0].mxu0
      %v1608 = vadd.f32 %v1495, %v1607
      %v1609 = vpop.f32.mrb[0].mxu0
      %v1610 = vadd.f32 %v1497, %v1609
      %v1611 = vpop.f32.mrb[0].mxu0
      %v1612 = vadd.f32 %v1499, %v1611
      %v1613 = vpop.f32.mrb[0].mxu0
      %v1614 = vadd.f32 %v1501, %v1613
      %1615 = vmatprep.mubr.bf16.mxu0 %v1027
      %1616 = vmatmul.mubr.bf16.gmra.mrb[0].mxu0 %v1026
      %v1617 = vpop.f32.mrb[0].mxu0
      %v1618 = vadd.f32 %v1505, %v1617
      %v1619 = vpop.f32.mrb[0].mxu0
      %v1620 = vadd.f32 %v1507, %v1619
      %v1621 = vpop.f32.mrb[0].mxu0
      %v1622 = vadd.f32 %v1509, %v1621
      %v1623 = vpop.f32.mrb[0].mxu0
      %v1624 = vadd.f32 %v1511, %v1623
      %1625 = vmatprep.mubr.bf16.mxu0 %v1031
      %1626 = vmatmul.mubr.bf16.gmra.mrb[0].mxu0 %v1030
      %v1627 = vpop.f32.mrb[0].mxu0
      %v1628 = vadd.f32 %v1515, %v1627
      %v1629 = vpop.f32.mrb[0].mxu0
      %v1630 = vadd.f32 %v1517, %v1629
      %v1631 = vpop.f32.mrb[0].mxu0
      %v1632 = vadd.f32 %v1519, %v1631
      %v1633 = vpop.f32.mrb[0].mxu0
      %v1634 = vadd.f32 %v1521, %v1633
      %1635 = vmatprep.mubr.bf16.mxu0 %v1035
      %1636 = vmatmul.mubr.bf16.gmra.mrb[0].mxu0 %v1034
      %v1637 = vpop.f32.mrb[0].mxu0
      %v1638 = vadd.f32 %v1525, %v1637
      %v1639 = vpop.f32.mrb[0].mxu0
      %v1640 = vadd.f32 %v1527, %v1639
      %v1641 = vpop.f32.mrb[0].mxu0
      %v1642 = vadd.f32 %v1529, %v1641
      %v1643 = vpop.f32.mrb[0].mxu0
      %v1644 = vadd.f32 %v1531, %v1643
      %1645 = vmatprep.mubr.bf16.mxu0 %v1039
      %1646 = vmatmul.mubr.bf16.gmra.mrb[0].mxu0 %v1038
      %v1647 = vpop.f32.mrb[0].mxu0
      %v1648 = vadd.f32 %v1535, %v1647
      %v1649 = vpop.f32.mrb[0].mxu0
      %v1650 = vadd.f32 %v1537, %v1649
      %v1651 = vpop.f32.mrb[0].mxu0
      %v1652 = vadd.f32 %v1539, %v1651
      %v1653 = vpop.f32.mrb[0].mxu0
      %v1654 = vadd.f32 %v1541, %v1653
      %1655 = vmatprep.mubr.bf16.mxu0 %v1043
      %1656 = vmatmul.mubr.bf16.gmra.mrb[0].mxu0 %v1042
      %v1657 = vpop.f32.mrb[0].mxu0
      %v1658 = vadd.f32 %v1545, %v1657
      %v1659 = vpop.f32.mrb[0].mxu0
      %v1660 = vadd.f32 %v1547, %v1659
      %v1661 = vpop.f32.mrb[0].mxu0
      %v1662 = vadd.f32 %v1549, %v1661
      %v1663 = vpop.f32.mrb[0].mxu0
      %v1664 = vadd.f32 %v1551, %v1663
      %1665 = vdwg.mxu0
      %v1666 = vmax.f32 %v1588, 0.0
      %v1667 = vmax.f32 %v1590, 0.0
      %v1668 = vmax.f32 %v1592, 0.0
      %v1669 = vmax.f32 %v1594, 0.0
      %v1670 = vmax.f32 %v1598, 0.0
      %v1671 = vmax.f32 %v1600, 0.0
      %v1672 = vmax.f32 %v1602, 0.0
      %v1673 = vmax.f32 %v1604, 0.0
      %v1674 = vmax.f32 %v1608, 0.0
      %v1675 = vmax.f32 %v1610, 0.0
      %v1676 = vmax.f32 %v1612, 0.0
      %v1677 = vmax.f32 %v1614, 0.0
      %v1678 = vmax.f32 %v1618, 0.0
      %v1679 = vmax.f32 %v1620, 0.0
      %v1680 = vmax.f32 %v1622, 0.0
      %v1681 = vmax.f32 %v1624, 0.0
      %v1682 = vmax.f32 %v1628, 0.0
      %v1683 = vmax.f32 %v1630, 0.0
      %v1684 = vmax.f32 %v1632, 0.0
      %v1685 = vmax.f32 %v1634, 0.0
      %v1686 = vmax.f32 %v1638, 0.0
      %v1687 = vmax.f32 %v1640, 0.0
      %v1688 = vmax.f32 %v1642, 0.0
      %v1689 = vmax.f32 %v1644, 0.0
      %v1690 = vmax.f32 %v1648, 0.0
      %v1691 = vmax.f32 %v1650, 0.0
      %v1692 = vmax.f32 %v1652, 0.0
      %v1693 = vmax.f32 %v1654, 0.0
      %v1694 = vmax.f32 %v1658, 0.0
      %v1695 = vmax.f32 %v1660, 0.0
      %v1696 = vmax.f32 %v1662, 0.0
      %v1697 = vmax.f32 %v1664, 0.0
      %v1698 = vpack.c.bf16 %v1668, %v1666
      %v1699 = vpack.c.bf16 %v1669, %v1667
      %v1700 = vpack.c.bf16 %v1672, %v1670
      %v1701 = vpack.c.bf16 %v1673, %v1671
      %v1702 = vpack.c.bf16 %v1676, %v1674
      %v1703 = vpack.c.bf16 %v1677, %v1675
      %v1704 = vpack.c.bf16 %v1680, %v1678
      %v1705 = vpack.c.bf16 %v1681, %v1679
      %v1706 = vpack.c.bf16 %v1684, %v1682
      %v1707 = vpack.c.bf16 %v1685, %v1683
      %v1708 = vpack.c.bf16 %v1688, %v1686
      %v1709 = vpack.c.bf16 %v1689, %v1687
      %v1710 = vpack.c.bf16 %v1692, %v1690
      %v1711 = vpack.c.bf16 %v1693, %v1691
      %v1712 = vpack.c.bf16 %v1696, %v1694
      %v1713 = vpack.c.bf16 %v1697, %v1695
      %v1714 = vld [vmem:[%s5] sm:$0xf]
      %v1715 = vld [vmem:[%s5 + $0x4] sm:$0xf]
      %v1716 = vld [vmem:[%s5 + $0x8] sm:$0xf]
      %v1717 = vld [vmem:[%s5 + $0xc] sm:$0xf]
      %v1718 = vld [vmem:[%s5 + $0x10] sm:$0xf]
      %v1719 = vld [vmem:[%s5 + $0x14] sm:$0xf]
      %v1720 = vld [vmem:[%s5 + $0x18] sm:$0xf]
      %v1721 = vld [vmem:[%s5 + $0x1c] sm:$0xf]
      %v1722 = vld [vmem:[%s5 + $0x20] sm:$0xf]
      %v1723 = vld [vmem:[%s5 + $0x24] sm:$0xf]
      %v1724 = vld [vmem:[%s5 + $0x28] sm:$0xf]
      %v1725 = vld [vmem:[%s5 + $0x2c] sm:$0xf]
      %v1726 = vld [vmem:[%s5 + $0x30] sm:$0xf]
      %v1727 = vld [vmem:[%s5 + $0x34] sm:$0xf]
      %v1728 = vld [vmem:[%s5 + $0x38] sm:$0xf]
      %v1729 = vld [vmem:[%s5 + $0x3c] sm:$0xf]
      %v1730 = vld [vmem:[%s5 + $0x40] sm:$0xf]
      %v1731 = vld [vmem:[%s5 + $0x44] sm:$0xf]
      %v1732 = vld [vmem:[%s5 + $0x48] sm:$0xf]
      %v1733 = vld [vmem:[%s5 + $0x4c] sm:$0xf]
      %v1734 = vld [vmem:[%s5 + $0x50] sm:$0xf]
      %v1735 = vld [vmem:[%s5 + $0x54] sm:$0xf]
      %v1736 = vld [vmem:[%s5 + $0x58] sm:$0xf]
      %v1737 = vld [vmem:[%s5 + $0x5c] sm:$0xf]
      %v1738 = vld [vmem:[%s5 + $0x60] sm:$0xf]
      %v1739 = vld [vmem:[%s5 + $0x64] sm:$0xf]
      %v1740 = vld [vmem:[%s5 + $0x68] sm:$0xf]
      %v1741 = vld [vmem:[%s5 + $0x6c] sm:$0xf]
      %v1742 = vld [vmem:[%s5 + $0x70] sm:$0xf]
      %v1743 = vld [vmem:[%s5 + $0x74] sm:$0xf]
      %v1744 = vld [vmem:[%s5 + $0x78] sm:$0xf]
      %v1745 = vld [vmem:[%s5 + $0x7c] sm:$0xf]
      %v1746 = vld [vmem:[%s6] sm:$0x1]
      %v1748 = vlaneseq
      %v1749 = vshrl.u32 %v1748, 7
      %v1750 = vsub.s32 0, %v1749
      %v1751 = vrot.slane %v1746, %v1750
      %v1785 = vunpack.c.l.b16 %v1714
      %v1786 = vunpack.c.l.b16 %v1715
      %v1787 = vunpack.c.l.b16 %v1716
      %v1788 = vunpack.c.l.b16 %v1717
      %v1789 = vunpack.c.l.b16 %v1718
      %v1790 = vunpack.c.l.b16 %v1719
      %v1791 = vunpack.c.l.b16 %v1720
      %v1792 = vunpack.c.l.b16 %v1721
      %v1793 = vunpack.c.l.b16 %v1722
      %v1794 = vunpack.c.l.b16 %v1723
      %v1795 = vunpack.c.l.b16 %v1724
      %v1796 = vunpack.c.l.b16 %v1725
      %v1797 = vunpack.c.l.b16 %v1726
      %v1798 = vunpack.c.l.b16 %v1727
      %v1799 = vunpack.c.l.b16 %v1728
      %v1800 = vunpack.c.l.b16 %v1729
      %v1801 = vunpack.c.l.b16 %v1730
      %v1802 = vunpack.c.l.b16 %v1731
      %v1803 = vunpack.c.l.b16 %v1732
      %v1804 = vunpack.c.l.b16 %v1733
      %v1805 = vunpack.c.l.b16 %v1734
      %v1806 = vunpack.c.l.b16 %v1735
      %v1807 = vunpack.c.l.b16 %v1736
      %v1808 = vunpack.c.l.b16 %v1737
      %v1809 = vunpack.c.l.b16 %v1738
      %v1810 = vunpack.c.l.b16 %v1739
      %v1811 = vunpack.c.l.b16 %v1740
      %v1812 = vunpack.c.l.b16 %v1741
      %v1813 = vunpack.c.l.b16 %v1742
      %v1814 = vunpack.c.l.b16 %v1743
      %v1815 = vunpack.c.l.b16 %v1744
      %v1816 = vunpack.c.l.b16 %v1745
      %v1817 = vpack.c.b16 %v1786, %v1785
      %v1818 = vpack.c.b16 %v1788, %v1787
      %v1819 = vpack.c.b16 %v1790, %v1789
      %v1820 = vpack.c.b16 %v1792, %v1791
      %v1821 = vpack.c.b16 %v1794, %v1793
      %v1822 = vpack.c.b16 %v1796, %v1795
      %v1823 = vpack.c.b16 %v1798, %v1797
      %v1824 = vpack.c.b16 %v1800, %v1799
      %v1825 = vpack.c.b16 %v1802, %v1801
      %v1826 = vpack.c.b16 %v1804, %v1803
      %v1827 = vpack.c.b16 %v1806, %v1805
      %v1828 = vpack.c.b16 %v1808, %v1807
      %v1829 = vpack.c.b16 %v1810, %v1809
      %v1830 = vpack.c.b16 %v1812, %v1811
      %v1831 = vpack.c.b16 %v1814, %v1813
      %v1832 = vpack.c.b16 %v1816, %v1815
      %1849 = vmatprep.subr.bf16.mxu0 0
      %1850 = vmatpush1.bf16.msra.mxu0 %v1817
      %1851 = vmatprep.subr.bf16.mxu0 0
      %1852 = vmatpush1.bf16.msra.mxu0 %v1818
      %1853 = vmatprep.subr.bf16.mxu0 0
      %1854 = vmatpush1.bf16.msra.mxu0 %v1819
      %1855 = vmatprep.subr.bf16.mxu0 0
      %1856 = vmatpush1.bf16.msra.mxu0 %v1820
      %1857 = vmatprep.subr.bf16.mxu0 0
      %1858 = vmatpush1.bf16.msra.mxu0 %v1821
      %1859 = vmatprep.subr.bf16.mxu0 0
      %1860 = vmatpush1.bf16.msra.mxu0 %v1822
      %1861 = vmatprep.subr.bf16.mxu0 0
      %1862 = vmatpush1.bf16.msra.mxu0 %v1823
      %1863 = vmatprep.subr.bf16.mxu0 0
      %1864 = vmatpush1.bf16.msra.mxu0 %v1824
      %1865 = vmatprep.subr.bf16.mxu0 0
      %1866 = vmatpush1.bf16.msra.mxu0 %v1825
      %1867 = vmatprep.subr.bf16.mxu0 0
      %1868 = vmatpush1.bf16.msra.mxu0 %v1826
      %1869 = vmatprep.subr.bf16.mxu0 0
      %1870 = vmatpush1.bf16.msra.mxu0 %v1827
      %1871 = vmatprep.subr.bf16.mxu0 0
      %1872 = vmatpush1.bf16.msra.mxu0 %v1828
      %1873 = vmatprep.subr.bf16.mxu0 0
      %1874 = vmatpush1.bf16.msra.mxu0 %v1829
      %1875 = vmatprep.subr.bf16.mxu0 0
      %1876 = vmatpush1.bf16.msra.mxu0 %v1830
      %1877 = vmatprep.subr.bf16.mxu0 0
      %1878 = vmatpush1.bf16.msra.mxu0 %v1831
      %1879 = vmatprep.subr.bf16.mxu0 0
      %1880 = vmatpush1.bf16.msra.mxu0 %v1832
      %1881 = vmatprep.mubr.bf16.mxu0 %v1699
      %1882 = vmatmul.mubr.bf16.gmra.mrb[0].mxu0 %v1698
      %v1883 = vpop.f32.mrb[0].mxu0
      %v1884 = vadd.f32 %v1751, %v1883
      %v1885 = vpop.f32.mrb[0].mxu0
      %v1886 = vpop.f32.mrb[0].mxu0
      %v1887 = vadd.f32 %v1751, %v1886
      %v1888 = vpop.f32.mrb[0].mxu0
      %1889 = vmatprep.mubr.bf16.mxu0 %v1701
      %1890 = vmatmul.mubr.bf16.gmra.mrb[0].mxu0 %v1700
      %v1891 = vpop.f32.mrb[0].mxu0
      %v1892 = vadd.f32 %v1751, %v1891
      %v1893 = vpop.f32.mrb[0].mxu0
      %v1894 = vpop.f32.mrb[0].mxu0
      %v1895 = vadd.f32 %v1751, %v1894
      %v1896 = vpop.f32.mrb[0].mxu0
      %1897 = vmatprep.mubr.bf16.mxu0 %v1703
      %1898 = vmatmul.mubr.bf16.gmra.mrb[0].mxu0 %v1702
      %v1899 = vpop.f32.mrb[0].mxu0
      %v1900 = vadd.f32 %v1751, %v1899
      %v1901 = vpop.f32.mrb[0].mxu0
      %v1902 = vpop.f32.mrb[0].mxu0
      %v1903 = vadd.f32 %v1751, %v1902
      %v1904 = vpop.f32.mrb[0].mxu0
      %1905 = vmatprep.mubr.bf16.mxu0 %v1705
      %1906 = vmatmul.mubr.bf16.gmra.mrb[0].mxu0 %v1704
      %v1907 = vpop.f32.mrb[0].mxu0
      %v1908 = vadd.f32 %v1751, %v1907
      %v1909 = vpop.f32.mrb[0].mxu0
      %v1910 = vpop.f32.mrb[0].mxu0
      %v1911 = vadd.f32 %v1751, %v1910
      %v1912 = vpop.f32.mrb[0].mxu0
      %1913 = vmatprep.mubr.bf16.mxu0 %v1707
      %1914 = vmatmul.mubr.bf16.gmra.mrb[0].mxu0 %v1706
      %v1915 = vpop.f32.mrb[0].mxu0
      %v1916 = vadd.f32 %v1751, %v1915
      %v1917 = vpop.f32.mrb[0].mxu0
      %v1918 = vpop.f32.mrb[0].mxu0
      %v1919 = vadd.f32 %v1751, %v1918
      %v1920 = vpop.f32.mrb[0].mxu0
      %1921 = vmatprep.mubr.bf16.mxu0 %v1709
      %1922 = vmatmul.mubr.bf16.gmra.mrb[0].mxu0 %v1708
      %v1923 = vpop.f32.mrb[0].mxu0
      %v1924 = vadd.f32 %v1751, %v1923
      %v1925 = vpop.f32.mrb[0].mxu0
      %v1926 = vpop.f32.mrb[0].mxu0
      %v1927 = vadd.f32 %v1751, %v1926
      %v1928 = vpop.f32.mrb[0].mxu0
      %1929 = vmatprep.mubr.bf16.mxu0 %v1711
      %1930 = vmatmul.mubr.bf16.gmra.mrb[0].mxu0 %v1710
      %v1931 = vpop.f32.mrb[0].mxu0
      %v1932 = vadd.f32 %v1751, %v1931
      %v1933 = vpop.f32.mrb[0].mxu0
      %v1934 = vpop.f32.mrb[0].mxu0
      %v1935 = vadd.f32 %v1751, %v1934
      %v1936 = vpop.f32.mrb[0].mxu0
      %1937 = vmatprep.mubr.bf16.mxu0 %v1713
      %1938 = vmatmul.mubr.bf16.gmra.mrb[0].mxu0 %v1712
      %v1939 = vpop.f32.mrb[0].mxu0
      %v1940 = vadd.f32 %v1751, %v1939
      %v1941 = vpop.f32.mrb[0].mxu0
      %v1942 = vpop.f32.mrb[0].mxu0
      %v1943 = vadd.f32 %v1751, %v1942
      %v1944 = vpop.f32.mrb[0].mxu0
      %1945 = vdwg.mxu0
      %v1946 = vmax.f32 %v1884, 0.0
      %v1947 = vmax.f32 %v1887, 0.0
      %v1948 = vmax.f32 %v1892, 0.0
      %v1949 = vmax.f32 %v1895, 0.0
      %v1950 = vmax.f32 %v1900, 0.0
      %v1951 = vmax.f32 %v1903, 0.0
      %v1952 = vmax.f32 %v1908, 0.0
      %v1953 = vmax.f32 %v1911, 0.0
      %v1954 = vmax.f32 %v1916, 0.0
      %v1955 = vmax.f32 %v1919, 0.0
      %v1956 = vmax.f32 %v1924, 0.0
      %v1957 = vmax.f32 %v1927, 0.0
      %v1958 = vmax.f32 %v1932, 0.0
      %v1959 = vmax.f32 %v1935, 0.0
      %v1960 = vmax.f32 %v1940, 0.0
      %v1961 = vmax.f32 %v1943, 0.0
      %v1962 = vpack.c.bf16 %v1947, %v1946
      %v1963 = vpack.c.bf16 %v1949, %v1948
      %v1964 = vpack.c.bf16 %v1951, %v1950
      %v1965 = vpack.c.bf16 %v1953, %v1952
      %v1966 = vpack.c.bf16 %v1955, %v1954
      %v1967 = vpack.c.bf16 %v1957, %v1956
      %v1968 = vpack.c.bf16 %v1959, %v1958
      %v1969 = vpack.c.bf16 %v1961, %v1960
      %v1970 = vld [vmem:[%s7] sm:$0xf]
      %v1971 = vld [vmem:[%s7 + $0x4] sm:$0xf]
      %v1972 = vld [vmem:[%s7 + $0x8] sm:$0xf]
      %v1973 = vld [vmem:[%s7 + $0xc] sm:$0xf]
      %v1974 = vld [vmem:[%s7 + $0x10] sm:$0xf]
      %v1975 = vld [vmem:[%s7 + $0x14] sm:$0xf]
      %v1976 = vld [vmem:[%s7 + $0x18] sm:$0xf]
      %v1977 = vld [vmem:[%s7 + $0x1c] sm:$0xf]
      %v1978 = vld [vmem:[%s7 + $0x20] sm:$0xf]
      %v1979 = vld [vmem:[%s7 + $0x24] sm:$0xf]
      %v1980 = vld [vmem:[%s7 + $0x28] sm:$0xf]
      %v1981 = vld [vmem:[%s7 + $0x2c] sm:$0xf]
      %v1982 = vld [vmem:[%s7 + $0x30] sm:$0xf]
      %v1983 = vld [vmem:[%s7 + $0x34] sm:$0xf]
      %v1984 = vld [vmem:[%s7 + $0x38] sm:$0xf]
      %v1985 = vld [vmem:[%s7 + $0x3c] sm:$0xf]
      %v1986 = vld [vmem:[%s8] sm:$0x1]
      %v1988 = vlaneseq
      %v1989 = vshrl.u32 %v1988, 7
      %v1990 = vsub.s32 0, %v1989
      %v1991 = vrot.slane %v1986, %v1990
      %v2009 = vunpack.c.l.b16 %v1970
      %v2010 = vunpack.c.l.b16 %v1971
      %v2011 = vunpack.c.l.b16 %v1972
      %v2012 = vunpack.c.l.b16 %v1973
      %v2013 = vunpack.c.l.b16 %v1974
      %v2014 = vunpack.c.l.b16 %v1975
      %v2015 = vunpack.c.l.b16 %v1976
      %v2016 = vunpack.c.l.b16 %v1977
      %v2017 = vunpack.c.l.b16 %v1978
      %v2018 = vunpack.c.l.b16 %v1979
      %v2019 = vunpack.c.l.b16 %v1980
      %v2020 = vunpack.c.l.b16 %v1981
      %v2021 = vunpack.c.l.b16 %v1982
      %v2022 = vunpack.c.l.b16 %v1983
      %v2023 = vunpack.c.l.b16 %v1984
      %v2024 = vunpack.c.l.b16 %v1985
      %v2025 = vpack.c.b16 %v2010, %v2009
      %v2026 = vpack.c.b16 %v2012, %v2011
      %v2027 = vpack.c.b16 %v2014, %v2013
      %v2028 = vpack.c.b16 %v2016, %v2015
      %v2029 = vpack.c.b16 %v2018, %v2017
      %v2030 = vpack.c.b16 %v2020, %v2019
      %v2031 = vpack.c.b16 %v2022, %v2021
      %v2032 = vpack.c.b16 %v2024, %v2023
      %2041 = vmatprep.subr.bf16.mxu0 0
      %2042 = vmatpush1.bf16.msra.mxu0 %v2025
      %2043 = vmatprep.subr.bf16.mxu0 0
      %2044 = vmatpush1.bf16.msra.mxu0 %v2026
      %2045 = vmatprep.subr.bf16.mxu0 0
      %2046 = vmatpush1.bf16.msra.mxu0 %v2027
      %2047 = vmatprep.subr.bf16.mxu0 0
      %2048 = vmatpush1.bf16.msra.mxu0 %v2028
      %2049 = vmatprep.subr.bf16.mxu0 0
      %2050 = vmatpush1.bf16.msra.mxu0 %v2029
      %2051 = vmatprep.subr.bf16.mxu0 0
      %2052 = vmatpush1.bf16.msra.mxu0 %v2030
      %2053 = vmatprep.subr.bf16.mxu0 0
      %2054 = vmatpush1.bf16.msra.mxu0 %v2031
      %2055 = vmatprep.subr.bf16.mxu0 0
      %2056 = vmatpush1.bf16.msra.mxu0 %v2032
      %2057 = vmatprep.subr.bf16.mxu0 0
      %2058 = vmatpush1.bf16.msra.mxu0 0
      %2059 = vmatprep.subr.bf16.mxu0 0
      %2060 = vmatpush1.bf16.msra.mxu0 0
      %2061 = vmatprep.subr.bf16.mxu0 0
      %2062 = vmatpush1.bf16.msra.mxu0 0
      %2063 = vmatprep.subr.bf16.mxu0 0
      %2064 = vmatpush1.bf16.msra.mxu0 0
      %2065 = vmatprep.subr.bf16.mxu0 0
      %2066 = vmatpush1.bf16.msra.mxu0 0
      %2067 = vmatprep.subr.bf16.mxu0 0
      %2068 = vmatpush1.bf16.msra.mxu0 0
      %2069 = vmatprep.subr.bf16.mxu0 0
      %2070 = vmatpush1.bf16.msra.mxu0 0
      %2071 = vmatprep.subr.bf16.mxu0 0
      %2072 = vmatpush1.bf16.msra.mxu0 0
      %2073 = vmatprep.mubr.bf16.mxu0 0
      %2074 = vmatmul.mubr.bf16.gmra.mrb[0].mxu0 %v1962
      %v2075 = vpop.f32.mrb[0].mxu0
      %v2076 = vadd.f32 %v1991, %v2075
      %v2077 = vpop.f32.mrb[0].mxu0
      %v2078 = vpop.f32.mrb[0].mxu0
      %v2079 = vadd.f32 %v1991, %v2078
      %v2080 = vpop.f32.mrb[0].mxu0
      %2081 = vmatprep.mubr.bf16.mxu0 0
      %2082 = vmatmul.mubr.bf16.gmra.mrb[0].mxu0 %v1963
      %v2083 = vpop.f32.mrb[0].mxu0
      %v2084 = vadd.f32 %v1991, %v2083
      %v2085 = vpop.f32.mrb[0].mxu0
      %v2086 = vpop.f32.mrb[0].mxu0
      %v2087 = vadd.f32 %v1991, %v2086
      %v2088 = vpop.f32.mrb[0].mxu0
      %2089 = vmatprep.mubr.bf16.mxu0 0
      %2090 = vmatmul.mubr.bf16.gmra.mrb[0].mxu0 %v1964
      %v2091 = vpop.f32.mrb[0].mxu0
      %v2092 = vadd.f32 %v1991, %v2091
      %v2093 = vpop.f32.mrb[0].mxu0
      %v2094 = vpop.f32.mrb[0].mxu0
      %v2095 = vadd.f32 %v1991, %v2094
      %v2096 = vpop.f32.mrb[0].mxu0
      %2097 = vmatprep.mubr.bf16.mxu0 0
      %2098 = vmatmul.mubr.bf16.gmra.mrb[0].mxu0 %v1965
      %v2099 = vpop.f32.mrb[0].mxu0
      %v2100 = vadd.f32 %v1991, %v2099
      %v2101 = vpop.f32.mrb[0].mxu0
      %v2102 = vpop.f32.mrb[0].mxu0
      %v2103 = vadd.f32 %v1991, %v2102
      %v2104 = vpop.f32.mrb[0].mxu0
      %2105 = vmatprep.mubr.bf16.mxu0 0
      %2106 = vmatmul.mubr.bf16.gmra.mrb[0].mxu0 %v1966
      %v2107 = vpop.f32.mrb[0].mxu0
      %v2108 = vadd.f32 %v1991, %v2107
      %v2109 = vpop.f32.mrb[0].mxu0
      %v2110 = vpop.f32.mrb[0].mxu0
      %v2111 = vadd.f32 %v1991, %v2110
      %v2112 = vpop.f32.mrb[0].mxu0
      %2113 = vmatprep.mubr.bf16.mxu0 0
      %2114 = vmatmul.mubr.bf16.gmra.mrb[0].mxu0 %v1967
      %v2115 = vpop.f32.mrb[0].mxu0
      %v2116 = vadd.f32 %v1991, %v2115
      %v2117 = vpop.f32.mrb[0].mxu0
      %v2118 = vpop.f32.mrb[0].mxu0
      %v2119 = vadd.f32 %v1991, %v2118
      %v2120 = vpop.f32.mrb[0].mxu0
      %2121 = vmatprep.mubr.bf16.mxu0 0
      %2122 = vmatmul.mubr.bf16.gmra.mrb[0].mxu0 %v1968
      %v2123 = vpop.f32.mrb[0].mxu0
      %v2124 = vadd.f32 %v1991, %v2123
      %v2125 = vpop.f32.mrb[0].mxu0
      %v2126 = vpop.f32.mrb[0].mxu0
      %v2127 = vadd.f32 %v1991, %v2126
      %v2128 = vpop.f32.mrb[0].mxu0
      %2129 = vmatprep.mubr.bf16.mxu0 0
      %2130 = vmatmul.mubr.bf16.gmra.mrb[0].mxu0 %v1969
      %v2131 = vpop.f32.mrb[0].mxu0
      %v2132 = vadd.f32 %v1991, %v2131
      %v2133 = vpop.f32.mrb[0].mxu0
      %v2134 = vpop.f32.mrb[0].mxu0
      %v2135 = vadd.f32 %v1991, %v2134
      %v2136 = vpop.f32.mrb[0].mxu0
      %2137 = vdwg.mxu0
      %v2138 = vmax.f32 %v2076, 0.0
      %v2139 = vmax.f32 %v2079, 0.0
      %v2140 = vmax.f32 %v2084, 0.0
      %v2141 = vmax.f32 %v2087, 0.0
      %v2142 = vmax.f32 %v2092, 0.0
      %v2143 = vmax.f32 %v2095, 0.0
      %v2144 = vmax.f32 %v2100, 0.0
      %v2145 = vmax.f32 %v2103, 0.0
      %v2146 = vmax.f32 %v2108, 0.0
      %v2147 = vmax.f32 %v2111, 0.0
      %v2148 = vmax.f32 %v2116, 0.0
      %v2149 = vmax.f32 %v2119, 0.0
      %v2150 = vmax.f32 %v2124, 0.0
      %v2151 = vmax.f32 %v2127, 0.0
      %v2152 = vmax.f32 %v2132, 0.0
      %v2153 = vmax.f32 %v2135, 0.0
      %v2154 = vpack.c.bf16 %v2139, %v2138
      %v2155 = vpack.c.bf16 %v2141, %v2140
      %v2156 = vpack.c.bf16 %v2143, %v2142
      %v2157 = vpack.c.bf16 %v2145, %v2144
      %v2158 = vpack.c.bf16 %v2147, %v2146
      %v2159 = vpack.c.bf16 %v2149, %v2148
      %v2160 = vpack.c.bf16 %v2151, %v2150
      %v2161 = vpack.c.bf16 %v2153, %v2152
      %v2162 = vld [vmem:[%s9] sm:$0xf]
      %v2163 = vld [vmem:[%s9 + $0x4] sm:$0xf]
      %v2164 = vld [vmem:[%s9 + $0x8] sm:$0xf]
      %v2165 = vld [vmem:[%s9 + $0xc] sm:$0xf]
      %v2166 = vld [vmem:[%s9 + $0x10] sm:$0xf]
      %v2167 = vld [vmem:[%s9 + $0x14] sm:$0xf]
      %v2168 = vld [vmem:[%s9 + $0x18] sm:$0xf]
      %v2169 = vld [vmem:[%s9 + $0x1c] sm:$0xf]
      %v2170 = vld [vmem:[%s9 + $0x20] sm:$0xf]
      %v2171 = vld [vmem:[%s9 + $0x24] sm:$0xf]
      %v2172 = vld [vmem:[%s9 + $0x28] sm:$0xf]
      %v2173 = vld [vmem:[%s9 + $0x2c] sm:$0xf]
      %v2174 = vld [vmem:[%s9 + $0x30] sm:$0xf]
      %v2175 = vld [vmem:[%s9 + $0x34] sm:$0xf]
      %v2176 = vld [vmem:[%s9 + $0x38] sm:$0xf]
      %v2177 = vld [vmem:[%s9 + $0x3c] sm:$0xf]
      %v2178 = vld [vmem:[%s10] sm:$0x1]
      %v2180 = vlaneseq
      %v2181 = vshrl.u32 %v2180, 7
      %v2182 = vsub.s32 0, %v2181
      %v2183 = vrot.slane %v2178, %v2182
      %v2201 = vunpack.c.l.b16 %v2162
      %v2202 = vunpack.c.l.b16 %v2163
      %v2203 = vunpack.c.l.b16 %v2164
      %v2204 = vunpack.c.l.b16 %v2165
      %v2205 = vunpack.c.l.b16 %v2166
      %v2206 = vunpack.c.l.b16 %v2167
      %v2207 = vunpack.c.l.b16 %v2168
      %v2208 = vunpack.c.l.b16 %v2169
      %v2209 = vunpack.c.l.b16 %v2170
      %v2210 = vunpack.c.l.b16 %v2171
      %v2211 = vunpack.c.l.b16 %v2172
      %v2212 = vunpack.c.l.b16 %v2173
      %v2213 = vunpack.c.l.b16 %v2174
      %v2214 = vunpack.c.l.b16 %v2175
      %v2215 = vunpack.c.l.b16 %v2176
      %v2216 = vunpack.c.l.b16 %v2177
      %v2217 = vpack.c.b16 %v2202, %v2201
      %v2218 = vpack.c.b16 %v2204, %v2203
      %v2219 = vpack.c.b16 %v2206, %v2205
      %v2220 = vpack.c.b16 %v2208, %v2207
      %v2221 = vpack.c.b16 %v2210, %v2209
      %v2222 = vpack.c.b16 %v2212, %v2211
      %v2223 = vpack.c.b16 %v2214, %v2213
      %v2224 = vpack.c.b16 %v2216, %v2215
      %2233 = vmatprep.subr.bf16.mxu0 0
      %2234 = vmatpush1.bf16.msra.mxu0 %v2217
      %2235 = vmatprep.subr.bf16.mxu0 0
      %2236 = vmatpush1.bf16.msra.mxu0 %v2218
      %2237 = vmatprep.subr.bf16.mxu0 0
      %2238 = vmatpush1.bf16.msra.mxu0 %v2219
      %2239 = vmatprep.subr.bf16.mxu0 0
      %2240 = vmatpush1.bf16.msra.mxu0 %v2220
      %2241 = vmatprep.subr.bf16.mxu0 0
      %2242 = vmatpush1.bf16.msra.mxu0 %v2221
      %2243 = vmatprep.subr.bf16.mxu0 0
      %2244 = vmatpush1.bf16.msra.mxu0 %v2222
      %2245 = vmatprep.subr.bf16.mxu0 0
      %2246 = vmatpush1.bf16.msra.mxu0 %v2223
      %2247 = vmatprep.subr.bf16.mxu0 0
      %2248 = vmatpush1.bf16.msra.mxu0 %v2224
      %2249 = vmatprep.subr.bf16.mxu0 0
      %2250 = vmatpush1.bf16.msra.mxu0 0
      %2251 = vmatprep.subr.bf16.mxu0 0
      %2252 = vmatpush1.bf16.msra.mxu0 0
      %2253 = vmatprep.subr.bf16.mxu0 0
      %2254 = vmatpush1.bf16.msra.mxu0 0
      %2255 = vmatprep.subr.bf16.mxu0 0
      %2256 = vmatpush1.bf16.msra.mxu0 0
      %2257 = vmatprep.subr.bf16.mxu0 0
      %2258 = vmatpush1.bf16.msra.mxu0 0
      %2259 = vmatprep.subr.bf16.mxu0 0
      %2260 = vmatpush1.bf16.msra.mxu0 0
      %2261 = vmatprep.subr.bf16.mxu0 0
      %2262 = vmatpush1.bf16.msra.mxu0 0
      %2263 = vmatprep.subr.bf16.mxu0 0
      %2264 = vmatpush1.bf16.msra.mxu0 0
      %2265 = vmatprep.mubr.bf16.mxu0 0
      %2266 = vmatmul.mubr.bf16.gmra.mrb[0].mxu0 %v2154
      %v2267 = vpop.f32.mrb[0].mxu0
      %v2268 = vadd.f32 %v2183, %v2267
      %v2269 = vpop.f32.mrb[0].mxu0
      %v2270 = vpop.f32.mrb[0].mxu0
      %v2271 = vadd.f32 %v2183, %v2270
      %v2272 = vpop.f32.mrb[0].mxu0
      %2273 = vmatprep.mubr.bf16.mxu0 0
      %2274 = vmatmul.mubr.bf16.gmra.mrb[0].mxu0 %v2155
      %v2275 = vpop.f32.mrb[0].mxu0
      %v2276 = vadd.f32 %v2183, %v2275
      %v2277 = vpop.f32.mrb[0].mxu0
      %v2278 = vpop.f32.mrb[0].mxu0
      %v2279 = vadd.f32 %v2183, %v2278
      %v2280 = vpop.f32.mrb[0].mxu0
      %2281 = vmatprep.mubr.bf16.mxu0 0
      %2282 = vmatmul.mubr.bf16.gmra.mrb[0].mxu0 %v2156
      %v2283 = vpop.f32.mrb[0].mxu0
      %v2284 = vadd.f32 %v2183, %v2283
      %v2285 = vpop.f32.mrb[0].mxu0
      %v2286 = vpop.f32.mrb[0].mxu0
      %v2287 = vadd.f32 %v2183, %v2286
      %v2288 = vpop.f32.mrb[0].mxu0
      %2289 = vmatprep.mubr.bf16.mxu0 0
      %2290 = vmatmul.mubr.bf16.gmra.mrb[0].mxu0 %v2157
      %v2291 = vpop.f32.mrb[0].mxu0
      %v2292 = vadd.f32 %v2183, %v2291
      %v2293 = vpop.f32.mrb[0].mxu0
      %v2294 = vpop.f32.mrb[0].mxu0
      %v2295 = vadd.f32 %v2183, %v2294
      %v2296 = vpop.f32.mrb[0].mxu0
      %2297 = vmatprep.mubr.bf16.mxu0 0
      %2298 = vmatmul.mubr.bf16.gmra.mrb[0].mxu0 %v2158
      %v2299 = vpop.f32.mrb[0].mxu0
      %v2300 = vadd.f32 %v2183, %v2299
      %v2301 = vpop.f32.mrb[0].mxu0
      %v2302 = vpop.f32.mrb[0].mxu0
      %v2303 = vadd.f32 %v2183, %v2302
      %v2304 = vpop.f32.mrb[0].mxu0
      %2305 = vmatprep.mubr.bf16.mxu0 0
      %2306 = vmatmul.mubr.bf16.gmra.mrb[0].mxu0 %v2159
      %v2307 = vpop.f32.mrb[0].mxu0
      %v2308 = vadd.f32 %v2183, %v2307
      %v2309 = vpop.f32.mrb[0].mxu0
      %v2310 = vpop.f32.mrb[0].mxu0
      %v2311 = vadd.f32 %v2183, %v2310
      %v2312 = vpop.f32.mrb[0].mxu0
      %2313 = vmatprep.mubr.bf16.mxu0 0
      %2314 = vmatmul.mubr.bf16.gmra.mrb[0].mxu0 %v2160
      %v2315 = vpop.f32.mrb[0].mxu0
      %v2316 = vadd.f32 %v2183, %v2315
      %v2317 = vpop.f32.mrb[0].mxu0
      %v2318 = vpop.f32.mrb[0].mxu0
      %v2319 = vadd.f32 %v2183, %v2318
      %v2320 = vpop.f32.mrb[0].mxu0
      %2321 = vmatprep.mubr.bf16.mxu0 0
      %2322 = vmatmul.mubr.bf16.gmra.mrb[0].mxu0 %v2161
      %v2323 = vpop.f32.mrb[0].mxu0
      %v2324 = vadd.f32 %v2183, %v2323
      %v2325 = vpop.f32.mrb[0].mxu0
      %v2326 = vpop.f32.mrb[0].mxu0
      %v2327 = vadd.f32 %v2183, %v2326
      %v2328 = vpop.f32.mrb[0].mxu0
      %2329 = vdwg.mxu0
      %2330 = vst [vmem:[%s441] sm:$0xff] %v2268
      %2331 = vst [vmem:[%s441 + $0x8] sm:$0xff] %v2271
      %2332 = vst [vmem:[%s441 + $0x10] sm:$0xff] %v2276
      %2333 = vst [vmem:[%s441 + $0x18] sm:$0xff] %v2279
      %2334 = vst [vmem:[%s441 + $0x20] sm:$0xff] %v2284
      %2335 = vst [vmem:[%s441 + $0x28] sm:$0xff] %v2287
      %2336 = vst [vmem:[%s441 + $0x30] sm:$0xff] %v2292
      %2337 = vst [vmem:[%s441 + $0x38] sm:$0xff] %v2295
      %2338 = vst [vmem:[%s441 + $0x40] sm:$0xff] %v2300
      %2339 = vst [vmem:[%s441 + $0x48] sm:$0xff] %v2303
      %2340 = vst [vmem:[%s441 + $0x50] sm:$0xff] %v2308
      %2341 = vst [vmem:[%s441 + $0x58] sm:$0xff] %v2311
      %2342 = vst [vmem:[%s441 + $0x60] sm:$0xff] %v2316
      %2343 = vst [vmem:[%s441 + $0x68] sm:$0xff] %v2319
      %2344 = vst [vmem:[%s441 + $0x70] sm:$0xff] %v2324
      %2345 = vst [vmem:[%s441 + $0x78] sm:$0xff] %v2327
      %s2346 = smul.u32 16, %s27
      %p2347 = scmp.lt.s32.totalorder %s26, 1
      %s2348 = scalar_select %p2347, %s26, 1
      %p2349 = scmp.lt.s32.totalorder %s2346, 15
      %s2350 = scalar_select %p2349, %s2346, 15
      %s2351 = smul.addr %s2348, 16
      %s2352 = sadd.s32 %s2350, %s2351
      %s2353 = smul.addr %s2352, 8
      %s2354 = scalar_lea.vmem %s11, %s2353
      // Predicated region
      $region65: #{instance_segmentation_forward.3} parent=63 // pred_check
        %p2355 = pneg %p297
      $region66: #{instance_segmentation_forward.3} parent=63 // pred_check_branch
        %2357 = sbr.rel (%p2355) target = $region68
      $region67: #{instance_segmentation_forward.3} parent=63 // pred_region
        %s2358 = smul.u32 16, %s27
      $region68: #{instance_segmentation_forward.3} parent=63 // pred_fallthru
        _
    $region64: #{instance_segmentation_forward.3} parent=5 // pred_fallthru
      _
    %p2359 = scmp.le.s32.totalorder 2, %s17
    // Predicated region
    $region69: #{instance_segmentation_forward.3} parent=5 // pred_check
      %p2360 = pneg %p2359
    $region70: #{instance_segmentation_forward.3} parent=5 // pred_check_branch
      %2362 = sbr.rel (%p2360) target = $region72
    $region71: #{instance_segmentation_forward.3} parent=5 // pred_region
      %s2363 = ssub.s32 %s17, 2
      // Predicated region
      $region73: #{instance_segmentation_forward.3} parent=71 // pred_check
        %p2364 = pneg %p303
      $region74: #{instance_segmentation_forward.3} parent=71 // pred_check_branch
        %2366 = sbr.rel (%p2364) target = $region76
      $region75: #{instance_segmentation_forward.3} parent=71 // pred_region
        %s2367 = smul.u32 16, %s29
        %p2368 = scmp.lt.s32.totalorder %s28, 1
        %s2369 = scalar_select %p2368, %s28, 1
        %p2370 = scmp.lt.s32.totalorder %s2367, 15
        %s2371 = scalar_select %p2370, %s2367, 15
        %s2372 = smul.addr %s2369, 16
        %s2373 = sadd.s32 %s2371, %s2372
        %s2374 = smul.addr %s2373, 8
        %s2375 = scalar_lea.vmem %s11, %s2374
      $region76: #{instance_segmentation_forward.3} parent=71 // pred_fallthru
        _
    $region72: #{instance_segmentation_forward.3} parent=5 // pred_fallthru
      _
  $region6: #{instance_segmentation_forward.3} parent=0 // loop_footer
    %s21 = sadd.s32 1, %s17
  $region7: #{instance_segmentation_forward.3} parent=0 // loop_footer_branch
    %16 = sbr.rel target = $region3
  $region8: #{instance_segmentation_forward.3} parent=0 // loop_exit
    _

</llo_original>
